<compile_context>
chip_gen: v6e
topology: v6e:2x2x1
jax: 0.10.0
libtpu: 0.0.40
codegen_flags: <defaults>
</compile_context>

<pallas_src>
import functools

import jax
import jax.numpy as jnp
from jax import lax
from jax.experimental import pallas as pl
from jax.experimental.pallas import tpu as pltpu


# ------------------------------ small helpers --------------------------------

def _round_up(x, m):
    return (x + m - 1) // m * m


def _heads_per_group(n_head, head_size, target_lanes=512):
    """Largest head group whose lane width is a multiple of 128 and <= target.

    Falls back to all heads (lane width == C) when C is small or head_size
    does not tile to 128 lanes."""
    C = n_head * head_size
    if C <= max(128, target_lanes):
        return n_head
    best = n_head
    for g in range(1, n_head + 1):
        if (n_head % g == 0 and (g * head_size) % 128 == 0
                and g * head_size <= target_lanes):
            best = g
    return best


# ----------------------------- WKV-7 Pallas kernel ----------------------------

def _wkv7_fused_kernel(eps, n_inv_steps,
                       r_ref, lw_ref, k_ref, v_ref, a_ref, b_ref,
                       lnw_ref, lnb_ref, faa_ref,
                       y_ref, state_ref):
    """One (batch, head-group, time-chunk) step of the chunked RWKV-7
    recurrence, with GroupNorm + (r*k*u).sum*v bonus fused into the epilogue.

    Per-step recurrence (matches cuda/wkv7.cu):
        wdec = exp(-exp(w))      (lw = -exp(w) = log wdec, hoisted to wrapper)
        sa   = S @ a
        S    = S * wdec[None, :] + v k^T + sa b^T
        y    = S @ r
    Chunked closed form with c_i = prod_{s<=i} wdec_s:
        S_i  = S_0 diag(c_i) + sum_{s<=i} (v_s k_s^T + sa_s b_s^T) diag(c_i/c_s)
        sa_i = S_0 (c_{i-1} a_i)
               + sum_{s<i} [ (b~_s . a~_i) sa_s + (k~_s . a~_i) v_s ]
    with a~_i = a_i*c_{i-1}, r~_i = r_i*c_i, k~_s = k_s/c_s, b~_s = b_s/c_s.
    The unit-lower-triangular sa system is solved with the nilpotent
    expansion (I+A)(I+A^2)(I+A^4)...  (all MXU work, batched over heads).
    """
    G, _, N = state_ref.shape            # heads in this group, head size
    L = r_ref.shape[1]                   # chunk length

    @pl.when(pl.program_id(2) == 0)
    def _():
        state_ref[...] = jnp.zeros_like(state_ref)

    row = lax.broadcasted_iota(jnp.int32, (L, L), 0)
    col = lax.broadcasted_iota(jnp.int32, (L, L), 1)
    m_strict = (col < row).astype(jnp.float32)     # s <  i
    m_incl = (col <= row).astype(jnp.float32)      # s <= i
    eye = (col == row).astype(jnp.float32)

    # One lane-dense (L, G*N) load per operand per chunk; bf16 -> f32 once.
    r_all = r_ref[0].astype(jnp.float32)
    k_all = k_ref[0].astype(jnp.float32)
    v_all = v_ref[0].astype(jnp.float32)
    a_all = a_ref[0].astype(jnp.float32)
    b_all = b_ref[0].astype(jnp.float32)
    lw_all = lw_ref[0]                             # f32 log-decay

    # ---- decay math hoisted: done ONCE on the lane-dense (L, G*N) tile ----
    cum = jnp.dot(m_incl, lw_all, preferred_element_type=jnp.float32)
    c_incl = jnp.exp(cum)                                              # c_i
    c_excl = jnp.exp(jnp.dot(m_strict, lw_all,
                             preferred_element_type=jnp.float32))      # c_{i-1}
    c_inv = jnp.exp(-cum)      # 1/c_i ; bounded <= exp(~0.61*L) for L<=32

    r_t = r_all * c_incl
    a_t = a_all * c_excl
    k_t = k_all * c_inv        # c_inv-scaled operands stay f32 (never bf16)
    b_t = b_all * c_inv

    def to_heads(x):           # (R, G*N) -> (G, R, N)
        return jnp.stack([x[:, h * N:(h + 1) * N] for h in range(G)], axis=0)

    rh_t = to_heads(r_t)
    ah_t = to_heads(a_t)
    kh_t = to_heads(k_t)
    bh_t = to_heads(b_t)
    vh = to_heads(v_all)
    S = state_ref[...]         # (G, N, N)   [value m, key n]

    # Intra-chunk interaction matrices, batched over heads: (G, L, L)
    A_ab = jnp.einsum('gin,gsn->gis', ah_t, bh_t,
                      preferred_element_type=jnp.float32) * m_strict
    A_ak = jnp.einsum('gin,gsn->gis', ah_t, kh_t,
                      preferred_element_type=jnp.float32) * m_strict
    A_rb = jnp.einsum('gin,gsn->gis', rh_t, bh_t,
                      preferred_element_type=jnp.float32) * m_incl
    A_rk = jnp.einsum('gin,gsn->gis', rh_t, kh_t,
                      preferred_element_type=jnp.float32) * m_incl

    # (I - A_ab)^{-1}: A_ab is strictly lower triangular => nilpotent.
    inv = eye + A_ab
    p = A_ab
    for _ in range(n_inv_steps):
        p = jnp.einsum('gij,gjk->gik', p, p,
                       preferred_element_type=jnp.float32)
        inv = jnp.einsum('gij,gjk->gik', inv, eye + p,
                         preferred_element_type=jnp.float32)

    # sa rows:  SA = (I - A_ab)^{-1} (a~ S0^T + A_ak V)
    rhs = (jnp.einsum('gin,gmn->gim', ah_t, S,
                      preferred_element_type=jnp.float32)
           + jnp.einsum('gis,gsm->gim', A_ak, vh,
                        preferred_element_type=jnp.float32))
    sa = jnp.einsum('gis,gsm->gim', inv, rhs,
                    preferred_element_type=jnp.float32)                 # (G,L,N)

    # Chunk outputs.
    y = (jnp.einsum('gin,gmn->gim', rh_t, S,
                    preferred_element_type=jnp.float32)
         + jnp.einsum('gis,gsm->gim', A_rb, sa,
                      preferred_element_type=jnp.float32)
         + jnp.einsum('gis,gsm->gim', A_rk, vh,
                      preferred_element_type=jnp.float32))              # (G,L,N)

    # State carried to the next chunk.
    c_last = to_heads(c_incl[L - 1:L, :])                               # (G,1,N)
    state_ref[...] = (S * c_last
                      + jnp.einsum('gsm,gsn->gmn', sa, bh_t * c_last,
                                   preferred_element_type=jnp.float32)
                      + jnp.einsum('gsm,gsn->gmn', vh, kh_t * c_last,
                                   preferred_element_type=jnp.float32))

    # ---- fused epilogue: GroupNorm(ln_x) + (r*k*time_faaaa).sum * v bonus ---
    lnw = to_heads(lnw_ref[...])                                        # (G,1,N)
    lnb = to_heads(lnb_ref[...])
    faa = to_heads(faa_ref[...])
    mean = jnp.mean(y, axis=-1, keepdims=True)
    var = jnp.mean(jnp.square(y - mean), axis=-1, keepdims=True)
    yn = (y - mean) * lax.rsqrt(var + eps) * lnw + lnb

    rh = to_heads(r_all)
    kh = to_heads(k_all)
    bonus = jnp.sum(rh * kh * faa, axis=-1, keepdims=True) * vh
    out = yn + bonus                                                    # (G,L,N)

    # Single lane-dense (L, G*N) store per chunk.
    y_ref[0] = jnp.concatenate([out[g] for g in range(G)], axis=-1)


def wkv7_fused(r, w, k, v, a, b, ln_w, ln_b, faaaa, head_size, *,
               head_size_divisor=8.0, chunk_len=32):
    """RUN_CUDA_RWKV7 followed by GroupNorm(ln_x) and the bonus term, fused.

    Inputs r/w/k/v/a/b: (B, T, C) float32.  Returns (B, T, C) float32."""
    B, T, C = r.shape
    N = head_size
    H = C // N
    G = _heads_per_group(H, N)
    n_groups = H // G
    GN = G * N

    chunk_len = max(8, _round_up(chunk_len, 8))
    L = min(chunk_len, _round_up(T, 8))
    T_pad = _round_up(T, L)
    eps = 1e-5 * (head_size_divisor ** 2)

    # Hoisted decay: log of the per-step decay exp(-exp(w)), computed in bulk.
    lw = -jnp.exp(w)

    def pad_t(x):
        return x if T_pad == T else jnp.pad(x, ((0, 0), (0, T_pad - T), (0, 0)))

    # bf16 HBM operands (halves DMA); lw stays f32 for the decay cumsums.
    rb, kb, vb, ab, bb = (pad_t(x.astype(jnp.bfloat16)) for x in (r, k, v, a, b))
    lw = pad_t(lw)

    lnw2 = ln_w.reshape(1, C).astype(jnp.float32)
    lnb2 = ln_b.reshape(1, C).astype(jnp.float32)
    faa2 = faaaa.reshape(1, C).astype(jnp.float32)

    seq_spec = pl.BlockSpec((1, L, GN), lambda bi, gi, ti: (bi, ti, gi))
    vec_spec = pl.BlockSpec((1, GN), lambda bi, gi, ti: (0, gi))

    n_inv = max(1, (L - 1).bit_length()) - 1
    kernel = functools.partial(_wkv7_fused_kernel, eps, n_inv)

    y = pl.pallas_call(
        kernel,
        out_shape=jax.ShapeDtypeStruct((B, T_pad, C), jnp.float32),
        grid=(B, n_groups, T_pad // L),
        in_specs=[seq_spec, seq_spec, seq_spec, seq_spec, seq_spec, seq_spec,
                  vec_spec, vec_spec, vec_spec],
        out_specs=seq_spec,
        scratch_shapes=[pltpu.VMEM((G, N, N), jnp.float32)],
        compiler_params=pltpu.CompilerParams(
            dimension_semantics=("parallel", "parallel", "arbitrary")),
    )(rb, lw, kb, vb, ab, bb, lnw2, lnb2, faa2)

    return y[:, :T, :] if T_pad != T else y


# --------------------------- pure-JAX references ------------------------------

def wkv7_reference(r, w, k, v, a, b, head_size):
    """Sequential scan reference of the wkv7 recurrence (for checking)."""
    B, T, C = r.shape
    N = head_size
    H = C // N

    def heads(x):
        return x.reshape(B, T, H, N)

    rh, kh, vh, ah, bh = map(heads, (r, k, v, a, b))
    wd = jnp.exp(-jnp.exp(heads(w)))

    def step(S, xs):
        r_t, wd_t, k_t, v_t, a_t, b_t = xs
        sa = jnp.einsum('bhij,bhj->bhi', S, a_t)
        S = (S * wd_t[:, :, None, :]
             + v_t[..., :, None] * k_t[..., None, :]
             + sa[..., :, None] * b_t[..., None, :])
        y = jnp.einsum('bhij,bhj->bhi', S, r_t)
        return S, y

    xs = tuple(jnp.moveaxis(x, 1, 0) for x in (rh, wd, kh, vh, ah, bh))
    _, ys = lax.scan(step, jnp.zeros((B, H, N, N), jnp.float32), xs)
    return jnp.moveaxis(ys, 0, 1).reshape(B, T, C)


def wkv7_fused_reference(r, w, k, v, a, b, ln_w, ln_b, faaaa, head_size,
                         head_size_divisor=8.0):
    B, T, C = r.shape
    N = head_size
    H = C // N
    y = wkv7_reference(r, w, k, v, a, b, head_size)
    eps = 1e-5 * (head_size_divisor ** 2)
    yh = y.reshape(B, T, H, N)
    mean = jnp.mean(yh, axis=-1, keepdims=True)
    var = jnp.mean((yh - mean) ** 2, axis=-1, keepdims=True)
    yn = (yh - mean) / jnp.sqrt(var + eps)
    yn = yn.reshape(B, T, C) * ln_w.reshape(C) + ln_b.reshape(C)
    rh = r.reshape(B, T, H, N)
    kh = k.reshape(B, T, H, N)
    vh = v.reshape(B, T, H, N)
    bonus = (jnp.sum(rh * kh * faaaa.reshape(H, N), axis=-1, keepdims=True)
             * vh).reshape(B, T, C)
    return yn + bonus


# ------------------------------- tiled matmul ---------------------------------

def _matmul_kernel(x_ref, w_ref, o_ref, acc_ref):
    @pl.when(pl.program_id(2) == 0)
    def _():
        acc_ref[...] = jnp.zeros_like(acc_ref)

    acc_ref[...] += jnp.dot(x_ref[...], w_ref[...],
                            preferred_element_type=jnp.float32)

    @pl.when(pl.program_id(2) == pl.num_programs(2) - 1)
    def _():
        o_ref[...] = acc_ref[...]


def pallas_matmul(x, w, *, tm=512, tn=512, tk=512):
    """(M, K) @ (K, N): bf16 MXU operands, f32 accumulation.

    Operands are zero-padded to tile multiples (no degenerate tile fallback)."""
    M, K = x.shape
    K2, N = w.shape
    assert K == K2
    tm = min(tm, _round_up(M, 8))
    tn = min(tn, _round_up(N, 128))
    tk = min(tk, _round_up(K, 128))
    Mp, Kp, Np = _round_up(M, tm), _round_up(K, tk), _round_up(N, tn)

    xb = jnp.pad(x.astype(jnp.bfloat16), ((0, Mp - M), (0, Kp - K)))
    wb = jnp.pad(w.astype(jnp.bfloat16), ((0, Kp - K), (0, Np - N)))

    out = pl.pallas_call(
        _matmul_kernel,
        out_shape=jax.ShapeDtypeStruct((Mp, Np), jnp.float32),
        grid=(Mp // tm, Np // tn, Kp // tk),
        in_specs=[pl.BlockSpec((tm, tk), lambda i, j, kk: (i, kk)),
                  pl.BlockSpec((tk, tn), lambda i, j, kk: (kk, j))],
        out_specs=pl.BlockSpec((tm, tn), lambda i, j, kk: (i, j)),
        scratch_shapes=[pltpu.VMEM((tm, tn), jnp.float32)],
        compiler_params=pltpu.CompilerParams(
            dimension_semantics=("parallel", "parallel", "arbitrary")),
    )(xb, wb)
    return out[:M, :N]


# ------------------------------- parameters -----------------------------------

def init_params(key, n_embd, dim_att, head_size):
    n_head = dim_att // head_size
    shapes = {
        'time_maa_x': (1, 1, n_embd), 'time_maa_r': (1, 1, n_embd),
        'time_maa_w': (1, 1, n_embd), 'time_maa_k': (1, 1, n_embd),
        'time_maa_v': (1, 1, n_embd), 'time_maa_a': (1, 1, n_embd),
        'time_maa_g': (1, 1, n_embd),
        'time_decay': (1, 1, dim_att),
        'time_faaaa': (n_head, head_size),
        'time_aaaaa': (1, 1, dim_att),
        'time_maa_w1': (n_embd, 32 * 6),
        'time_maa_w2': (6, 32, n_embd),
        'time_decay_w1': (n_embd, 64), 'time_decay_w2': (64, dim_att),
        'time_aaa_w1': (n_embd, 64), 'time_aaa_w2': (64, dim_att),
        'time_kkk_w1': (n_embd, 32), 'time_kkk_w2': (32, dim_att),
        'gate_w1': (n_embd, 128), 'gate_w2': (128, dim_att),
        'mk_w1': (n_embd, 16), 'mk_w2': (16, dim_att),
        'ma_w1': (n_embd, 16), 'ma_w2': (16, dim_att),
        'mv_w1': (n_embd, 32), 'mv_w2': (32, dim_att),
        'time_misc_k': (1, 1, n_embd), 'time_misc_a': (1, 1, n_embd),
        'time_misc_v': (1, 1, n_embd),
        # nn.Linear weights stored PRE-TRANSPOSED as (in, out).
        'receptance_w': (n_embd, dim_att),
        'key_w': (n_embd, dim_att),
        'value_w': (n_embd, dim_att),
        'output_w': (dim_att, n_embd),
    }
    names = sorted(shapes)
    keys = jax.random.split(key, len(names))
    params = {n: 0.1 * jax.random.normal(k, shapes[n], dtype=jnp.float32)
              for n, k in zip(names, keys)}
    params['ln_x_w'] = jnp.ones((dim_att,), jnp.float32)   # GroupNorm defaults
    params['ln_x_b'] = jnp.zeros((dim_att,), jnp.float32)
    return params


# -------------------------------- forward -------------------------------------

def rwkv_tmix_x070_forward(params, x, v0, *, layer_id, head_size,
                           head_size_divisor=8.0):
    p = params
    B, T, C = x.shape
    N = head_size
    H = C // N

    # time_shift = ZeroPad2d((0,0,1,-1)):  x_shift[t] = x[t-1], x_shift[0] = 0
    x_shift = jnp.pad(x, ((0, 0), (1, 0), (0, 0)))[:, :T, :]
    xx = x_shift - x

    xxx = x + xx * p['time_maa_x']
    xxx = jnp.tanh(xxx @ p['time_maa_w1'])                      # (B, T, 6*32)
    Dm = p['time_maa_w2'].shape[1]
    xxx = xxx.reshape(B, T, 6, Dm)
    m = jnp.einsum('btxl,xlc->xbtc', xxx, p['time_maa_w2'])     # (6, B, T, C)
    mr, mw, mk_, mv_, ma_, mg = (m[i] for i in range(6))

    xr = x + xx * (p['time_maa_r'] + mr)
    xw = x + xx * (p['time_maa_w'] + mw)
    xk = x + xx * (p['time_maa_k'] + mk_)
    xv = x + xx * (p['time_maa_v'] + mv_)
    xa = x + xx * (p['time_maa_a'] + ma_)
    xg = x + xx * (p['time_maa_g'] + mg)

    def linear(xi, w_in_out):                                   # y = x @ W
        y = pallas_matmul(xi.reshape(B * T, -1), w_in_out)
        return y.reshape(B, T, -1)

    r = linear(xr, p['receptance_w'])
    w = -jax.nn.softplus(-(p['time_decay']
                           + jnp.tanh(xw @ p['time_decay_w1'])
                           @ p['time_decay_w2'])) - 0.5
    k = linear(xk, p['key_w'])
    v = linear(xv, p['value_w'])

    if layer_id == 0:
        v0 = v
    else:
        v = v + (v0 - v) * jax.nn.sigmoid(
            p['time_misc_v'] + xv @ p['mv_w1'] @ p['mv_w2'])

    g = jax.nn.sigmoid(xg @ p['gate_w1']) @ p['gate_w2']

    # Skinny LoRA stage-1 projections sharing an input are batched together.
    # TODO(synk): fuse the stage-2 LoRA matmuls into a single lane-dense call.
    da = p['time_aaa_w1'].shape[1]
    h_a = xa @ jnp.concatenate([p['time_aaa_w1'], p['ma_w1']], axis=1)
    a = jax.nn.sigmoid(p['time_aaaaa'] + h_a[..., :da] @ p['time_aaa_w2'])
    ma = jax.nn.sigmoid(p['time_misc_a'] + h_a[..., da:] @ p['ma_w2'])

    dk = p['time_kkk_w1'].shape[1]
    h_k = xk @ jnp.concatenate([p['time_kkk_w1'], p['mk_w1']], axis=1)
    kk = k + jnp.tanh(h_k[..., :dk]) @ p['time_kkk_w2']
    mk = jax.nn.sigmoid(p['time_misc_k'] + h_k[..., dk:] @ p['mk_w2'])

    kk_h = kk.reshape(B, T, H, N)
    nrm = jnp.sqrt(jnp.sum(kk_h * kk_h, axis=-1, keepdims=True))
    kk = (kk_h / jnp.maximum(nrm, 1e-12)).reshape(B, T, C)      # F.normalize

    k = k * ma + k * a * (1.0 - ma)
    k = k * jnp.exp(jnp.minimum(w * mk, 0.0))

    # WKV-7 recurrence + GroupNorm(ln_x) + bonus, fused in the chunked kernel.
    y = wkv7_fused(r, w, k, v, -kk, kk * a,
                   p['ln_x_w'], p['ln_x_b'], p['time_faaaa'], head_size,
                   head_size_divisor=head_size_divisor)

    out = linear(y * g, p['output_w'])
    return out, v0


# ---------------------------------- main ---------------------------------------

if __name__ == "__main__":
    B, T = 2, 32
    n_embd = 64          # C
    dim_att = 64
    head_size = 32       # args.head_size_a
    H = dim_att // head_size
    layer_id = 1         # exercise the v0-residual path

    key = jax.random.PRNGKey(0)
    kx, kv, kp, kt = jax.random.split(key, 4)
    x = 0.5 * jax.random.normal(kx, (B, T, n_embd), dtype=jnp.float32)
    v0 = 0.5 * jax.random.normal(kv, (B, T, dim_att), dtype=jnp.float32)
    params = init_params(kp, n_embd, dim_att, head_size)

    # --- standalone check: fused chunked Pallas WKV-7 (+ GroupNorm + bonus)
    #     vs sequential scan reference.  T=48 exercises multi-chunk state
    #     carry AND the T-padding path (pads to 64 with chunk 32). -----------
    Tchk = 48
    ks = jax.random.split(kt, 7)
    q = lambda z: z.astype(jnp.bfloat16).astype(jnp.float32)  # match bf16 feed
    rr = q(0.5 * jax.random.normal(ks[0], (B, Tchk, dim_att), jnp.float32))
    ww = -jax.nn.softplus(
        jax.random.normal(ks[1], (B, Tchk, dim_att), jnp.float32)) - 0.5
    kk_in = q(0.5 * jax.random.normal(ks[2], (B, Tchk, dim_att), jnp.float32))
    vv = q(0.5 * jax.random.normal(ks[3], (B, Tchk, dim_att), jnp.float32))
    kkh = jax.random.normal(ks[4], (B, Tchk, H, head_size), jnp.float32)
    kkn = (kkh / jnp.sqrt(jnp.sum(kkh * kkh, -1, keepdims=True) + 1e-12)
           ).reshape(B, Tchk, dim_att)
    a_sig = jax.nn.sigmoid(jax.random.normal(ks[5], (B, Tchk, dim_att),
                                             jnp.float32))
    aa = q(-kkn)
    bb = q(kkn * a_sig)
    ln_w = 1.0 + 0.1 * jax.random.normal(ks[6], (dim_att,), jnp.float32)
    ln_b = jnp.zeros((dim_att,), jnp.float32)
    faaaa = params['time_faaaa']

    y_kernel = wkv7_fused(rr, ww, kk_in, vv, aa, bb, ln_w, ln_b, faaaa,
                          head_size)
    y_ref = wkv7_fused_reference(rr, ww, kk_in, vv, aa, bb, ln_w, ln_b, faaaa,
                                 head_size)
    jax.block_until_ready(y_kernel)
    err = float(jnp.max(jnp.abs(y_kernel - y_ref)))
    tol = 5e-3 * (1.0 + float(jnp.max(jnp.abs(y_ref))))
    assert err < tol, f"wkv7 fused kernel mismatch: err={err} tol={tol}"

    # --- full time-mix forward ------------------------------------------------
    out, v0_out = rwkv_tmix_x070_forward(
        params, x, v0, layer_id=layer_id, head_size=head_size)
    jax.block_until_ready(out)
    jax.block_until_ready(v0_out)
    assert out.shape == (B, T, n_embd) and v0_out.shape == (B, T, dim_att)
    assert bool(jnp.all(jnp.isfinite(out)))
    print("KERNEL_OK")
</pallas_src>

<mosaic_0001>
module attributes {stable_mosaic.version = 11 : i64} {
  func.func @_wkv7_fused_kernel(%arg0: i32, %arg1: i32, %arg2: i32, %arg3: memref<1x32x64xbf16, #tpu.memory_space<vmem>>, %arg4: memref<1x32x64xf32, #tpu.memory_space<vmem>>, %arg5: memref<1x32x64xbf16, #tpu.memory_space<vmem>>, %arg6: memref<1x32x64xbf16, #tpu.memory_space<vmem>>, %arg7: memref<1x32x64xbf16, #tpu.memory_space<vmem>>, %arg8: memref<1x32x64xbf16, #tpu.memory_space<vmem>>, %arg9: memref<1x64xf32, #tpu.memory_space<vmem>>, %arg10: memref<1x64xf32, #tpu.memory_space<vmem>>, %arg11: memref<1x64xf32, #tpu.memory_space<vmem>>, %arg12: memref<1x32x64xf32, #tpu.memory_space<vmem>>, %arg13: memref<2x32x32xf32, #tpu.memory_space<vmem>>) attributes {dimension_semantics = [#tpu.dimension_semantics<parallel>, #tpu.dimension_semantics<parallel>, #tpu.dimension_semantics<arbitrary>], iteration_bounds = array<i64: 2, 1, 2>, scalar_prefetch = 0 : i64, scratch_operands = 1 : i64, tpu.core_type = #tpu.core_type<tc>, window_params = [{transform_indices = @transform_0, window_bounds = array<i64: 1, 32, 64>}, {transform_indices = @transform_1, window_bounds = array<i64: 1, 32, 64>}, {transform_indices = @transform_2, window_bounds = array<i64: 1, 32, 64>}, {transform_indices = @transform_3, window_bounds = array<i64: 1, 32, 64>}, {transform_indices = @transform_4, window_bounds = array<i64: 1, 32, 64>}, {transform_indices = @transform_5, window_bounds = array<i64: 1, 32, 64>}, {transform_indices = @transform_6, window_bounds = array<i64: 1, 64>}, {transform_indices = @transform_7, window_bounds = array<i64: 1, 64>}, {transform_indices = @transform_8, window_bounds = array<i64: 1, 64>}, {transform_indices = @transform_9, window_bounds = array<i64: 1, 32, 64>}]} {
    %c0_i32 = arith.constant 0 : i32
    %0 = arith.cmpi eq, %arg2, %c0_i32 : i32
    %1 = arith.extui %0 : i1 to i32
    %c0_i32_0 = arith.constant 0 : i32
    %2 = arith.cmpi ne, %1, %c0_i32_0 : i32
    scf.if %2 {
      %cst_61 = arith.constant 0.000000e+00 : f32
      %199 = vector.broadcast %cst_61 : f32 to vector<2x32x32xf32>
      %c0_62 = arith.constant 0 : index
      %c0_63 = arith.constant 0 : index
      %c0_64 = arith.constant 0 : index
      %200 = vector.load %arg13[%c0_62, %c0_63, %c0_64] : memref<2x32x32xf32, #tpu.memory_space<vmem>>, vector<2x32x32xf32>
      tpu.vector_store %arg13[%c0_62, %c0_63, %c0_64], %199 {strides = array<i32>} : memref<2x32x32xf32, #tpu.memory_space<vmem>>, vector<2x32x32xf32>,
    } else {
    }
    %3 = tpu.iota {dimensions = array<i32: 0>} : vector<32x32xi32>
    %4 = tpu.iota {dimensions = array<i32: 1>} : vector<32x32xi32>
    %5 = arith.cmpi slt, %4, %3 : vector<32x32xi32>
    %6 = arith.extui %5 : vector<32x32xi1> to vector<32x32xi32>
    %7 = arith.sitofp %6 : vector<32x32xi32> to vector<32x32xf32>
    %8 = arith.cmpi sle, %4, %3 : vector<32x32xi32>
    %9 = arith.extui %8 : vector<32x32xi1> to vector<32x32xi32>
    %10 = arith.sitofp %9 : vector<32x32xi32> to vector<32x32xf32>
    %11 = arith.cmpi eq, %4, %3 : vector<32x32xi32>
    %12 = arith.extui %11 : vector<32x32xi1> to vector<32x32xi32>
    %13 = arith.sitofp %12 : vector<32x32xi32> to vector<32x32xf32>
    %c0 = arith.constant 0 : index
    %c0_1 = arith.constant 0 : index
    %c0_2 = arith.constant 0 : index
    %14 = vector.load %arg3[%c0, %c0_1, %c0_2] : memref<1x32x64xbf16, #tpu.memory_space<vmem>>, vector<1x32x64xbf16>
    %15 = vector.shape_cast %14 : vector<1x32x64xbf16> to vector<32x64xbf16>
    %16 = arith.extf %15 : vector<32x64xbf16> to vector<32x64xf32>
    %c0_3 = arith.constant 0 : index
    %c0_4 = arith.constant 0 : index
    %c0_5 = arith.constant 0 : index
    %17 = vector.load %arg5[%c0_3, %c0_4, %c0_5] : memref<1x32x64xbf16, #tpu.memory_space<vmem>>, vector<1x32x64xbf16>
    %18 = vector.shape_cast %17 : vector<1x32x64xbf16> to vector<32x64xbf16>
    %19 = arith.extf %18 : vector<32x64xbf16> to vector<32x64xf32>
    %c0_6 = arith.constant 0 : index
    %c0_7 = arith.constant 0 : index
    %c0_8 = arith.constant 0 : index
    %20 = vector.load %arg6[%c0_6, %c0_7, %c0_8] : memref<1x32x64xbf16, #tpu.memory_space<vmem>>, vector<1x32x64xbf16>
    %21 = vector.shape_cast %20 : vector<1x32x64xbf16> to vector<32x64xbf16>
    %22 = arith.extf %21 : vector<32x64xbf16> to vector<32x64xf32>
    %c0_9 = arith.constant 0 : index
    %c0_10 = arith.constant 0 : index
    %c0_11 = arith.constant 0 : index
    %23 = vector.load %arg7[%c0_9, %c0_10, %c0_11] : memref<1x32x64xbf16, #tpu.memory_space<vmem>>, vector<1x32x64xbf16>
    %24 = vector.shape_cast %23 : vector<1x32x64xbf16> to vector<32x64xbf16>
    %25 = arith.extf %24 : vector<32x64xbf16> to vector<32x64xf32>
    %c0_12 = arith.constant 0 : index
    %c0_13 = arith.constant 0 : index
    %c0_14 = arith.constant 0 : index
    %26 = vector.load %arg8[%c0_12, %c0_13, %c0_14] : memref<1x32x64xbf16, #tpu.memory_space<vmem>>, vector<1x32x64xbf16>
    %27 = vector.shape_cast %26 : vector<1x32x64xbf16> to vector<32x64xbf16>
    %28 = arith.extf %27 : vector<32x64xbf16> to vector<32x64xf32>
    %c0_15 = arith.constant 0 : index
    %c0_16 = arith.constant 0 : index
    %c0_17 = arith.constant 0 : index
    %29 = vector.load %arg4[%c0_15, %c0_16, %c0_17] : memref<1x32x64xf32, #tpu.memory_space<vmem>>, vector<1x32x64xf32>
    %30 = vector.shape_cast %29 : vector<1x32x64xf32> to vector<32x64xf32>
    %cst = arith.constant dense<0.000000e+00> : vector<32x64xf32>
    %31 = tpu.matmul %10, %30, %cst {dimension_numbers = #tpu.dot_dimension_numbers<[1], [0], [0], [1], [0, 0, 1, 1], [], []>} : vector<32x32xf32>, vector<32x64xf32>, vector<32x64xf32> -> vector<32x64xf32>
    %32 = math.exp %31 : vector<32x64xf32>
    %cst_18 = arith.constant dense<0.000000e+00> : vector<32x64xf32>
    %33 = tpu.matmul %7, %30, %cst_18 {dimension_numbers = #tpu.dot_dimension_numbers<[1], [0], [0], [1], [0, 0, 1, 1], [], []>} : vector<32x32xf32>, vector<32x64xf32>, vector<32x64xf32> -> vector<32x64xf32>
    %34 = math.exp %33 : vector<32x64xf32>
    %cst_19 = arith.constant 0.000000e+00 : f32
    %35 = vector.broadcast %cst_19 : f32 to vector<32x64xf32>
    %36 = arith.subf %35, %31 : vector<32x64xf32>
    %37 = math.exp %36 : vector<32x64xf32>
    %38 = arith.mulf %16, %32 : vector<32x64xf32>
    %39 = arith.mulf %25, %34 : vector<32x64xf32>
    %40 = arith.mulf %19, %37 : vector<32x64xf32>
    %41 = arith.mulf %28, %37 : vector<32x64xf32>
    %42 = vector.extract_strided_slice %38 {offsets = [0, 0], sizes = [32, 32], strides = [1, 1]} : vector<32x64xf32> to vector<32x32xf32>
    %43 = vector.extract_strided_slice %38 {offsets = [0, 32], sizes = [32, 32], strides = [1, 1]} : vector<32x64xf32> to vector<32x32xf32>
    %44 = vector.shape_cast %42 : vector<32x32xf32> to vector<1x32x32xf32>
    %45 = vector.shape_cast %43 : vector<32x32xf32> to vector<1x32x32xf32>
    %46 = tpu.concatenate %44, %45 in 0 : vector<1x32x32xf32>, vector<1x32x32xf32> -> vector<2x32x32xf32>
    %47 = vector.extract_strided_slice %39 {offsets = [0, 0], sizes = [32, 32], strides = [1, 1]} : vector<32x64xf32> to vector<32x32xf32>
    %48 = vector.extract_strided_slice %39 {offsets = [0, 32], sizes = [32, 32], strides = [1, 1]} : vector<32x64xf32> to vector<32x32xf32>
    %49 = vector.shape_cast %47 : vector<32x32xf32> to vector<1x32x32xf32>
    %50 = vector.shape_cast %48 : vector<32x32xf32> to vector<1x32x32xf32>
    %51 = tpu.concatenate %49, %50 in 0 : vector<1x32x32xf32>, vector<1x32x32xf32> -> vector<2x32x32xf32>
    %52 = vector.extract_strided_slice %40 {offsets = [0, 0], sizes = [32, 32], strides = [1, 1]} : vector<32x64xf32> to vector<32x32xf32>
    %53 = vector.extract_strided_slice %40 {offsets = [0, 32], sizes = [32, 32], strides = [1, 1]} : vector<32x64xf32> to vector<32x32xf32>
    %54 = vector.shape_cast %52 : vector<32x32xf32> to vector<1x32x32xf32>
    %55 = vector.shape_cast %53 : vector<32x32xf32> to vector<1x32x32xf32>
    %56 = tpu.concatenate %54, %55 in 0 : vector<1x32x32xf32>, vector<1x32x32xf32> -> vector<2x32x32xf32>
    %57 = vector.extract_strided_slice %41 {offsets = [0, 0], sizes = [32, 32], strides = [1, 1]} : vector<32x64xf32> to vector<32x32xf32>
    %58 = vector.extract_strided_slice %41 {offsets = [0, 32], sizes = [32, 32], strides = [1, 1]} : vector<32x64xf32> to vector<32x32xf32>
    %59 = vector.shape_cast %57 : vector<32x32xf32> to vector<1x32x32xf32>
    %60 = vector.shape_cast %58 : vector<32x32xf32> to vector<1x32x32xf32>
    %61 = tpu.concatenate %59, %60 in 0 : vector<1x32x32xf32>, vector<1x32x32xf32> -> vector<2x32x32xf32>
    %62 = vector.extract_strided_slice %22 {offsets = [0, 0], sizes = [32, 32], strides = [1, 1]} : vector<32x64xf32> to vector<32x32xf32>
    %63 = vector.extract_strided_slice %22 {offsets = [0, 32], sizes = [32, 32], strides = [1, 1]} : vector<32x64xf32> to vector<32x32xf32>
    %64 = vector.shape_cast %62 : vector<32x32xf32> to vector<1x32x32xf32>
    %65 = vector.shape_cast %63 : vector<32x32xf32> to vector<1x32x32xf32>
    %66 = tpu.concatenate %64, %65 in 0 : vector<1x32x32xf32>, vector<1x32x32xf32> -> vector<2x32x32xf32>
    %c0_20 = arith.constant 0 : index
    %c0_21 = arith.constant 0 : index
    %c0_22 = arith.constant 0 : index
    %67 = vector.load %arg13[%c0_20, %c0_21, %c0_22] : memref<2x32x32xf32, #tpu.memory_space<vmem>>, vector<2x32x32xf32>
    "tpu.trace_start"() <{level = 10 : i32, message = "gin,gsn->gis"}> : () -> ()
    %cst_23 = arith.constant dense<0.000000e+00> : vector<2x32x32xf32>
    %68 = tpu.matmul %51, %61, %cst_23 {dimension_numbers = #tpu.dot_dimension_numbers<[2], [2], [1], [1], [0, 0, 0, 1, 1, 1], [0], [0]>} : vector<2x32x32xf32>, vector<2x32x32xf32>, vector<2x32x32xf32> -> vector<2x32x32xf32>
    "tpu.trace_stop"() : () -> ()
    %69 = vector.shape_cast %7 : vector<32x32xf32> to vector<1x32x32xf32>
    %70 = vector.broadcast %69 : vector<1x32x32xf32> to vector<2x32x32xf32>
    %71 = arith.mulf %68, %70 : vector<2x32x32xf32>
    "tpu.trace_start"() <{level = 10 : i32, message = "gin,gsn->gis"}> : () -> ()
    %cst_24 = arith.constant dense<0.000000e+00> : vector<2x32x32xf32>
    %72 = tpu.matmul %51, %56, %cst_24 {dimension_numbers = #tpu.dot_dimension_numbers<[2], [2], [1], [1], [0, 0, 0, 1, 1, 1], [0], [0]>} : vector<2x32x32xf32>, vector<2x32x32xf32>, vector<2x32x32xf32> -> vector<2x32x32xf32>
    "tpu.trace_stop"() : () -> ()
    %73 = vector.shape_cast %7 : vector<32x32xf32> to vector<1x32x32xf32>
    %74 = vector.broadcast %73 : vector<1x32x32xf32> to vector<2x32x32xf32>
    %75 = arith.mulf %72, %74 : vector<2x32x32xf32>
    "tpu.trace_start"() <{level = 10 : i32, message = "gin,gsn->gis"}> : () -> ()
    %cst_25 = arith.constant dense<0.000000e+00> : vector<2x32x32xf32>
    %76 = tpu.matmul %46, %61, %cst_25 {dimension_numbers = #tpu.dot_dimension_numbers<[2], [2], [1], [1], [0, 0, 0, 1, 1, 1], [0], [0]>} : vector<2x32x32xf32>, vector<2x32x32xf32>, vector<2x32x32xf32> -> vector<2x32x32xf32>
    "tpu.trace_stop"() : () -> ()
    %77 = vector.shape_cast %10 : vector<32x32xf32> to vector<1x32x32xf32>
    %78 = vector.broadcast %77 : vector<1x32x32xf32> to vector<2x32x32xf32>
    %79 = arith.mulf %76, %78 : vector<2x32x32xf32>
    "tpu.trace_start"() <{level = 10 : i32, message = "gin,gsn->gis"}> : () -> ()
    %cst_26 = arith.constant dense<0.000000e+00> : vector<2x32x32xf32>
    %80 = tpu.matmul %46, %56, %cst_26 {dimension_numbers = #tpu.dot_dimension_numbers<[2], [2], [1], [1], [0, 0, 0, 1, 1, 1], [0], [0]>} : vector<2x32x32xf32>, vector<2x32x32xf32>, vector<2x32x32xf32> -> vector<2x32x32xf32>
    "tpu.trace_stop"() : () -> ()
    %81 = vector.shape_cast %10 : vector<32x32xf32> to vector<1x32x32xf32>
    %82 = vector.broadcast %81 : vector<1x32x32xf32> to vector<2x32x32xf32>
    %83 = arith.mulf %80, %82 : vector<2x32x32xf32>
    %84 = vector.shape_cast %13 : vector<32x32xf32> to vector<1x32x32xf32>
    %85 = vector.broadcast %84 : vector<1x32x32xf32> to vector<2x32x32xf32>
    %86 = arith.addf %85, %71 : vector<2x32x32xf32>
    "tpu.trace_start"() <{level = 10 : i32, message = "gij,gjk->gik"}> : () -> ()
    %cst_27 = arith.constant dense<0.000000e+00> : vector<2x32x32xf32>
    %87 = tpu.matmul %71, %71, %cst_27 {dimension_numbers = #tpu.dot_dimension_numbers<[2], [1], [1], [2], [0, 0, 0, 1, 1, 2], [0], [0]>} : vector<2x32x32xf32>, vector<2x32x32xf32>, vector<2x32x32xf32> -> vector<2x32x32xf32>
    "tpu.trace_stop"() : () -> ()
    %88 = vector.shape_cast %13 : vector<32x32xf32> to vector<1x32x32xf32>
    %89 = vector.broadcast %88 : vector<1x32x32xf32> to vector<2x32x32xf32>
    %90 = arith.addf %89, %87 : vector<2x32x32xf32>
    "tpu.trace_start"() <{level = 10 : i32, message = "gij,gjk->gik"}> : () -> ()
    %cst_28 = arith.constant dense<0.000000e+00> : vector<2x32x32xf32>
    %91 = tpu.matmul %86, %90, %cst_28 {dimension_numbers = #tpu.dot_dimension_numbers<[2], [1], [1], [2], [0, 0, 0, 1, 1, 2], [0], [0]>} : vector<2x32x32xf32>, vector<2x32x32xf32>, vector<2x32x32xf32> -> vector<2x32x32xf32>
    %cst_29 = arith.constant dense<0.000000e+00> : vector<2x32x32xf32>
    %92 = tpu.matmul %87, %87, %cst_29 {dimension_numbers = #tpu.dot_dimension_numbers<[2], [1], [1], [2], [0, 0, 0, 1, 1, 2], [0], [0]>} : vector<2x32x32xf32>, vector<2x32x32xf32>, vector<2x32x32xf32> -> vector<2x32x32xf32>
    "tpu.trace_stop"() : () -> ()
    %93 = vector.shape_cast %13 : vector<32x32xf32> to vector<1x32x32xf32>
    %94 = vector.broadcast %93 : vector<1x32x32xf32> to vector<2x32x32xf32>
    %95 = arith.addf %94, %92 : vector<2x32x32xf32>
    "tpu.trace_start"() <{level = 10 : i32, message = "gij,gjk->gik"}> : () -> ()
    %cst_30 = arith.constant dense<0.000000e+00> : vector<2x32x32xf32>
    %96 = tpu.matmul %91, %95, %cst_30 {dimension_numbers = #tpu.dot_dimension_numbers<[2], [1], [1], [2], [0, 0, 0, 1, 1, 2], [0], [0]>} : vector<2x32x32xf32>, vector<2x32x32xf32>, vector<2x32x32xf32> -> vector<2x32x32xf32>
    %cst_31 = arith.constant dense<0.000000e+00> : vector<2x32x32xf32>
    %97 = tpu.matmul %92, %92, %cst_31 {dimension_numbers = #tpu.dot_dimension_numbers<[2], [1], [1], [2], [0, 0, 0, 1, 1, 2], [0], [0]>} : vector<2x32x32xf32>, vector<2x32x32xf32>, vector<2x32x32xf32> -> vector<2x32x32xf32>
    "tpu.trace_stop"() : () -> ()
    %98 = vector.shape_cast %13 : vector<32x32xf32> to vector<1x32x32xf32>
    %99 = vector.broadcast %98 : vector<1x32x32xf32> to vector<2x32x32xf32>
    %100 = arith.addf %99, %97 : vector<2x32x32xf32>
    "tpu.trace_start"() <{level = 10 : i32, message = "gij,gjk->gik"}> : () -> ()
    %cst_32 = arith.constant dense<0.000000e+00> : vector<2x32x32xf32>
    %101 = tpu.matmul %96, %100, %cst_32 {dimension_numbers = #tpu.dot_dimension_numbers<[2], [1], [1], [2], [0, 0, 0, 1, 1, 2], [0], [0]>} : vector<2x32x32xf32>, vector<2x32x32xf32>, vector<2x32x32xf32> -> vector<2x32x32xf32>
    %cst_33 = arith.constant dense<0.000000e+00> : vector<2x32x32xf32>
    %102 = tpu.matmul %97, %97, %cst_33 {dimension_numbers = #tpu.dot_dimension_numbers<[2], [1], [1], [2], [0, 0, 0, 1, 1, 2], [0], [0]>} : vector<2x32x32xf32>, vector<2x32x32xf32>, vector<2x32x32xf32> -> vector<2x32x32xf32>
    "tpu.trace_stop"() : () -> ()
    %103 = vector.shape_cast %13 : vector<32x32xf32> to vector<1x32x32xf32>
    %104 = vector.broadcast %103 : vector<1x32x32xf32> to vector<2x32x32xf32>
    %105 = arith.addf %104, %102 : vector<2x32x32xf32>
    "tpu.trace_start"() <{level = 10 : i32, message = "gij,gjk->gik"}> : () -> ()
    %cst_34 = arith.constant dense<0.000000e+00> : vector<2x32x32xf32>
    %106 = tpu.matmul %101, %105, %cst_34 {dimension_numbers = #tpu.dot_dimension_numbers<[2], [1], [1], [2], [0, 0, 0, 1, 1, 2], [0], [0]>} : vector<2x32x32xf32>, vector<2x32x32xf32>, vector<2x32x32xf32> -> vector<2x32x32xf32>
    "tpu.trace_stop"() : () -> ()
    "tpu.trace_start"() <{level = 10 : i32, message = "gin,gmn->gim"}> : () -> ()
    %cst_35 = arith.constant dense<0.000000e+00> : vector<2x32x32xf32>
    %107 = tpu.matmul %51, %67, %cst_35 {dimension_numbers = #tpu.dot_dimension_numbers<[2], [2], [1], [1], [0, 0, 0, 1, 1, 1], [0], [0]>} : vector<2x32x32xf32>, vector<2x32x32xf32>, vector<2x32x32xf32> -> vector<2x32x32xf32>
    "tpu.trace_stop"() : () -> ()
    "tpu.trace_start"() <{level = 10 : i32, message = "gis,gsm->gim"}> : () -> ()
    %cst_36 = arith.constant dense<0.000000e+00> : vector<2x32x32xf32>
    %108 = tpu.matmul %75, %66, %cst_36 {dimension_numbers = #tpu.dot_dimension_numbers<[2], [1], [1], [2], [0, 0, 0, 1, 1, 2], [0], [0]>} : vector<2x32x32xf32>, vector<2x32x32xf32>, vector<2x32x32xf32> -> vector<2x32x32xf32>
    "tpu.trace_stop"() : () -> ()
    %109 = arith.addf %107, %108 : vector<2x32x32xf32>
    "tpu.trace_start"() <{level = 10 : i32, message = "gis,gsm->gim"}> : () -> ()
    %cst_37 = arith.constant dense<0.000000e+00> : vector<2x32x32xf32>
    %110 = tpu.matmul %106, %109, %cst_37 {dimension_numbers = #tpu.dot_dimension_numbers<[2], [1], [1], [2], [0, 0, 0, 1, 1, 2], [0], [0]>} : vector<2x32x32xf32>, vector<2x32x32xf32>, vector<2x32x32xf32> -> vector<2x32x32xf32>
    "tpu.trace_stop"() : () -> ()
    "tpu.trace_start"() <{level = 10 : i32, message = "gin,gmn->gim"}> : () -> ()
    %cst_38 = arith.constant dense<0.000000e+00> : vector<2x32x32xf32>
    %111 = tpu.matmul %46, %67, %cst_38 {dimension_numbers = #tpu.dot_dimension_numbers<[2], [2], [1], [1], [0, 0, 0, 1, 1, 1], [0], [0]>} : vector<2x32x32xf32>, vector<2x32x32xf32>, vector<2x32x32xf32> -> vector<2x32x32xf32>
    "tpu.trace_stop"() : () -> ()
    "tpu.trace_start"() <{level = 10 : i32, message = "gis,gsm->gim"}> : () -> ()
    %cst_39 = arith.constant dense<0.000000e+00> : vector<2x32x32xf32>
    %112 = tpu.matmul %79, %110, %cst_39 {dimension_numbers = #tpu.dot_dimension_numbers<[2], [1], [1], [2], [0, 0, 0, 1, 1, 2], [0], [0]>} : vector<2x32x32xf32>, vector<2x32x32xf32>, vector<2x32x32xf32> -> vector<2x32x32xf32>
    "tpu.trace_stop"() : () -> ()
    %113 = arith.addf %111, %112 : vector<2x32x32xf32>
    "tpu.trace_start"() <{level = 10 : i32, message = "gis,gsm->gim"}> : () -> ()
    %cst_40 = arith.constant dense<0.000000e+00> : vector<2x32x32xf32>
    %114 = tpu.matmul %83, %66, %cst_40 {dimension_numbers = #tpu.dot_dimension_numbers<[2], [1], [1], [2], [0, 0, 0, 1, 1, 2], [0], [0]>} : vector<2x32x32xf32>, vector<2x32x32xf32>, vector<2x32x32xf32> -> vector<2x32x32xf32>
    "tpu.trace_stop"() : () -> ()
    %115 = arith.addf %113, %114 : vector<2x32x32xf32>
    %116 = vector.extract_strided_slice %32 {offsets = [31, 0], sizes = [1, 64], strides = [1, 1]} : vector<32x64xf32> to vector<1x64xf32>
    %117 = vector.extract_strided_slice %116 {offsets = [0, 0], sizes = [1, 32], strides = [1, 1]} : vector<1x64xf32> to vector<1x32xf32>
    %118 = vector.extract_strided_slice %116 {offsets = [0, 32], sizes = [1, 32], strides = [1, 1]} : vector<1x64xf32> to vector<1x32xf32>
    %119 = vector.shape_cast %117 : vector<1x32xf32> to vector<1x1x32xf32>
    %120 = vector.shape_cast %118 : vector<1x32xf32> to vector<1x1x32xf32>
    %121 = tpu.concatenate %119, %120 in 0 : vector<1x1x32xf32>, vector<1x1x32xf32> -> vector<2x1x32xf32>
    %122 = vector.broadcast %121 : vector<2x1x32xf32> to vector<2x32x32xf32>
    %123 = arith.mulf %67, %122 : vector<2x32x32xf32>
    %124 = vector.broadcast %121 : vector<2x1x32xf32> to vector<2x32x32xf32>
    %125 = arith.mulf %61, %124 : vector<2x32x32xf32>
    "tpu.trace_start"() <{level = 10 : i32, message = "gsm,gsn->gmn"}> : () -> ()
    %cst_41 = arith.constant dense<0.000000e+00> : vector<2x32x32xf32>
    %126 = tpu.matmul %110, %125, %cst_41 {dimension_numbers = #tpu.dot_dimension_numbers<[1], [1], [2], [2], [0, 0, 0, 2, 1, 2], [0], [0]>} : vector<2x32x32xf32>, vector<2x32x32xf32>, vector<2x32x32xf32> -> vector<2x32x32xf32>
    "tpu.trace_stop"() : () -> ()
    %127 = arith.addf %123, %126 : vector<2x32x32xf32>
    %128 = vector.broadcast %121 : vector<2x1x32xf32> to vector<2x32x32xf32>
    %129 = arith.mulf %56, %128 : vector<2x32x32xf32>
    "tpu.trace_start"() <{level = 10 : i32, message = "gsm,gsn->gmn"}> : () -> ()
    %cst_42 = arith.constant dense<0.000000e+00> : vector<2x32x32xf32>
    %130 = tpu.matmul %66, %129, %cst_42 {dimension_numbers = #tpu.dot_dimension_numbers<[1], [1], [2], [2], [0, 0, 0, 2, 1, 2], [0], [0]>} : vector<2x32x32xf32>, vector<2x32x32xf32>, vector<2x32x32xf32> -> vector<2x32x32xf32>
    "tpu.trace_stop"() : () -> ()
    %131 = arith.addf %127, %130 : vector<2x32x32xf32>
    %c0_43 = arith.constant 0 : index
    %c0_44 = arith.constant 0 : index
    %c0_45 = arith.constant 0 : index
    %132 = vector.load %arg13[%c0_43, %c0_44, %c0_45] : memref<2x32x32xf32, #tpu.memory_space<vmem>>, vector<2x32x32xf32>
    tpu.vector_store %arg13[%c0_43, %c0_44, %c0_45], %131 {strides = array<i32>} : memref<2x32x32xf32, #tpu.memory_space<vmem>>, vector<2x32x32xf32>,
    %c0_46 = arith.constant 0 : index
    %c0_47 = arith.constant 0 : index
    %133 = vector.load %arg9[%c0_46, %c0_47] : memref<1x64xf32, #tpu.memory_space<vmem>>, vector<1x64xf32>
    %134 = vector.extract_strided_slice %133 {offsets = [0, 0], sizes = [1, 32], strides = [1, 1]} : vector<1x64xf32> to vector<1x32xf32>
    %135 = vector.extract_strided_slice %133 {offsets = [0, 32], sizes = [1, 32], strides = [1, 1]} : vector<1x64xf32> to vector<1x32xf32>
    %136 = vector.shape_cast %134 : vector<1x32xf32> to vector<1x1x32xf32>
    %137 = vector.shape_cast %135 : vector<1x32xf32> to vector<1x1x32xf32>
    %138 = tpu.concatenate %136, %137 in 0 : vector<1x1x32xf32>, vector<1x1x32xf32> -> vector<2x1x32xf32>
    %c0_48 = arith.constant 0 : index
    %c0_49 = arith.constant 0 : index
    %139 = vector.load %arg10[%c0_48, %c0_49] : memref<1x64xf32, #tpu.memory_space<vmem>>, vector<1x64xf32>
    %140 = vector.extract_strided_slice %139 {offsets = [0, 0], sizes = [1, 32], strides = [1, 1]} : vector<1x64xf32> to vector<1x32xf32>
    %141 = vector.extract_strided_slice %139 {offsets = [0, 32], sizes = [1, 32], strides = [1, 1]} : vector<1x64xf32> to vector<1x32xf32>
    %142 = vector.shape_cast %140 : vector<1x32xf32> to vector<1x1x32xf32>
    %143 = vector.shape_cast %141 : vector<1x32xf32> to vector<1x1x32xf32>
    %144 = tpu.concatenate %142, %143 in 0 : vector<1x1x32xf32>, vector<1x1x32xf32> -> vector<2x1x32xf32>
    %c0_50 = arith.constant 0 : index
    %c0_51 = arith.constant 0 : index
    %145 = vector.load %arg11[%c0_50, %c0_51] : memref<1x64xf32, #tpu.memory_space<vmem>>, vector<1x64xf32>
    %146 = vector.extract_strided_slice %145 {offsets = [0, 0], sizes = [1, 32], strides = [1, 1]} : vector<1x64xf32> to vector<1x32xf32>
    %147 = vector.extract_strided_slice %145 {offsets = [0, 32], sizes = [1, 32], strides = [1, 1]} : vector<1x64xf32> to vector<1x32xf32>
    %148 = vector.shape_cast %146 : vector<1x32xf32> to vector<1x1x32xf32>
    %149 = vector.shape_cast %147 : vector<1x32xf32> to vector<1x1x32xf32>
    %150 = tpu.concatenate %148, %149 in 0 : vector<1x1x32xf32>, vector<1x1x32xf32> -> vector<2x1x32xf32>
    %cst_52 = arith.constant dense<0.000000e+00> : vector<2x32xf32>
    %151 = vector.multi_reduction <add>, %115, %cst_52 [2] : vector<2x32x32xf32> to vector<2x32xf32>
    %152 = vector.shape_cast %151 : vector<2x32xf32> to vector<2x32x1xf32>
    %cst_53 = arith.constant 3.200000e+01 : f32
    %153 = vector.broadcast %cst_53 : f32 to vector<2x32x1xf32>
    %154 = arith.divf %152, %153 : vector<2x32x1xf32>
    %155 = vector.broadcast %154 : vector<2x32x1xf32> to vector<2x32x32xf32>
    %156 = arith.subf %115, %155 : vector<2x32x32xf32>
    %157 = arith.mulf %156, %156 : vector<2x32x32xf32>
    %cst_54 = arith.constant dense<0.000000e+00> : vector<2x32xf32>
    %158 = vector.multi_reduction <add>, %157, %cst_54 [2] : vector<2x32x32xf32> to vector<2x32xf32>
    %159 = vector.shape_cast %158 : vector<2x32xf32> to vector<2x32x1xf32>
    %cst_55 = arith.constant 3.200000e+01 : f32
    %160 = vector.broadcast %cst_55 : f32 to vector<2x32x1xf32>
    %161 = arith.divf %159, %160 : vector<2x32x1xf32>
    %162 = vector.broadcast %154 : vector<2x32x1xf32> to vector<2x32x32xf32>
    %163 = arith.subf %115, %162 : vector<2x32x32xf32>
    %cst_56 = arith.constant 6.400000e-04 : f32
    %164 = vector.broadcast %cst_56 : f32 to vector<2x32x1xf32>
    %165 = arith.addf %161, %164 : vector<2x32x1xf32>
    %166 = math.rsqrt %165 : vector<2x32x1xf32>
    %167 = vector.broadcast %166 : vector<2x32x1xf32> to vector<2x32x32xf32>
    %168 = arith.mulf %163, %167 : vector<2x32x32xf32>
    %169 = vector.broadcast %138 : vector<2x1x32xf32> to vector<2x32x32xf32>
    %170 = arith.mulf %168, %169 : vector<2x32x32xf32>
    %171 = vector.broadcast %144 : vector<2x1x32xf32> to vector<2x32x32xf32>
    %172 = arith.addf %170, %171 : vector<2x32x32xf32>
    %173 = vector.extract_strided_slice %16 {offsets = [0, 0], sizes = [32, 32], strides = [1, 1]} : vector<32x64xf32> to vector<32x32xf32>
    %174 = vector.extract_strided_slice %16 {offsets = [0, 32], sizes = [32, 32], strides = [1, 1]} : vector<32x64xf32> to vector<32x32xf32>
    %175 = vector.shape_cast %173 : vector<32x32xf32> to vector<1x32x32xf32>
    %176 = vector.shape_cast %174 : vector<32x32xf32> to vector<1x32x32xf32>
    %177 = tpu.concatenate %175, %176 in 0 : vector<1x32x32xf32>, vector<1x32x32xf32> -> vector<2x32x32xf32>
    %178 = vector.extract_strided_slice %19 {offsets = [0, 0], sizes = [32, 32], strides = [1, 1]} : vector<32x64xf32> to vector<32x32xf32>
    %179 = vector.extract_strided_slice %19 {offsets = [0, 32], sizes = [32, 32], strides = [1, 1]} : vector<32x64xf32> to vector<32x32xf32>
    %180 = vector.shape_cast %178 : vector<32x32xf32> to vector<1x32x32xf32>
    %181 = vector.shape_cast %179 : vector<32x32xf32> to vector<1x32x32xf32>
    %182 = tpu.concatenate %180, %181 in 0 : vector<1x32x32xf32>, vector<1x32x32xf32> -> vector<2x32x32xf32>
    %183 = arith.mulf %177, %182 : vector<2x32x32xf32>
    %184 = vector.broadcast %150 : vector<2x1x32xf32> to vector<2x32x32xf32>
    %185 = arith.mulf %183, %184 : vector<2x32x32xf32>
    %cst_57 = arith.constant dense<0.000000e+00> : vector<2x32xf32>
    %186 = vector.multi_reduction <add>, %185, %cst_57 [2] : vector<2x32x32xf32> to vector<2x32xf32>
    %187 = vector.shape_cast %186 : vector<2x32xf32> to vector<2x32x1xf32>
    %188 = vector.broadcast %187 : vector<2x32x1xf32> to vector<2x32x32xf32>
    %189 = arith.mulf %188, %66 : vector<2x32x32xf32>
    %190 = arith.addf %172, %189 : vector<2x32x32xf32>
    %191 = vector.extract_strided_slice %190 {offsets = [0, 0, 0], sizes = [1, 32, 32], strides = [1, 1, 1]} : vector<2x32x32xf32> to vector<1x32x32xf32>
    %192 = vector.shape_cast %191 : vector<1x32x32xf32> to vector<32x32xf32>
    %193 = vector.extract_strided_slice %190 {offsets = [1, 0, 0], sizes = [1, 32, 32], strides = [1, 1, 1]} : vector<2x32x32xf32> to vector<1x32x32xf32>
    %194 = vector.shape_cast %193 : vector<1x32x32xf32> to vector<32x32xf32>
    %195 = tpu.concatenate %192, %194 in 1 : vector<32x32xf32>, vector<32x32xf32> -> vector<32x64xf32>
    %c0_58 = arith.constant 0 : index
    %c0_59 = arith.constant 0 : index
    %c0_60 = arith.constant 0 : index
    %196 = vector.load %arg12[%c0_58, %c0_59, %c0_60] : memref<1x32x64xf32, #tpu.memory_space<vmem>>, vector<1x32x64xf32>
    %197 = vector.shape_cast %196 : vector<1x32x64xf32> to vector<32x64xf32>
    %198 = vector.shape_cast %195 : vector<32x64xf32> to vector<1x32x64xf32>
    tpu.vector_store %arg12[%c0_58, %c0_59, %c0_60], %198 {strides = array<i32>} : memref<1x32x64xf32, #tpu.memory_space<vmem>>, vector<1x32x64xf32>,
    return
  }
  func.func @transform_0(%arg0: i32, %arg1: i32, %arg2: i32) -> (i32, i32, i32) {
    %c0_i32 = arith.constant 0 : i32
    return %arg0, %arg2, %arg1 : i32, i32, i32
  }
  func.func @transform_1(%arg0: i32, %arg1: i32, %arg2: i32) -> (i32, i32, i32) {
    %c0_i32 = arith.constant 0 : i32
    return %arg0, %arg2, %arg1 : i32, i32, i32
  }
  func.func @transform_2(%arg0: i32, %arg1: i32, %arg2: i32) -> (i32, i32, i32) {
    %c0_i32 = arith.constant 0 : i32
    return %arg0, %arg2, %arg1 : i32, i32, i32
  }
  func.func @transform_3(%arg0: i32, %arg1: i32, %arg2: i32) -> (i32, i32, i32) {
    %c0_i32 = arith.constant 0 : i32
    return %arg0, %arg2, %arg1 : i32, i32, i32
  }
  func.func @transform_4(%arg0: i32, %arg1: i32, %arg2: i32) -> (i32, i32, i32) {
    %c0_i32 = arith.constant 0 : i32
    return %arg0, %arg2, %arg1 : i32, i32, i32
  }
  func.func @transform_5(%arg0: i32, %arg1: i32, %arg2: i32) -> (i32, i32, i32) {
    %c0_i32 = arith.constant 0 : i32
    return %arg0, %arg2, %arg1 : i32, i32, i32
  }
  func.func @transform_6(%arg0: i32, %arg1: i32, %arg2: i32) -> (i32, i32) {
    %c0_i32 = arith.constant 0 : i32
    %c0_i32_0 = arith.constant 0 : i32
    return %c0_i32, %arg1 : i32, i32
  }
  func.func @transform_7(%arg0: i32, %arg1: i32, %arg2: i32) -> (i32, i32) {
    %c0_i32 = arith.constant 0 : i32
    %c0_i32_0 = arith.constant 0 : i32
    return %c0_i32, %arg1 : i32, i32
  }
  func.func @transform_8(%arg0: i32, %arg1: i32, %arg2: i32) -> (i32, i32) {
    %c0_i32 = arith.constant 0 : i32
    %c0_i32_0 = arith.constant 0 : i32
    return %c0_i32, %arg1 : i32, i32
  }
  func.func @transform_9(%arg0: i32, %arg1: i32, %arg2: i32) -> (i32, i32, i32) {
    %c0_i32 = arith.constant 0 : i32
    return %arg0, %arg2, %arg1 : i32, i32, i32
  }
}

</mosaic_0001>

<llo_original>
// kernel: tpu_custom_call.1
$region0: #{tpu_custom_call.1}
  #allocation0 [shape = 'u32[]', space=smem, size = 0x4, offset = 0x4, fixed_abs, tag = 'smem constant byte address 0x4 - core index']
  #allocation1 [shape = 'u32[144,128]{1,0:T(1,128)}', space=vmem, size = 0x12000, scoped, tag = 'internal scratch']
  #allocation2 [shape = 'f32[2,32,32]{2,1,0:T(8,128)}', space=vmem, size = 0x8000, scoped, tag = 'scratch operand']
  %s0 = inlined_call_operand.hbm [shape: bf16[2,64,64], index: 0, kind: input, shape index: {}]
  %s1 = inlined_call_operand.hbm [shape: f32[2,64,64], index: 1, kind: input, shape index: {}]
  %s2 = inlined_call_operand.hbm [shape: bf16[2,64,64], index: 2, kind: input, shape index: {}]
  %s3 = inlined_call_operand.hbm [shape: bf16[2,64,64], index: 3, kind: input, shape index: {}]
  %s4 = inlined_call_operand.hbm [shape: bf16[2,64,64], index: 4, kind: input, shape index: {}]
  %s5 = inlined_call_operand.hbm [shape: bf16[2,64,64], index: 5, kind: input, shape index: {}]
  %s6 = inlined_call_operand.vmem [shape: f32[1,64], index: 6, kind: input, shape index: {}]
  %s7 = inlined_call_operand.vmem [shape: f32[1,64], index: 7, kind: input, shape index: {}]
  %s8 = inlined_call_operand.vmem [shape: f32[1,64], index: 8, kind: input, shape index: {}]
  %s9 = inlined_call_operand.hbm [shape: f32[2,64,64], index: 9, kind: output, shape index: {}]
  %s10 = sld [smem:[#allocation0]]
  $region97: #{tpu_custom_call.1} parent=0
    _
  %s12 = ssub.s32 1, %s10
  %s13 = scalar_select 0, %s12, %s10
  $region1: #{tpu_custom_call.1} parent=0
    #allocation3 [shape = 'u8[16384]{0}', space=vmem, size = 0x4000, scoped, tag = 'input window, operand 0']
    #allocation4 [shape = 's32[2]{0}', space=sflag, size = 0x8, scoped, tag = 'scoped memory for tpu_custom_call.1']
    #allocation5 [shape = 's32[2]{0}', space=sflag, size = 0x8, scoped, tag = 'scoped memory for tpu_custom_call.1']
    #allocation6 [shape = 'u8[32768]{0}', space=vmem, size = 0x8000, scoped, tag = 'input window, operand 1']
    #allocation7 [shape = 's32[2]{0}', space=sflag, size = 0x8, scoped, tag = 'scoped memory for tpu_custom_call.1']
    #allocation8 [shape = 'u8[16384]{0}', space=vmem, size = 0x4000, scoped, tag = 'input window, operand 2']
    #allocation9 [shape = 'u8[16384]{0}', space=vmem, size = 0x4000, scoped, tag = 'input window, operand 3']
    #allocation10 [shape = 's32[2]{0}', space=sflag, size = 0x8, scoped, tag = 'scoped memory for tpu_custom_call.1']
    #allocation11 [shape = 'u8[16384]{0}', space=vmem, size = 0x4000, scoped, tag = 'input window, operand 4']
    #allocation12 [shape = 'u8[16384]{0}', space=vmem, size = 0x4000, scoped, tag = 'input window, operand 5']
    #allocation13 [shape = 's32[2]{0}', space=sflag, size = 0x8, scoped, tag = 'scoped memory for tpu_custom_call.1']
    #allocation14 [shape = 'u8[32768]{0}', space=vmem, size = 0x8000, scoped, tag = 'output window, operand 0']
    %14 = vsyncpa [#allocation4], 0
    %s15 = scalar_lea.sflag [#allocation4], 1
    %16 = vsyncpa %s15, 0
    %17 = vsyncpa [#allocation7], 0
    %s18 = scalar_lea.sflag [#allocation7], 1
    %19 = vsyncpa %s18, 0
    %20 = vsyncpa [#allocation10], 0
    %s21 = scalar_lea.sflag [#allocation10], 1
    %22 = vsyncpa %s21, 0
    %23 = vsyncpa [#allocation13], 0
    %s24 = scalar_lea.sflag [#allocation13], 1
    %25 = vsyncpa %s24, 0
    %26 = vsyncpa [#allocation5], 0
    %s27 = scalar_lea.sflag [#allocation5], 1
    %28 = vsyncpa %s27, 0
    loop: start=0, step=1, limit=6
    $region2: #{tpu_custom_call.1} parent=1 // loop_pre_header
      _
    $region3: #{tpu_custom_call.1} parent=1 // loop_header
      %s30 = sphi 0, %s34
      %p31 = scmp.ge.s32.totalorder %s30, 6
      %s37 = sphi 0, %s56
      %s38 = sphi 0, %s52
      %s39 = sphi 0, %s48
      %s40 = sphi 0, %s37
      %s41 = sphi 0, %s38
      %s42 = sphi 0, %s39
      %s43 = sphi 0, %s40
      %s44 = sphi 0, %s41
      %s45 = sphi 0, %s42
      %s63 = sphi 0, %s65
      %s66 = sphi 0, %s63
      %s67 = sphi 0, %s66
      %s83 = sphi 0, %s67
      %s93 = sphi 0, %s95
      %s96 = sphi 0, %s93
      %s97 = sphi 0, %s96
      %s113 = sphi 0, %s97
      %s123 = sphi 0, %s125
      %s126 = sphi 0, %s123
      %s127 = sphi 0, %s126
      %s143 = sphi 0, %s127
      %s153 = sphi 0, %s155
      %s156 = sphi 0, %s153
      %s157 = sphi 0, %s156
      %s173 = sphi 0, %s157
      %s183 = sphi 0, %s185
      %s186 = sphi 0, %s183
      %s187 = sphi 0, %s186
      %s203 = sphi 0, %s187
      %s213 = sphi 0, %s215
      %s216 = sphi 0, %s213
      %s217 = sphi 0, %s216
      %s233 = sphi 0, %s217
      %s239 = sphi 0, %s241
      %s242 = sphi 0, %s239
      %s243 = sphi 0, %s242
      %s259 = sphi 0, %s243
      %s265 = sphi 0, %s267
      %s268 = sphi 0, %s265
      %s269 = sphi 0, %s268
      %s285 = sphi 0, %s269
      %s291 = sphi 0, %s293
      %s294 = sphi 0, %s291
      %s295 = sphi 0, %s294
      %s311 = sphi 0, %s295
      %s321 = sphi 0, %s323
      %s324 = sphi 0, %s321
      %s325 = sphi 0, %s324
      %s341 = sphi 0, %s325
    $region4: #{tpu_custom_call.1} parent=1 // loop_header_branch
      %33 = sbr.rel (%p31) target = $region8
    $region5: #{tpu_custom_call.1} parent=1 // loop_body
      %s35 = ssub.s32 %s30, 1
      %s36 = ssub.s32 %s30, 2
      %s46 = sadd.s32 1, %s39
      %p47 = scmp.ge.s32.totalorder %s46, 2
      %s48 = scalar_select %p47, 0, %s46
      %s49 = sadd.s32 1, %s38
      %s50 = scalar_select %p47, %s49, %s38
      %p51 = scmp.ge.s32.totalorder %s50, 1
      %s52 = scalar_select %p51, 0, %s50
      %s53 = sadd.s32 1, %s37
      %s54 = scalar_select %p51, %s53, %s37
      %p55 = scmp.ge.s32.totalorder %s54, 2
      %s56 = scalar_select %p55, 0, %s54
      %s57 = ssub.s32 %s37, %s56
      %s58 = ssub.s32 %s39, %s48
      %s59 = sor.u32 %s57, %s58
      %s60 = ssub.s32 %s38, %s52
      %s61 = sor.u32 %s59, %s60
      %p62 = scmp.eq.s32.totalorder %s61, 0
      %s64 = sadd.s32 %s63, 1
      %s65 = scalar_select %p62, %s63, %s64
      %p68 = pneg %p62
      %p69 = scmp.eq.s32.totalorder %s30, 3
      %p70 = por %p68, %p69
      %p71 = scmp.ne.s32.totalorder %s63, %s66
      %p72 = scmp.eq.s32.totalorder %s30, 0
      %p73 = por %p71, %p72
      %p74 = scmp.ne.s32.totalorder %s63, %s66
      %p75 = scmp.eq.s32.totalorder %s35, 3
      %p76 = por %p74, %p75
      %p77 = scmp.ne.s32.totalorder %s66, %s67
      %p78 = scmp.eq.s32.totalorder %s35, 0
      %p79 = por %p77, %p78
      %p80 = scmp.ne.s32.totalorder %s66, %s67
      %p81 = scmp.eq.s32.totalorder %s36, 3
      %p82 = por %p80, %p81
      %p84 = scmp.ne.s32.totalorder %s67, %s83
      %p85 = scmp.eq.s32.totalorder %s36, 0
      %p86 = por %p84, %p85
      %s87 = ssub.s32 %s37, %s56
      %s88 = ssub.s32 %s39, %s48
      %s89 = sor.u32 %s87, %s88
      %s90 = ssub.s32 %s38, %s52
      %s91 = sor.u32 %s89, %s90
      %p92 = scmp.eq.s32.totalorder %s91, 0
      %s94 = sadd.s32 %s93, 1
      %s95 = scalar_select %p92, %s93, %s94
      %p98 = pneg %p92
      %p99 = scmp.eq.s32.totalorder %s30, 3
      %p100 = por %p98, %p99
      %p101 = scmp.ne.s32.totalorder %s93, %s96
      %p102 = scmp.eq.s32.totalorder %s30, 0
      %p103 = por %p101, %p102
      %p104 = scmp.ne.s32.totalorder %s93, %s96
      %p105 = scmp.eq.s32.totalorder %s35, 3
      %p106 = por %p104, %p105
      %p107 = scmp.ne.s32.totalorder %s96, %s97
      %p108 = scmp.eq.s32.totalorder %s35, 0
      %p109 = por %p107, %p108
      %p110 = scmp.ne.s32.totalorder %s96, %s97
      %p111 = scmp.eq.s32.totalorder %s36, 3
      %p112 = por %p110, %p111
      %p114 = scmp.ne.s32.totalorder %s97, %s113
      %p115 = scmp.eq.s32.totalorder %s36, 0
      %p116 = por %p114, %p115
      %s117 = ssub.s32 %s37, %s56
      %s118 = ssub.s32 %s39, %s48
      %s119 = sor.u32 %s117, %s118
      %s120 = ssub.s32 %s38, %s52
      %s121 = sor.u32 %s119, %s120
      %p122 = scmp.eq.s32.totalorder %s121, 0
      %s124 = sadd.s32 %s123, 1
      %s125 = scalar_select %p122, %s123, %s124
      %p128 = pneg %p122
      %p129 = scmp.eq.s32.totalorder %s30, 3
      %p130 = por %p128, %p129
      %p131 = scmp.ne.s32.totalorder %s123, %s126
      %p132 = scmp.eq.s32.totalorder %s30, 0
      %p133 = por %p131, %p132
      %p134 = scmp.ne.s32.totalorder %s123, %s126
      %p135 = scmp.eq.s32.totalorder %s35, 3
      %p136 = por %p134, %p135
      %p137 = scmp.ne.s32.totalorder %s126, %s127
      %p138 = scmp.eq.s32.totalorder %s35, 0
      %p139 = por %p137, %p138
      %p140 = scmp.ne.s32.totalorder %s126, %s127
      %p141 = scmp.eq.s32.totalorder %s36, 3
      %p142 = por %p140, %p141
      %p144 = scmp.ne.s32.totalorder %s127, %s143
      %p145 = scmp.eq.s32.totalorder %s36, 0
      %p146 = por %p144, %p145
      %s147 = ssub.s32 %s37, %s56
      %s148 = ssub.s32 %s39, %s48
      %s149 = sor.u32 %s147, %s148
      %s150 = ssub.s32 %s38, %s52
      %s151 = sor.u32 %s149, %s150
      %p152 = scmp.eq.s32.totalorder %s151, 0
      %s154 = sadd.s32 %s153, 1
      %s155 = scalar_select %p152, %s153, %s154
      %p158 = pneg %p152
      %p159 = scmp.eq.s32.totalorder %s30, 3
      %p160 = por %p158, %p159
      %p161 = scmp.ne.s32.totalorder %s153, %s156
      %p162 = scmp.eq.s32.totalorder %s30, 0
      %p163 = por %p161, %p162
      %p164 = scmp.ne.s32.totalorder %s153, %s156
      %p165 = scmp.eq.s32.totalorder %s35, 3
      %p166 = por %p164, %p165
      %p167 = scmp.ne.s32.totalorder %s156, %s157
      %p168 = scmp.eq.s32.totalorder %s35, 0
      %p169 = por %p167, %p168
      %p170 = scmp.ne.s32.totalorder %s156, %s157
      %p171 = scmp.eq.s32.totalorder %s36, 3
      %p172 = por %p170, %p171
      %p174 = scmp.ne.s32.totalorder %s157, %s173
      %p175 = scmp.eq.s32.totalorder %s36, 0
      %p176 = por %p174, %p175
      %s177 = ssub.s32 %s37, %s56
      %s178 = ssub.s32 %s39, %s48
      %s179 = sor.u32 %s177, %s178
      %s180 = ssub.s32 %s38, %s52
      %s181 = sor.u32 %s179, %s180
      %p182 = scmp.eq.s32.totalorder %s181, 0
      %s184 = sadd.s32 %s183, 1
      %s185 = scalar_select %p182, %s183, %s184
      %p188 = pneg %p182
      %p189 = scmp.eq.s32.totalorder %s30, 3
      %p190 = por %p188, %p189
      %p191 = scmp.ne.s32.totalorder %s183, %s186
      %p192 = scmp.eq.s32.totalorder %s30, 0
      %p193 = por %p191, %p192
      %p194 = scmp.ne.s32.totalorder %s183, %s186
      %p195 = scmp.eq.s32.totalorder %s35, 3
      %p196 = por %p194, %p195
      %p197 = scmp.ne.s32.totalorder %s186, %s187
      %p198 = scmp.eq.s32.totalorder %s35, 0
      %p199 = por %p197, %p198
      %p200 = scmp.ne.s32.totalorder %s186, %s187
      %p201 = scmp.eq.s32.totalorder %s36, 3
      %p202 = por %p200, %p201
      %p204 = scmp.ne.s32.totalorder %s187, %s203
      %p205 = scmp.eq.s32.totalorder %s36, 0
      %p206 = por %p204, %p205
      %s207 = ssub.s32 %s37, %s56
      %s208 = ssub.s32 %s39, %s48
      %s209 = sor.u32 %s207, %s208
      %s210 = ssub.s32 %s38, %s52
      %s211 = sor.u32 %s209, %s210
      %p212 = scmp.eq.s32.totalorder %s211, 0
      %s214 = sadd.s32 %s213, 1
      %s215 = scalar_select %p212, %s213, %s214
      %p218 = pneg %p212
      %p219 = scmp.eq.s32.totalorder %s30, 3
      %p220 = por %p218, %p219
      %p221 = scmp.ne.s32.totalorder %s213, %s216
      %p222 = scmp.eq.s32.totalorder %s30, 0
      %p223 = por %p221, %p222
      %p224 = scmp.ne.s32.totalorder %s213, %s216
      %p225 = scmp.eq.s32.totalorder %s35, 3
      %p226 = por %p224, %p225
      %p227 = scmp.ne.s32.totalorder %s216, %s217
      %p228 = scmp.eq.s32.totalorder %s35, 0
      %p229 = por %p227, %p228
      %p230 = scmp.ne.s32.totalorder %s216, %s217
      %p231 = scmp.eq.s32.totalorder %s36, 3
      %p232 = por %p230, %p231
      %p234 = scmp.ne.s32.totalorder %s217, %s233
      %p235 = scmp.eq.s32.totalorder %s36, 0
      %p236 = por %p234, %p235
      %s237 = ssub.s32 %s38, %s52
      %p238 = scmp.eq.s32.totalorder %s237, 0
      %s240 = sadd.s32 %s239, 1
      %s241 = scalar_select %p238, %s239, %s240
      %p244 = pneg %p238
      %p245 = scmp.eq.s32.totalorder %s30, 3
      %p246 = por %p244, %p245
      %p247 = scmp.ne.s32.totalorder %s239, %s242
      %p248 = scmp.eq.s32.totalorder %s30, 0
      %p249 = por %p247, %p248
      %p250 = scmp.ne.s32.totalorder %s239, %s242
      %p251 = scmp.eq.s32.totalorder %s35, 3
      %p252 = por %p250, %p251
      %p253 = scmp.ne.s32.totalorder %s242, %s243
      %p254 = scmp.eq.s32.totalorder %s35, 0
      %p255 = por %p253, %p254
      %p256 = scmp.ne.s32.totalorder %s242, %s243
      %p257 = scmp.eq.s32.totalorder %s36, 3
      %p258 = por %p256, %p257
      %p260 = scmp.ne.s32.totalorder %s243, %s259
      %p261 = scmp.eq.s32.totalorder %s36, 0
      %p262 = por %p260, %p261
      %s263 = ssub.s32 %s38, %s52
      %p264 = scmp.eq.s32.totalorder %s263, 0
      %s266 = sadd.s32 %s265, 1
      %s267 = scalar_select %p264, %s265, %s266
      %p270 = pneg %p264
      %p271 = scmp.eq.s32.totalorder %s30, 3
      %p272 = por %p270, %p271
      %p273 = scmp.ne.s32.totalorder %s265, %s268
      %p274 = scmp.eq.s32.totalorder %s30, 0
      %p275 = por %p273, %p274
      %p276 = scmp.ne.s32.totalorder %s265, %s268
      %p277 = scmp.eq.s32.totalorder %s35, 3
      %p278 = por %p276, %p277
      %p279 = scmp.ne.s32.totalorder %s268, %s269
      %p280 = scmp.eq.s32.totalorder %s35, 0
      %p281 = por %p279, %p280
      %p282 = scmp.ne.s32.totalorder %s268, %s269
      %p283 = scmp.eq.s32.totalorder %s36, 3
      %p284 = por %p282, %p283
      %p286 = scmp.ne.s32.totalorder %s269, %s285
      %p287 = scmp.eq.s32.totalorder %s36, 0
      %p288 = por %p286, %p287
      %s289 = ssub.s32 %s38, %s52
      %p290 = scmp.eq.s32.totalorder %s289, 0
      %s292 = sadd.s32 %s291, 1
      %s293 = scalar_select %p290, %s291, %s292
      %p296 = pneg %p290
      %p297 = scmp.eq.s32.totalorder %s30, 3
      %p298 = por %p296, %p297
      %p299 = scmp.ne.s32.totalorder %s291, %s294
      %p300 = scmp.eq.s32.totalorder %s30, 0
      %p301 = por %p299, %p300
      %p302 = scmp.ne.s32.totalorder %s291, %s294
      %p303 = scmp.eq.s32.totalorder %s35, 3
      %p304 = por %p302, %p303
      %p305 = scmp.ne.s32.totalorder %s294, %s295
      %p306 = scmp.eq.s32.totalorder %s35, 0
      %p307 = por %p305, %p306
      %p308 = scmp.ne.s32.totalorder %s294, %s295
      %p309 = scmp.eq.s32.totalorder %s36, 3
      %p310 = por %p308, %p309
      %p312 = scmp.ne.s32.totalorder %s295, %s311
      %p313 = scmp.eq.s32.totalorder %s36, 0
      %p314 = por %p312, %p313
      %s315 = ssub.s32 %s37, %s56
      %s316 = ssub.s32 %s39, %s48
      %s317 = sor.u32 %s315, %s316
      %s318 = ssub.s32 %s38, %s52
      %s319 = sor.u32 %s317, %s318
      %p320 = scmp.eq.s32.totalorder %s319, 0
      %s322 = sadd.s32 %s321, 1
      %s323 = scalar_select %p320, %s321, %s322
      %p326 = pneg %p320
      %p327 = scmp.eq.s32.totalorder %s30, 3
      %p328 = por %p326, %p327
      %p329 = scmp.ne.s32.totalorder %s321, %s324
      %p330 = scmp.eq.s32.totalorder %s30, 0
      %p331 = por %p329, %p330
      %p332 = scmp.ne.s32.totalorder %s321, %s324
      %p333 = scmp.eq.s32.totalorder %s35, 3
      %p334 = por %p332, %p333
      %p335 = scmp.ne.s32.totalorder %s324, %s325
      %p336 = scmp.eq.s32.totalorder %s35, 0
      %p337 = por %p335, %p336
      %p338 = scmp.ne.s32.totalorder %s324, %s325
      %p339 = scmp.eq.s32.totalorder %s36, 3
      %p340 = por %p338, %p339
      %p342 = scmp.ne.s32.totalorder %s325, %s341
      %p343 = scmp.eq.s32.totalorder %s36, 0
      %p344 = por %p342, %p343
      %p345 = scmp.le.s32.totalorder 1, %s30
      %p346 = scmp.lt.s32.totalorder %s30, 5
      %p347 = pnand %p345, %p346
      %p348 = pneg %p347
      // Predicated region
      $region9: #{tpu_custom_call.1} parent=5 // pred_check
        _
      $region10: #{tpu_custom_call.1} parent=5 // pred_check_branch
        %350 = sbr.rel (%p347) target = $region12
      $region11: #{tpu_custom_call.1} parent=5 // pred_region
        %s351 = ssub.s32 %s30, 1
        // Predicated region
        $region13: #{tpu_custom_call.1} parent=11 // pred_check
          %p352 = pneg %p255
        $region14: #{tpu_custom_call.1} parent=11 // pred_check_branch
          %354 = sbr.rel (%p352) target = $region16
        $region15: #{tpu_custom_call.1} parent=11 // pred_region
          %p355 = scmp.lt.s32.totalorder %s41, 0
          %s356 = scalar_select %p355, %s41, 0
          %s357 = scalar_lea.vmem %s6, %s356
        $region16: #{tpu_custom_call.1} parent=11 // pred_fallthru
          _
        // Predicated region
        $region17: #{tpu_custom_call.1} parent=11 // pred_check
          %p358 = pneg %p281
        $region18: #{tpu_custom_call.1} parent=11 // pred_check_branch
          %360 = sbr.rel (%p358) target = $region20
        $region19: #{tpu_custom_call.1} parent=11 // pred_region
          %p361 = scmp.lt.s32.totalorder %s41, 0
          %s362 = scalar_select %p361, %s41, 0
          %s363 = scalar_lea.vmem %s7, %s362
        $region20: #{tpu_custom_call.1} parent=11 // pred_fallthru
          _
        // Predicated region
        $region21: #{tpu_custom_call.1} parent=11 // pred_check
          %p364 = pneg %p307
        $region22: #{tpu_custom_call.1} parent=11 // pred_check_branch
          %366 = sbr.rel (%p364) target = $region24
        $region23: #{tpu_custom_call.1} parent=11 // pred_region
          %p367 = scmp.lt.s32.totalorder %s41, 0
          %s368 = scalar_select %p367, %s41, 0
          %s369 = scalar_lea.vmem %s8, %s368
        $region24: #{tpu_custom_call.1} parent=11 // pred_fallthru
          _
      $region12: #{tpu_custom_call.1} parent=5 // pred_fallthru
        _
      %p370 = scmp.lt.s32.totalorder %s30, 4
      // Predicated region
      $region25: #{tpu_custom_call.1} parent=5 // pred_check
        %p371 = pneg %p370
      $region26: #{tpu_custom_call.1} parent=5 // pred_check_branch
        %373 = sbr.rel (%p371) target = $region28
      $region27: #{tpu_custom_call.1} parent=5 // pred_region
        // Predicated region
        $region29: #{tpu_custom_call.1} parent=27 // pred_check
          %p374 = pneg %p73
        $region30: #{tpu_custom_call.1} parent=27 // pred_check_branch
          %376 = sbr.rel (%p374) target = $region32
        $region31: #{tpu_custom_call.1} parent=27 // pred_region
          %s377 = sand.u32 %s63, 1
          %s378 = scalar_lea.sflag [#allocation4], %s377
          %s379 = sand.u32 %s63, 1
          %s380 = smul.addr %s379, 16
          %s381 = scalar_lea.vmem [#allocation3], %s380
          %s382 = smul.u32 4, %s39
          %s384 = ssub.s32 256, 256
          %385 = vsyncadd %s378, %s384
          %s386 = sadd.s32 %s38, %s382
          %s387 = smul.addr %s37, 8
          %s388 = sadd.s32 %s386, %s387
          %s389 = smul.addr %s388, 64
          %s390 = scalar_lea.hbm %s0, %s389
          %s391 = sshll.u32 %s381, 4
          %s392 = int_to_ptr.vmem [resolvable:$true] %s391
          %397 = dma.hbm_to_vmem [thread:$0]  %s390, 256, %s392, %s378, 64, 64, 4
        $region32: #{tpu_custom_call.1} parent=27 // pred_fallthru
          _
        // Predicated region
        $region33: #{tpu_custom_call.1} parent=27 // pred_check
          %p398 = pneg %p103
        $region34: #{tpu_custom_call.1} parent=27 // pred_check_branch
          %400 = sbr.rel (%p398) target = $region36
        $region35: #{tpu_custom_call.1} parent=27 // pred_region
          %s401 = sand.u32 %s30, 1
          %s402 = scalar_lea.sflag [#allocation7], %s401
          %s403 = sand.u32 %s93, 1
          %s404 = smul.addr %s403, 32
          %s405 = scalar_lea.vmem [#allocation6], %s404
          %s406 = smul.u32 4, %s39
          %s408 = ssub.s32 512, 512
          %409 = vsyncadd %s402, %s408
          %s410 = sadd.s32 %s38, %s406
          %s411 = smul.addr %s37, 8
          %s412 = sadd.s32 %s410, %s411
          %s413 = smul.addr %s412, 128
          %s414 = scalar_lea.hbm %s1, %s413
          %s415 = sshll.u32 %s405, 4
          %s416 = int_to_ptr.vmem [resolvable:$true] %s415
          %421 = dma.hbm_to_vmem [thread:$0]  %s414, 512, %s416, %s402, 128, 128, 8
        $region36: #{tpu_custom_call.1} parent=27 // pred_fallthru
          _
        // Predicated region
        $region37: #{tpu_custom_call.1} parent=27 // pred_check
          %p422 = pneg %p133
        $region38: #{tpu_custom_call.1} parent=27 // pred_check_branch
          %424 = sbr.rel (%p422) target = $region40
        $region39: #{tpu_custom_call.1} parent=27 // pred_region
          %s425 = sand.u32 %s30, 1
          %s426 = scalar_lea.sflag [#allocation7], %s425
          %s427 = sand.u32 %s123, 1
          %s428 = smul.addr %s427, 16
          %s429 = scalar_lea.vmem [#allocation8], %s428
          %s430 = smul.u32 4, %s39
          %s432 = ssub.s32 256, 256
          %433 = vsyncadd %s426, %s432
          %s434 = sadd.s32 %s38, %s430
          %s435 = smul.addr %s37, 8
          %s436 = sadd.s32 %s434, %s435
          %s437 = smul.addr %s436, 64
          %s438 = scalar_lea.hbm %s2, %s437
          %s439 = sshll.u32 %s429, 4
          %s440 = int_to_ptr.vmem [resolvable:$true] %s439
          %445 = dma.hbm_to_vmem [thread:$0]  %s438, 256, %s440, %s426, 64, 64, 4
        $region40: #{tpu_custom_call.1} parent=27 // pred_fallthru
          _
        // Predicated region
        $region41: #{tpu_custom_call.1} parent=27 // pred_check
          %p446 = pneg %p163
        $region42: #{tpu_custom_call.1} parent=27 // pred_check_branch
          %448 = sbr.rel (%p446) target = $region44
        $region43: #{tpu_custom_call.1} parent=27 // pred_region
          %s449 = sand.u32 %s30, 1
          %s450 = scalar_lea.sflag [#allocation10], %s449
          %s451 = sand.u32 %s153, 1
          %s452 = smul.addr %s451, 16
          %s453 = scalar_lea.vmem [#allocation9], %s452
          %s454 = smul.u32 4, %s39
          %s456 = ssub.s32 256, 256
          %457 = vsyncadd %s450, %s456
          %s458 = sadd.s32 %s38, %s454
          %s459 = smul.addr %s37, 8
          %s460 = sadd.s32 %s458, %s459
          %s461 = smul.addr %s460, 64
          %s462 = scalar_lea.hbm %s3, %s461
          %s463 = sshll.u32 %s453, 4
          %s464 = int_to_ptr.vmem [resolvable:$true] %s463
          %469 = dma.hbm_to_vmem [thread:$0]  %s462, 256, %s464, %s450, 64, 64, 4
        $region44: #{tpu_custom_call.1} parent=27 // pred_fallthru
          _
        // Predicated region
        $region45: #{tpu_custom_call.1} parent=27 // pred_check
          %p470 = pneg %p193
        $region46: #{tpu_custom_call.1} parent=27 // pred_check_branch
          %472 = sbr.rel (%p470) target = $region48
        $region47: #{tpu_custom_call.1} parent=27 // pred_region
          %s473 = sand.u32 %s30, 1
          %s474 = scalar_lea.sflag [#allocation10], %s473
          %s475 = sand.u32 %s183, 1
          %s476 = smul.addr %s475, 16
          %s477 = scalar_lea.vmem [#allocation11], %s476
          %s478 = smul.u32 4, %s39
          %s480 = ssub.s32 256, 256
          %481 = vsyncadd %s474, %s480
          %s482 = sadd.s32 %s38, %s478
          %s483 = smul.addr %s37, 8
          %s484 = sadd.s32 %s482, %s483
          %s485 = smul.addr %s484, 64
          %s486 = scalar_lea.hbm %s4, %s485
          %s487 = sshll.u32 %s477, 4
          %s488 = int_to_ptr.vmem [resolvable:$true] %s487
          %493 = dma.hbm_to_vmem [thread:$0]  %s486, 256, %s488, %s474, 64, 64, 4
        $region48: #{tpu_custom_call.1} parent=27 // pred_fallthru
          _
        // Predicated region
        $region49: #{tpu_custom_call.1} parent=27 // pred_check
          %p494 = pneg %p223
        $region50: #{tpu_custom_call.1} parent=27 // pred_check_branch
          %496 = sbr.rel (%p494) target = $region52
        $region51: #{tpu_custom_call.1} parent=27 // pred_region
          %s497 = sand.u32 %s213, 1
          %s498 = scalar_lea.sflag [#allocation13], %s497
          %s499 = sand.u32 %s213, 1
          %s500 = smul.addr %s499, 16
          %s501 = scalar_lea.vmem [#allocation12], %s500
          %s502 = smul.u32 4, %s39
          %s504 = ssub.s32 256, 256
          %505 = vsyncadd %s498, %s504
          %s506 = sadd.s32 %s38, %s502
          %s507 = smul.addr %s37, 8
          %s508 = sadd.s32 %s506, %s507
          %s509 = smul.addr %s508, 64
          %s510 = scalar_lea.hbm %s5, %s509
          %s511 = sshll.u32 %s501, 4
          %s512 = int_to_ptr.vmem [resolvable:$true] %s511
          %517 = dma.hbm_to_vmem [thread:$0]  %s510, 256, %s512, %s498, 64, 64, 4
        $region52: #{tpu_custom_call.1} parent=27 // pred_fallthru
          _
      $region28: #{tpu_custom_call.1} parent=5 // pred_fallthru
        _
      %p518 = scmp.le.s32.totalorder 1, %s30
      %p519 = scmp.lt.s32.totalorder %s30, 5
      %p520 = pnand %p518, %p519
      %p521 = pneg %p520
      // Predicated region
      $region53: #{tpu_custom_call.1} parent=5 // pred_check
        _
      $region54: #{tpu_custom_call.1} parent=5 // pred_check_branch
        %523 = sbr.rel (%p520) target = $region56
      $region55: #{tpu_custom_call.1} parent=5 // pred_region
        %s524 = ssub.s32 %s30, 1
        %s525 = sand.u32 %s66, 1
        %s526 = scalar_lea.sflag [#allocation4], %s525
        %s527 = sand.u32 %s66, 1
        %s528 = smul.addr %s527, 16
        %s529 = scalar_lea.vmem [#allocation3], %s528
        // Predicated region
        $region57: #{tpu_custom_call.1} parent=55 // pred_check
          %p530 = pneg %p79
        $region58: #{tpu_custom_call.1} parent=55 // pred_check_branch
          %532 = sbr.rel (%p530) target = $region60
        $region59: #{tpu_custom_call.1} parent=55 // pred_region
          %533 = dma.done %s526, 256
        $region60: #{tpu_custom_call.1} parent=55 // pred_fallthru
          _
        %s534 = sand.u32 %s35, 1
        %s535 = scalar_lea.sflag [#allocation7], %s534
        %s536 = sand.u32 %s96, 1
        %s537 = smul.addr %s536, 32
        %s538 = scalar_lea.vmem [#allocation6], %s537
        // Predicated region
        $region61: #{tpu_custom_call.1} parent=55 // pred_check
          %p539 = pneg %p109
        $region62: #{tpu_custom_call.1} parent=55 // pred_check_branch
          %541 = sbr.rel (%p539) target = $region64
        $region63: #{tpu_custom_call.1} parent=55 // pred_region
          %542 = dma.done %s535, 512
        $region64: #{tpu_custom_call.1} parent=55 // pred_fallthru
          _
        %s543 = sand.u32 %s35, 1
        %s544 = scalar_lea.sflag [#allocation7], %s543
        %s545 = sand.u32 %s126, 1
        %s546 = smul.addr %s545, 16
        %s547 = scalar_lea.vmem [#allocation8], %s546
        // Predicated region
        $region65: #{tpu_custom_call.1} parent=55 // pred_check
          %p548 = pneg %p139
        $region66: #{tpu_custom_call.1} parent=55 // pred_check_branch
          %550 = sbr.rel (%p548) target = $region68
        $region67: #{tpu_custom_call.1} parent=55 // pred_region
          %551 = dma.done %s544, 256
        $region68: #{tpu_custom_call.1} parent=55 // pred_fallthru
          _
        %s552 = sand.u32 %s35, 1
        %s553 = scalar_lea.sflag [#allocation10], %s552
        %s554 = sand.u32 %s156, 1
        %s555 = smul.addr %s554, 16
        %s556 = scalar_lea.vmem [#allocation9], %s555
        // Predicated region
        $region69: #{tpu_custom_call.1} parent=55 // pred_check
          %p557 = pneg %p169
        $region70: #{tpu_custom_call.1} parent=55 // pred_check_branch
          %559 = sbr.rel (%p557) target = $region72
        $region71: #{tpu_custom_call.1} parent=55 // pred_region
          %560 = dma.done %s553, 256
        $region72: #{tpu_custom_call.1} parent=55 // pred_fallthru
          _
        %s561 = sand.u32 %s35, 1
        %s562 = scalar_lea.sflag [#allocation10], %s561
        %s563 = sand.u32 %s186, 1
        %s564 = smul.addr %s563, 16
        %s565 = scalar_lea.vmem [#allocation11], %s564
        // Predicated region
        $region73: #{tpu_custom_call.1} parent=55 // pred_check
          %p566 = pneg %p199
        $region74: #{tpu_custom_call.1} parent=55 // pred_check_branch
          %568 = sbr.rel (%p566) target = $region76
        $region75: #{tpu_custom_call.1} parent=55 // pred_region
          %569 = dma.done %s562, 256
        $region76: #{tpu_custom_call.1} parent=55 // pred_fallthru
          _
        %s570 = sand.u32 %s216, 1
        %s571 = scalar_lea.sflag [#allocation13], %s570
        %s572 = sand.u32 %s216, 1
        %s573 = smul.addr %s572, 16
        %s574 = scalar_lea.vmem [#allocation12], %s573
        // Predicated region
        $region77: #{tpu_custom_call.1} parent=55 // pred_check
          %p575 = pneg %p229
        $region78: #{tpu_custom_call.1} parent=55 // pred_check_branch
          %577 = sbr.rel (%p575) target = $region80
        $region79: #{tpu_custom_call.1} parent=55 // pred_region
          %578 = dma.done %s571, 256
        $region80: #{tpu_custom_call.1} parent=55 // pred_fallthru
          _
        %s579 = sand.u32 %s66, 1
        %s580 = scalar_lea.sflag [#allocation4], %s579
        %s581 = sand.u32 %s66, 1
        %s582 = smul.addr %s581, 16
        %s583 = scalar_lea.vmem [#allocation3], %s582
        %p584 = pneg %p79
        %p585 = pneg %p76
        %s586 = sand.u32 %s35, 1
        %s587 = scalar_lea.sflag [#allocation7], %s586
        %s588 = sand.u32 %s96, 1
        %s589 = smul.addr %s588, 32
        %s590 = scalar_lea.vmem [#allocation6], %s589
        %p591 = pneg %p109
        %p592 = pneg %p106
        %s593 = sand.u32 %s35, 1
        %s594 = scalar_lea.sflag [#allocation7], %s593
        %s595 = sand.u32 %s126, 1
        %s596 = smul.addr %s595, 16
        %s597 = scalar_lea.vmem [#allocation8], %s596
        %p598 = pneg %p139
        %p599 = pneg %p136
        %s600 = sand.u32 %s35, 1
        %s601 = scalar_lea.sflag [#allocation10], %s600
        %s602 = sand.u32 %s156, 1
        %s603 = smul.addr %s602, 16
        %s604 = scalar_lea.vmem [#allocation9], %s603
        %p605 = pneg %p169
        %p606 = pneg %p166
        %s607 = sand.u32 %s35, 1
        %s608 = scalar_lea.sflag [#allocation10], %s607
        %s609 = sand.u32 %s186, 1
        %s610 = smul.addr %s609, 16
        %s611 = scalar_lea.vmem [#allocation11], %s610
        %p612 = pneg %p199
        %p613 = pneg %p196
        %s614 = sand.u32 %s216, 1
        %s615 = scalar_lea.sflag [#allocation13], %s614
        %s616 = sand.u32 %s216, 1
        %s617 = smul.addr %s616, 16
        %s618 = scalar_lea.vmem [#allocation12], %s617
        %p619 = pneg %p229
        %p620 = pneg %p226
        %p621 = scmp.lt.s32.totalorder %s41, 0
        %s622 = scalar_select %p621, %s41, 0
        %s623 = scalar_lea.vmem %s6, %s622
        %p624 = pneg %p255
        %p625 = pneg %p252
        %p626 = scmp.lt.s32.totalorder %s41, 0
        %s627 = scalar_select %p626, %s41, 0
        %s628 = scalar_lea.vmem %s7, %s627
        %p629 = pneg %p281
        %p630 = pneg %p278
        %p631 = scmp.lt.s32.totalorder %s41, 0
        %s632 = scalar_select %p631, %s41, 0
        %s633 = scalar_lea.vmem %s8, %s632
        %p634 = pneg %p307
        %p635 = pneg %p304
        %p636 = pneg %p337
        %p637 = pneg %p334
        %s638 = sand.u32 %s324, 1
        %s639 = scalar_lea.sflag [#allocation5], %s638
        %s640 = sand.u32 %s324, 1
        %s641 = smul.addr %s640, 32
        %s642 = scalar_lea.vmem [#allocation14], %s641
        %s643 = smul.u32 4, %s42
        %s644 = smul.u32 4, %s42
        %s645 = smul.u32 4, %s42
        %s646 = smul.u32 4, %s42
        %s647 = smul.u32 4, %s42
        %s648 = smul.u32 4, %s42
        %p649 = scmp.lt.s32.totalorder %s41, 0
        %s650 = scalar_select %p649, %s41, 0
        %s651 = scalar_lea.vmem %s6, %s650
        %p652 = scmp.lt.s32.totalorder %s41, 0
        %s653 = scalar_select %p652, %s41, 0
        %s654 = scalar_lea.vmem %s7, %s653
        %p655 = scmp.lt.s32.totalorder %s41, 0
        %s656 = scalar_select %p655, %s41, 0
        %s657 = scalar_lea.vmem %s8, %s656
        %s658 = smul.u32 4, %s42
        %p659 = scmp.eq.s32.totalorder %s42, 0
        // Predicated region
        $region81: #{tpu_custom_call.1} parent=55 // pred_check
          %p660 = pneg %p659
        $region82: #{tpu_custom_call.1} parent=55 // pred_check_branch
          %662 = sbr.rel (%p660) target = $region84
        $region83: #{tpu_custom_call.1} parent=55 // pred_region
          %vm663 = vcmask 261120
          %664 = vst.msk [vmem:[#allocation2] sm:$0xff] %vm663, 0.0
          %665 = vst.msk [vmem:[#allocation2 + $0x8] sm:$0xff] %vm663, 0.0
          %666 = vst.msk [vmem:[#allocation2 + $0x10] sm:$0xff] %vm663, 0.0
          %667 = vst.msk [vmem:[#allocation2 + $0x18] sm:$0xff] %vm663, 0.0
          %668 = vst.msk [vmem:[#allocation2 + $0x20] sm:$0xff] %vm663, 0.0
          %669 = vst.msk [vmem:[#allocation2 + $0x28] sm:$0xff] %vm663, 0.0
          %670 = vst.msk [vmem:[#allocation2 + $0x30] sm:$0xff] %vm663, 0.0
          %671 = vst.msk [vmem:[#allocation2 + $0x38] sm:$0xff] %vm663, 0.0
        $region84: #{tpu_custom_call.1} parent=55 // pred_fallthru
          _
        %v672 = vlaneseq
        %v673 = vshrl.u32 %v672, 7
        %v674 = vadd.s32 %v673, 8
        %v675 = vadd.s32 %v673, 16
        %v676 = vadd.s32 %v673, 24
        %v677 = vlaneseq
        %v678 = vand.u32 %v677, 127
        %vm679 = vcmp.lt.s32.totalorder %v678, %v673
        %vm680 = vcmp.lt.s32.totalorder %v678, %v674
        %vm681 = vcmp.lt.s32.totalorder %v678, %v675
        %vm682 = vcmp.lt.s32.totalorder %v678, %v676
        %v683 = vsel %vm679, 1, 0
        %v684 = vsel %vm680, 1, 0
        %v685 = vsel %vm681, 1, 0
        %v686 = vsel %vm682, 1, 0
        %v687 = vcvt.s32.f32 %v683
        %v688 = vcvt.s32.f32 %v684
        %v689 = vcvt.s32.f32 %v685
        %v690 = vcvt.s32.f32 %v686
        %vm691 = vcmp.le.s32.totalorder %v678, %v673
        %vm692 = vcmp.le.s32.totalorder %v678, %v674
        %vm693 = vcmp.le.s32.totalorder %v678, %v675
        %vm694 = vcmp.le.s32.totalorder %v678, %v676
        %v695 = vsel %vm691, 1, 0
        %v696 = vsel %vm692, 1, 0
        %v697 = vsel %vm693, 1, 0
        %v698 = vsel %vm694, 1, 0
        %v699 = vcvt.s32.f32 %v695
        %v700 = vcvt.s32.f32 %v696
        %v701 = vcvt.s32.f32 %v697
        %v702 = vcvt.s32.f32 %v698
        %vm703 = vcmp.eq.s32.totalorder %v678, %v673
        %vm704 = vcmp.eq.s32.totalorder %v678, %v674
        %vm705 = vcmp.eq.s32.totalorder %v678, %v675
        %vm706 = vcmp.eq.s32.totalorder %v678, %v676
        %v707 = vsel %vm703, 1, 0
        %v708 = vsel %vm704, 1, 0
        %v709 = vsel %vm705, 1, 0
        %v710 = vsel %vm706, 1, 0
        %v711 = vcvt.s32.f32 %v707
        %v712 = vcvt.s32.f32 %v708
        %v713 = vcvt.s32.f32 %v709
        %v714 = vcvt.s32.f32 %v710
        %v715 = vld [vmem:[%s529] sm:$0xf]
        %v716 = vld [vmem:[%s529 + $0x4] sm:$0xf]
        %v717 = vld [vmem:[%s529 + $0x8] sm:$0xf]
        %v718 = vld [vmem:[%s529 + $0xc] sm:$0xf]
        %v719 = vunpack.c.l.bf16 %v715
        %v720 = vunpack.c.l.bf16 %v716
        %v721 = vunpack.c.l.bf16 %v717
        %v722 = vunpack.c.l.bf16 %v718
        %v723 = vld [vmem:[%s547] sm:$0xf]
        %v724 = vld [vmem:[%s547 + $0x4] sm:$0xf]
        %v725 = vld [vmem:[%s547 + $0x8] sm:$0xf]
        %v726 = vld [vmem:[%s547 + $0xc] sm:$0xf]
        %v727 = vunpack.c.l.bf16 %v723
        %v728 = vunpack.c.l.bf16 %v724
        %v729 = vunpack.c.l.bf16 %v725
        %v730 = vunpack.c.l.bf16 %v726
        %v731 = vld [vmem:[%s556] sm:$0xf]
        %v732 = vld [vmem:[%s556 + $0x4] sm:$0xf]
        %v733 = vld [vmem:[%s556 + $0x8] sm:$0xf]
        %v734 = vld [vmem:[%s556 + $0xc] sm:$0xf]
        %v735 = vunpack.c.l.bf16 %v731
        %v736 = vunpack.c.l.bf16 %v732
        %v737 = vunpack.c.l.bf16 %v733
        %v738 = vunpack.c.l.bf16 %v734
        %v739 = vld [vmem:[%s565] sm:$0xf]
        %v740 = vld [vmem:[%s565 + $0x4] sm:$0xf]
        %v741 = vld [vmem:[%s565 + $0x8] sm:$0xf]
        %v742 = vld [vmem:[%s565 + $0xc] sm:$0xf]
        %v743 = vunpack.c.l.bf16 %v739
        %v744 = vunpack.c.l.bf16 %v740
        %v745 = vunpack.c.l.bf16 %v741
        %v746 = vunpack.c.l.bf16 %v742
        %v747 = vld [vmem:[%s574] sm:$0xf]
        %v748 = vld [vmem:[%s574 + $0x4] sm:$0xf]
        %v749 = vld [vmem:[%s574 + $0x8] sm:$0xf]
        %v750 = vld [vmem:[%s574 + $0xc] sm:$0xf]
        %v751 = vunpack.c.l.bf16 %v747
        %v752 = vunpack.c.l.bf16 %v748
        %v753 = vunpack.c.l.bf16 %v749
        %v754 = vunpack.c.l.bf16 %v750
        %v755 = vld [vmem:[%s538] sm:$0xff]
        %v756 = vld [vmem:[%s538 + $0x8] sm:$0xff]
        %v757 = vld [vmem:[%s538 + $0x10] sm:$0xff]
        %v758 = vld [vmem:[%s538 + $0x18] sm:$0xff]
        %vm759 = vcmask 261120
        %v761 = vsel %vm759, %v699, 0
        %v764 = vsel %vm759, %v700, 0
        %v767 = vsel %vm759, %v701, 0
        %v770 = vsel %vm759, %v702, 0
        %772 = vmatprep.subr.mxu0 0.0
        %773 = vmatpush1.msra.mxu0 0.0
        %774 = vmatprep.subr.mxu0 0.0
        %775 = vmatpush1.msra.mxu0 0.0
        %776 = vmatprep.subr.mxu0 0.0
        %777 = vmatpush1.msra.mxu0 0.0
        %778 = vmatprep.subr.mxu0 0.0
        %779 = vmatpush1.msra.mxu0 0.0
        %780 = vmatprep.subr.mxu0 0.0
        %781 = vmatpush1.msra.mxu0 0.0
        %782 = vmatprep.subr.mxu0 0.0
        %783 = vmatpush1.msra.mxu0 0.0
        %784 = vmatprep.subr.mxu0 0.0
        %785 = vmatpush1.msra.mxu0 0.0
        %786 = vmatprep.subr.mxu0 0.0
        %787 = vmatpush1.msra.mxu0 0.0
        %788 = vmatprep.subr.mxu0 0.0
        %789 = vmatpush1.msra.mxu0 0.0
        %790 = vmatprep.subr.mxu0 0.0
        %791 = vmatpush1.msra.mxu0 0.0
        %792 = vmatprep.subr.mxu0 0.0
        %793 = vmatpush1.msra.mxu0 0.0
        %794 = vmatprep.subr.mxu0 0.0
        %795 = vmatpush1.msra.mxu0 0.0
        %796 = vmatprep.subr.mxu0 0.0
        %797 = vmatpush1.msra.mxu0 %v758
        %798 = vmatprep.subr.mxu0 0.0
        %799 = vmatpush1.msra.mxu0 %v757
        %800 = vmatprep.subr.mxu0 0.0
        %801 = vmatpush1.msra.mxu0 %v756
        %802 = vmatprep.subr.mxu0 0.0
        %803 = vmatpush1.msra.mxu0 %v755
        %804 = vmatprep.subr.mxu0 0.0
        %805 = vmatpush2.msra.mxu0 0.0
        %806 = vmatprep.subr.mxu0 0.0
        %807 = vmatpush2.msra.mxu0 0.0
        %808 = vmatprep.subr.mxu0 0.0
        %809 = vmatpush2.msra.mxu0 0.0
        %810 = vmatprep.subr.mxu0 0.0
        %811 = vmatpush2.msra.mxu0 0.0
        %812 = vmatprep.subr.mxu0 0.0
        %813 = vmatpush2.msra.mxu0 0.0
        %814 = vmatprep.subr.mxu0 0.0
        %815 = vmatpush2.msra.mxu0 0.0
        %816 = vmatprep.subr.mxu0 0.0
        %817 = vmatpush2.msra.mxu0 0.0
        %818 = vmatprep.subr.mxu0 0.0
        %819 = vmatpush2.msra.mxu0 0.0
        %820 = vmatprep.subr.mxu0 0.0
        %821 = vmatpush2.msra.mxu0 0.0
        %822 = vmatprep.subr.mxu0 0.0
        %823 = vmatpush2.msra.mxu0 0.0
        %824 = vmatprep.subr.mxu0 0.0
        %825 = vmatpush2.msra.mxu0 0.0
        %826 = vmatprep.subr.mxu0 0.0
        %827 = vmatpush2.msra.mxu0 0.0
        %828 = vmatprep.subr.mxu0 0.0
        %829 = vmatpush2.msra.mxu0 0.0
        %830 = vmatprep.subr.mxu0 0.0
        %831 = vmatpush2.msra.mxu0 0.0
        %832 = vmatprep.subr.mxu0 0.0
        %833 = vmatpush2.msra.mxu0 0.0
        %834 = vmatprep.subr.mxu0 0.0
        %835 = vmatpush2.msra.mxu0 0.0
        %836 = vmatprep.mubr.f32.mxu0 0.0
        %837 = vmatmul.mubr.f32.gmra.mxu0 %v761
        %v838 = vpop.f32.mrf.mxu0
        %v839 = vadd.f32 0.0, %v838
        %v840 = vpop.f32.mrf.mxu0
        %841 = vmatprep.mubr.f32.mxu0 0.0
        %842 = vmatmul.mubr.f32.gmra.mxu0 %v764
        %v843 = vpop.f32.mrf.mxu0
        %v844 = vadd.f32 0.0, %v843
        %v845 = vpop.f32.mrf.mxu0
        %846 = vmatprep.mubr.f32.mxu0 0.0
        %847 = vmatmul.mubr.f32.gmra.mxu0 %v767
        %v848 = vpop.f32.mrf.mxu0
        %v849 = vadd.f32 0.0, %v848
        %v850 = vpop.f32.mrf.mxu0
        %851 = vmatprep.mubr.f32.mxu0 0.0
        %852 = vmatmul.mubr.f32.gmra.mxu0 %v770
        %v853 = vpop.f32.mrf.mxu0
        %v854 = vadd.f32 0.0, %v853
        %v855 = vpop.f32.mrf.mxu0
        %856 = vdwg.mxu0
        %v857 = vmul.f32 %v839, 1.442695
        %v858 = vpow.pop %v857
        %v859 = vmul.f32 %v844, 1.442695
        %v860 = vpow.pop %v859
        %v861 = vmul.f32 %v849, 1.442695
        %v862 = vpow.pop %v861
        %v863 = vmul.f32 %v854, 1.442695
        %v864 = vpow.pop %v863
        %v866 = vsel %vm759, %v687, 0
        %v869 = vsel %vm759, %v688, 0
        %v872 = vsel %vm759, %v689, 0
        %v875 = vsel %vm759, %v690, 0
        %877 = vmatprep.subr.mxu0 0.0
        %878 = vmatpush1.msra.mxu0 0.0
        %879 = vmatprep.subr.mxu0 0.0
        %880 = vmatpush1.msra.mxu0 0.0
        %881 = vmatprep.subr.mxu0 0.0
        %882 = vmatpush1.msra.mxu0 0.0
        %883 = vmatprep.subr.mxu0 0.0
        %884 = vmatpush1.msra.mxu0 0.0
        %885 = vmatprep.subr.mxu0 0.0
        %886 = vmatpush1.msra.mxu0 0.0
        %887 = vmatprep.subr.mxu0 0.0
        %888 = vmatpush1.msra.mxu0 0.0
        %889 = vmatprep.subr.mxu0 0.0
        %890 = vmatpush1.msra.mxu0 0.0
        %891 = vmatprep.subr.mxu0 0.0
        %892 = vmatpush1.msra.mxu0 0.0
        %893 = vmatprep.subr.mxu0 0.0
        %894 = vmatpush1.msra.mxu0 0.0
        %895 = vmatprep.subr.mxu0 0.0
        %896 = vmatpush1.msra.mxu0 0.0
        %897 = vmatprep.subr.mxu0 0.0
        %898 = vmatpush1.msra.mxu0 0.0
        %899 = vmatprep.subr.mxu0 0.0
        %900 = vmatpush1.msra.mxu0 0.0
        %901 = vmatprep.subr.mxu0 0.0
        %902 = vmatpush1.msra.mxu0 %v758
        %903 = vmatprep.subr.mxu0 0.0
        %904 = vmatpush1.msra.mxu0 %v757
        %905 = vmatprep.subr.mxu0 0.0
        %906 = vmatpush1.msra.mxu0 %v756
        %907 = vmatprep.subr.mxu0 0.0
        %908 = vmatpush1.msra.mxu0 %v755
        %909 = vmatprep.subr.mxu0 0.0
        %910 = vmatpush2.msra.mxu0 0.0
        %911 = vmatprep.subr.mxu0 0.0
        %912 = vmatpush2.msra.mxu0 0.0
        %913 = vmatprep.subr.mxu0 0.0
        %914 = vmatpush2.msra.mxu0 0.0
        %915 = vmatprep.subr.mxu0 0.0
        %916 = vmatpush2.msra.mxu0 0.0
        %917 = vmatprep.subr.mxu0 0.0
        %918 = vmatpush2.msra.mxu0 0.0
        %919 = vmatprep.subr.mxu0 0.0
        %920 = vmatpush2.msra.mxu0 0.0
        %921 = vmatprep.subr.mxu0 0.0
        %922 = vmatpush2.msra.mxu0 0.0
        %923 = vmatprep.subr.mxu0 0.0
        %924 = vmatpush2.msra.mxu0 0.0
        %925 = vmatprep.subr.mxu0 0.0
        %926 = vmatpush2.msra.mxu0 0.0
        %927 = vmatprep.subr.mxu0 0.0
        %928 = vmatpush2.msra.mxu0 0.0
        %929 = vmatprep.subr.mxu0 0.0
        %930 = vmatpush2.msra.mxu0 0.0
        %931 = vmatprep.subr.mxu0 0.0
        %932 = vmatpush2.msra.mxu0 0.0
        %933 = vmatprep.subr.mxu0 0.0
        %934 = vmatpush2.msra.mxu0 0.0
        %935 = vmatprep.subr.mxu0 0.0
        %936 = vmatpush2.msra.mxu0 0.0
        %937 = vmatprep.subr.mxu0 0.0
        %938 = vmatpush2.msra.mxu0 0.0
        %939 = vmatprep.subr.mxu0 0.0
        %940 = vmatpush2.msra.mxu0 0.0
        %941 = vmatprep.mubr.f32.mxu0 0.0
        %942 = vmatmul.mubr.f32.gmra.mxu0 %v866
        %v943 = vpop.f32.mrf.mxu0
        %v944 = vadd.f32 0.0, %v943
        %v945 = vpop.f32.mrf.mxu0
        %946 = vmatprep.mubr.f32.mxu0 0.0
        %947 = vmatmul.mubr.f32.gmra.mxu0 %v869
        %v948 = vpop.f32.mrf.mxu0
        %v949 = vadd.f32 0.0, %v948
        %v950 = vpop.f32.mrf.mxu0
        %951 = vmatprep.mubr.f32.mxu0 0.0
        %952 = vmatmul.mubr.f32.gmra.mxu0 %v872
        %v953 = vpop.f32.mrf.mxu0
        %v954 = vadd.f32 0.0, %v953
        %v955 = vpop.f32.mrf.mxu0
        %956 = vmatprep.mubr.f32.mxu0 0.0
        %957 = vmatmul.mubr.f32.gmra.mxu0 %v875
        %v958 = vpop.f32.mrf.mxu0
        %v959 = vadd.f32 0.0, %v958
        %v960 = vpop.f32.mrf.mxu0
        %961 = vdwg.mxu0
        %v962 = vmul.f32 %v944, 1.442695
        %v963 = vpow.pop %v962
        %v964 = vmul.f32 %v949, 1.442695
        %v965 = vpow.pop %v964
        %v966 = vmul.f32 %v954, 1.442695
        %v967 = vpow.pop %v966
        %v968 = vmul.f32 %v959, 1.442695
        %v969 = vpow.pop %v968
        %v970 = vsub.f32 0.0, %v839
        %v971 = vsub.f32 0.0, %v844
        %v972 = vsub.f32 0.0, %v849
        %v973 = vsub.f32 0.0, %v854
        %v974 = vmul.f32 %v970, 1.442695
        %v975 = vpow.pop %v974
        %v976 = vmul.f32 %v971, 1.442695
        %v977 = vpow.pop %v976
        %v978 = vmul.f32 %v972, 1.442695
        %v979 = vpow.pop %v978
        %v980 = vmul.f32 %v973, 1.442695
        %v981 = vpow.pop %v980
        %v982 = vmul.f32 %v719, %v858
        %v983 = vmul.f32 %v720, %v860
        %v984 = vmul.f32 %v721, %v862
        %v985 = vmul.f32 %v722, %v864
        %v986 = vmul.f32 %v743, %v963
        %v987 = vmul.f32 %v744, %v965
        %v988 = vmul.f32 %v745, %v967
        %v989 = vmul.f32 %v746, %v969
        %v990 = vmul.f32 %v727, %v975
        %v991 = vmul.f32 %v728, %v977
        %v992 = vmul.f32 %v729, %v979
        %v993 = vmul.f32 %v730, %v981
        %v994 = vmul.f32 %v751, %v975
        %v995 = vmul.f32 %v752, %v977
        %v996 = vmul.f32 %v753, %v979
        %v997 = vmul.f32 %v754, %v981
        %1002 = vrot.lane.b32.xlu0 %v982, 96
        %v1003 = vpop.permute.xlu0 %1002
        %1004 = vrot.lane.b32.xlu0 %v983, 96
        %v1005 = vpop.permute.xlu0 %1004
        %1006 = vrot.lane.b32.xlu0 %v984, 96
        %v1007 = vpop.permute.xlu0 %1006
        %1008 = vrot.lane.b32.xlu0 %v985, 96
        %v1009 = vpop.permute.xlu0 %1008
        %1014 = vrot.lane.b32.xlu0 %v986, 96
        %v1015 = vpop.permute.xlu0 %1014
        %1016 = vrot.lane.b32.xlu0 %v987, 96
        %v1017 = vpop.permute.xlu0 %1016
        %1018 = vrot.lane.b32.xlu0 %v988, 96
        %v1019 = vpop.permute.xlu0 %1018
        %1020 = vrot.lane.b32.xlu0 %v989, 96
        %v1021 = vpop.permute.xlu0 %1020
        %1026 = vrot.lane.b32.xlu0 %v990, 96
        %v1027 = vpop.permute.xlu0 %1026
        %1028 = vrot.lane.b32.xlu0 %v991, 96
        %v1029 = vpop.permute.xlu0 %1028
        %1030 = vrot.lane.b32.xlu0 %v992, 96
        %v1031 = vpop.permute.xlu0 %1030
        %1032 = vrot.lane.b32.xlu0 %v993, 96
        %v1033 = vpop.permute.xlu0 %1032
        %1042 = vrot.lane.b32.xlu0 %v994, 96
        %v1043 = vpop.permute.xlu0 %1042
        %1044 = vrot.lane.b32.xlu0 %v995, 96
        %v1045 = vpop.permute.xlu0 %1044
        %1046 = vrot.lane.b32.xlu0 %v996, 96
        %v1047 = vpop.permute.xlu0 %1046
        %1048 = vrot.lane.b32.xlu0 %v997, 96
        %v1049 = vpop.permute.xlu0 %1048
        %1058 = vrot.lane.b32.xlu0 %v735, 96
        %v1059 = vpop.permute.xlu0 %1058
        %1060 = vrot.lane.b32.xlu0 %v736, 96
        %v1061 = vpop.permute.xlu0 %1060
        %1062 = vrot.lane.b32.xlu0 %v737, 96
        %v1063 = vpop.permute.xlu0 %1062
        %1064 = vrot.lane.b32.xlu0 %v738, 96
        %v1065 = vpop.permute.xlu0 %1064
        %v1070 = vld [vmem:[#allocation2] sm:$0xff]
        %v1071 = vld [vmem:[#allocation2 + $0x8] sm:$0xff]
        %v1072 = vld [vmem:[#allocation2 + $0x10] sm:$0xff]
        %v1073 = vld [vmem:[#allocation2 + $0x18] sm:$0xff]
        %v1074 = vld [vmem:[#allocation2 + $0x20] sm:$0xff]
        %v1075 = vld [vmem:[#allocation2 + $0x28] sm:$0xff]
        %v1076 = vld [vmem:[#allocation2 + $0x30] sm:$0xff]
        %v1077 = vld [vmem:[#allocation2 + $0x38] sm:$0xff]
        %v1078 = vsel %vm759, %v986, 0
        %v1080 = vsel %vm759, %v987, 0
        %v1082 = vsel %vm759, %v988, 0
        %v1084 = vsel %vm759, %v989, 0
        %v1086 = vsel %vm759, %v994, 0
        %v1088 = vsel %vm759, %v995, 0
        %v1090 = vsel %vm759, %v996, 0
        %v1092 = vsel %vm759, %v997, 0
        %1094 = vmatprep.subr.mxu0 0.0
        %1095 = vmatpush1.xpose.msra.mxu0 0.0
        %1096 = vmatprep.subr.mxu0 0.0
        %1097 = vmatpush1.xpose.msra.mxu0 0.0
        %1098 = vmatprep.subr.mxu0 0.0
        %1099 = vmatpush1.xpose.msra.mxu0 0.0
        %1100 = vmatprep.subr.mxu0 0.0
        %1101 = vmatpush1.xpose.msra.mxu0 0.0
        %1102 = vmatprep.subr.mxu0 0.0
        %1103 = vmatpush1.xpose.msra.mxu0 0.0
        %1104 = vmatprep.subr.mxu0 0.0
        %1105 = vmatpush1.xpose.msra.mxu0 0.0
        %1106 = vmatprep.subr.mxu0 0.0
        %1107 = vmatpush1.xpose.msra.mxu0 0.0
        %1108 = vmatprep.subr.mxu0 0.0
        %1109 = vmatpush1.xpose.msra.mxu0 0.0
        %1110 = vmatprep.subr.mxu0 0.0
        %1111 = vmatpush1.xpose.msra.mxu0 0.0
        %1112 = vmatprep.subr.mxu0 0.0
        %1113 = vmatpush1.xpose.msra.mxu0 0.0
        %1114 = vmatprep.subr.mxu0 0.0
        %1115 = vmatpush1.xpose.msra.mxu0 0.0
        %1116 = vmatprep.subr.mxu0 0.0
        %1117 = vmatpush1.xpose.msra.mxu0 0.0
        %1118 = vmatprep.subr.mxu0 0.0
        %1119 = vmatpush1.xpose.msra.mxu0 %v1092
        %1120 = vmatprep.subr.mxu0 0.0
        %1121 = vmatpush1.xpose.msra.mxu0 %v1090
        %1122 = vmatprep.subr.mxu0 0.0
        %1123 = vmatpush1.xpose.msra.mxu0 %v1088
        %1124 = vmatprep.subr.mxu0 0.0
        %1125 = vmatpush1.xpose.msra.mxu0 %v1086
        %1126 = vmatprep.subr.mxu0 0.0
        %1127 = vmatpush2.xpose.msra.mxu0 0.0
        %1128 = vmatprep.subr.mxu0 0.0
        %1129 = vmatpush2.xpose.msra.mxu0 0.0
        %1130 = vmatprep.subr.mxu0 0.0
        %1131 = vmatpush2.xpose.msra.mxu0 0.0
        %1132 = vmatprep.subr.mxu0 0.0
        %1133 = vmatpush2.xpose.msra.mxu0 0.0
        %1134 = vmatprep.subr.mxu0 0.0
        %1135 = vmatpush2.xpose.msra.mxu0 0.0
        %1136 = vmatprep.subr.mxu0 0.0
        %1137 = vmatpush2.xpose.msra.mxu0 0.0
        %1138 = vmatprep.subr.mxu0 0.0
        %1139 = vmatpush2.xpose.msra.mxu0 0.0
        %1140 = vmatprep.subr.mxu0 0.0
        %1141 = vmatpush2.xpose.msra.mxu0 0.0
        %1142 = vmatprep.subr.mxu0 0.0
        %1143 = vmatpush2.xpose.msra.mxu0 0.0
        %1144 = vmatprep.subr.mxu0 0.0
        %1145 = vmatpush2.xpose.msra.mxu0 0.0
        %1146 = vmatprep.subr.mxu0 0.0
        %1147 = vmatpush2.xpose.msra.mxu0 0.0
        %1148 = vmatprep.subr.mxu0 0.0
        %1149 = vmatpush2.xpose.msra.mxu0 0.0
        %1150 = vmatprep.subr.mxu0 0.0
        %1151 = vmatpush2.xpose.msra.mxu0 0.0
        %1152 = vmatprep.subr.mxu0 0.0
        %1153 = vmatpush2.xpose.msra.mxu0 0.0
        %1154 = vmatprep.subr.mxu0 0.0
        %1155 = vmatpush2.xpose.msra.mxu0 0.0
        %1156 = vmatprep.subr.mxu0 0.0
        %1157 = vmatpush2.xpose.msra.mxu0 0.0
        %1158 = vmatprep.mubr.f32.mxu0 0.0
        %1159 = vmatmul.mubr.f32.gmra.mxu0 %v1078
        %v1160 = vpop.f32.mrf.mxu0
        %v1161 = vadd.f32 0.0, %v1160
        %v1162 = vpop.f32.mrf.mxu0
        %1163 = vmatprep.mubr.f32.mxu0 0.0
        %1164 = vmatmul.mubr.f32.gmra.mxu0 %v1080
        %v1165 = vpop.f32.mrf.mxu0
        %v1166 = vadd.f32 0.0, %v1165
        %v1167 = vpop.f32.mrf.mxu0
        %1168 = vmatprep.mubr.f32.mxu0 0.0
        %1169 = vmatmul.mubr.f32.gmra.mxu0 %v1082
        %v1170 = vpop.f32.mrf.mxu0
        %v1171 = vadd.f32 0.0, %v1170
        %v1172 = vpop.f32.mrf.mxu0
        %1173 = vmatprep.mubr.f32.mxu0 0.0
        %1174 = vmatmul.mubr.f32.gmra.mxu0 %v1084
        %v1175 = vpop.f32.mrf.mxu0
        %v1176 = vadd.f32 0.0, %v1175
        %v1177 = vpop.f32.mrf.mxu0
        %1178 = vdwg.mxu0
        %v1179 = vsel %vm759, %v1015, 0
        %v1181 = vsel %vm759, %v1017, 0
        %v1183 = vsel %vm759, %v1019, 0
        %v1185 = vsel %vm759, %v1021, 0
        %v1187 = vsel %vm759, %v1043, 0
        %v1189 = vsel %vm759, %v1045, 0
        %v1191 = vsel %vm759, %v1047, 0
        %v1193 = vsel %vm759, %v1049, 0
        %1195 = vmatprep.subr.mxu0 0.0
        %1196 = vmatpush1.xpose.msra.mxu0 0.0
        %1197 = vmatprep.subr.mxu0 0.0
        %1198 = vmatpush1.xpose.msra.mxu0 0.0
        %1199 = vmatprep.subr.mxu0 0.0
        %1200 = vmatpush1.xpose.msra.mxu0 0.0
        %1201 = vmatprep.subr.mxu0 0.0
        %1202 = vmatpush1.xpose.msra.mxu0 0.0
        %1203 = vmatprep.subr.mxu0 0.0
        %1204 = vmatpush1.xpose.msra.mxu0 0.0
        %1205 = vmatprep.subr.mxu0 0.0
        %1206 = vmatpush1.xpose.msra.mxu0 0.0
        %1207 = vmatprep.subr.mxu0 0.0
        %1208 = vmatpush1.xpose.msra.mxu0 0.0
        %1209 = vmatprep.subr.mxu0 0.0
        %1210 = vmatpush1.xpose.msra.mxu0 0.0
        %1211 = vmatprep.subr.mxu0 0.0
        %1212 = vmatpush1.xpose.msra.mxu0 0.0
        %1213 = vmatprep.subr.mxu0 0.0
        %1214 = vmatpush1.xpose.msra.mxu0 0.0
        %1215 = vmatprep.subr.mxu0 0.0
        %1216 = vmatpush1.xpose.msra.mxu0 0.0
        %1217 = vmatprep.subr.mxu0 0.0
        %1218 = vmatpush1.xpose.msra.mxu0 0.0
        %1219 = vmatprep.subr.mxu0 0.0
        %1220 = vmatpush1.xpose.msra.mxu0 %v1193
        %1221 = vmatprep.subr.mxu0 0.0
        %1222 = vmatpush1.xpose.msra.mxu0 %v1191
        %1223 = vmatprep.subr.mxu0 0.0
        %1224 = vmatpush1.xpose.msra.mxu0 %v1189
        %1225 = vmatprep.subr.mxu0 0.0
        %1226 = vmatpush1.xpose.msra.mxu0 %v1187
        %1227 = vmatprep.subr.mxu0 0.0
        %1228 = vmatpush2.xpose.msra.mxu0 0.0
        %1229 = vmatprep.subr.mxu0 0.0
        %1230 = vmatpush2.xpose.msra.mxu0 0.0
        %1231 = vmatprep.subr.mxu0 0.0
        %1232 = vmatpush2.xpose.msra.mxu0 0.0
        %1233 = vmatprep.subr.mxu0 0.0
        %1234 = vmatpush2.xpose.msra.mxu0 0.0
        %1235 = vmatprep.subr.mxu0 0.0
        %1236 = vmatpush2.xpose.msra.mxu0 0.0
        %1237 = vmatprep.subr.mxu0 0.0
        %1238 = vmatpush2.xpose.msra.mxu0 0.0
        %1239 = vmatprep.subr.mxu0 0.0
        %1240 = vmatpush2.xpose.msra.mxu0 0.0
        %1241 = vmatprep.subr.mxu0 0.0
        %1242 = vmatpush2.xpose.msra.mxu0 0.0
        %1243 = vmatprep.subr.mxu0 0.0
        %1244 = vmatpush2.xpose.msra.mxu0 0.0
        %1245 = vmatprep.subr.mxu0 0.0
        %1246 = vmatpush2.xpose.msra.mxu0 0.0
        %1247 = vmatprep.subr.mxu0 0.0
        %1248 = vmatpush2.xpose.msra.mxu0 0.0
        %1249 = vmatprep.subr.mxu0 0.0
        %1250 = vmatpush2.xpose.msra.mxu0 0.0
        %1251 = vmatprep.subr.mxu0 0.0
        %1252 = vmatpush2.xpose.msra.mxu0 0.0
        %1253 = vmatprep.subr.mxu0 0.0
        %1254 = vmatpush2.xpose.msra.mxu0 0.0
        %1255 = vmatprep.subr.mxu0 0.0
        %1256 = vmatpush2.xpose.msra.mxu0 0.0
        %1257 = vmatprep.subr.mxu0 0.0
        %1258 = vmatpush2.xpose.msra.mxu0 0.0
        %1259 = vmatprep.mubr.f32.mxu0 0.0
        %1260 = vmatmul.mubr.f32.gmra.mxu0 %v1179
        %v1261 = vpop.f32.mrf.mxu0
        %v1262 = vadd.f32 0.0, %v1261
        %v1263 = vpop.f32.mrf.mxu0
        %1264 = vmatprep.mubr.f32.mxu0 0.0
        %1265 = vmatmul.mubr.f32.gmra.mxu0 %v1181
        %v1266 = vpop.f32.mrf.mxu0
        %v1267 = vadd.f32 0.0, %v1266
        %v1268 = vpop.f32.mrf.mxu0
        %1269 = vmatprep.mubr.f32.mxu0 0.0
        %1270 = vmatmul.mubr.f32.gmra.mxu0 %v1183
        %v1271 = vpop.f32.mrf.mxu0
        %v1272 = vadd.f32 0.0, %v1271
        %v1273 = vpop.f32.mrf.mxu0
        %1274 = vmatprep.mubr.f32.mxu0 0.0
        %1275 = vmatmul.mubr.f32.gmra.mxu0 %v1185
        %v1276 = vpop.f32.mrf.mxu0
        %v1277 = vadd.f32 0.0, %v1276
        %v1278 = vpop.f32.mrf.mxu0
        %1279 = vdwg.mxu0
        %v1280 = vmul.f32 %v1161, %v687
        %v1281 = vmul.f32 %v1166, %v688
        %v1282 = vmul.f32 %v1171, %v689
        %v1283 = vmul.f32 %v1176, %v690
        %v1284 = vmul.f32 %v1262, %v687
        %v1285 = vmul.f32 %v1267, %v688
        %v1286 = vmul.f32 %v1272, %v689
        %v1287 = vmul.f32 %v1277, %v690
        %v1288 = vsel %vm759, %v990, 0
        %v1290 = vsel %vm759, %v991, 0
        %v1292 = vsel %vm759, %v992, 0
        %v1294 = vsel %vm759, %v993, 0
        %1296 = vmatprep.subr.mxu0 0.0
        %1297 = vmatpush1.xpose.msra.mxu0 0.0
        %1298 = vmatprep.subr.mxu0 0.0
        %1299 = vmatpush1.xpose.msra.mxu0 0.0
        %1300 = vmatprep.subr.mxu0 0.0
        %1301 = vmatpush1.xpose.msra.mxu0 0.0
        %1302 = vmatprep.subr.mxu0 0.0
        %1303 = vmatpush1.xpose.msra.mxu0 0.0
        %1304 = vmatprep.subr.mxu0 0.0
        %1305 = vmatpush1.xpose.msra.mxu0 0.0
        %1306 = vmatprep.subr.mxu0 0.0
        %1307 = vmatpush1.xpose.msra.mxu0 0.0
        %1308 = vmatprep.subr.mxu0 0.0
        %1309 = vmatpush1.xpose.msra.mxu0 0.0
        %1310 = vmatprep.subr.mxu0 0.0
        %1311 = vmatpush1.xpose.msra.mxu0 0.0
        %1312 = vmatprep.subr.mxu0 0.0
        %1313 = vmatpush1.xpose.msra.mxu0 0.0
        %1314 = vmatprep.subr.mxu0 0.0
        %1315 = vmatpush1.xpose.msra.mxu0 0.0
        %1316 = vmatprep.subr.mxu0 0.0
        %1317 = vmatpush1.xpose.msra.mxu0 0.0
        %1318 = vmatprep.subr.mxu0 0.0
        %1319 = vmatpush1.xpose.msra.mxu0 0.0
        %1320 = vmatprep.subr.mxu0 0.0
        %1321 = vmatpush1.xpose.msra.mxu0 %v1294
        %1322 = vmatprep.subr.mxu0 0.0
        %1323 = vmatpush1.xpose.msra.mxu0 %v1292
        %1324 = vmatprep.subr.mxu0 0.0
        %1325 = vmatpush1.xpose.msra.mxu0 %v1290
        %1326 = vmatprep.subr.mxu0 0.0
        %1327 = vmatpush1.xpose.msra.mxu0 %v1288
        %1328 = vmatprep.subr.mxu0 0.0
        %1329 = vmatpush2.xpose.msra.mxu0 0.0
        %1330 = vmatprep.subr.mxu0 0.0
        %1331 = vmatpush2.xpose.msra.mxu0 0.0
        %1332 = vmatprep.subr.mxu0 0.0
        %1333 = vmatpush2.xpose.msra.mxu0 0.0
        %1334 = vmatprep.subr.mxu0 0.0
        %1335 = vmatpush2.xpose.msra.mxu0 0.0
        %1336 = vmatprep.subr.mxu0 0.0
        %1337 = vmatpush2.xpose.msra.mxu0 0.0
        %1338 = vmatprep.subr.mxu0 0.0
        %1339 = vmatpush2.xpose.msra.mxu0 0.0
        %1340 = vmatprep.subr.mxu0 0.0
        %1341 = vmatpush2.xpose.msra.mxu0 0.0
        %1342 = vmatprep.subr.mxu0 0.0
        %1343 = vmatpush2.xpose.msra.mxu0 0.0
        %1344 = vmatprep.subr.mxu0 0.0
        %1345 = vmatpush2.xpose.msra.mxu0 0.0
        %1346 = vmatprep.subr.mxu0 0.0
        %1347 = vmatpush2.xpose.msra.mxu0 0.0
        %1348 = vmatprep.subr.mxu0 0.0
        %1349 = vmatpush2.xpose.msra.mxu0 0.0
        %1350 = vmatprep.subr.mxu0 0.0
        %1351 = vmatpush2.xpose.msra.mxu0 0.0
        %1352 = vmatprep.subr.mxu0 0.0
        %1353 = vmatpush2.xpose.msra.mxu0 0.0
        %1354 = vmatprep.subr.mxu0 0.0
        %1355 = vmatpush2.xpose.msra.mxu0 0.0
        %1356 = vmatprep.subr.mxu0 0.0
        %1357 = vmatpush2.xpose.msra.mxu0 0.0
        %1358 = vmatprep.subr.mxu0 0.0
        %1359 = vmatpush2.xpose.msra.mxu0 0.0
        %1360 = vmatprep.mubr.f32.mxu0 0.0
        %1361 = vmatmul.mubr.f32.gmra.mxu0 %v1078
        %v1362 = vpop.f32.mrf.mxu0
        %v1363 = vadd.f32 0.0, %v1362
        %v1364 = vpop.f32.mrf.mxu0
        %1365 = vmatprep.mubr.f32.mxu0 0.0
        %1366 = vmatmul.mubr.f32.gmra.mxu0 %v1080
        %v1367 = vpop.f32.mrf.mxu0
        %v1368 = vadd.f32 0.0, %v1367
        %v1369 = vpop.f32.mrf.mxu0
        %1370 = vmatprep.mubr.f32.mxu0 0.0
        %1371 = vmatmul.mubr.f32.gmra.mxu0 %v1082
        %v1372 = vpop.f32.mrf.mxu0
        %v1373 = vadd.f32 0.0, %v1372
        %v1374 = vpop.f32.mrf.mxu0
        %1375 = vmatprep.mubr.f32.mxu0 0.0
        %1376 = vmatmul.mubr.f32.gmra.mxu0 %v1084
        %v1377 = vpop.f32.mrf.mxu0
        %v1378 = vadd.f32 0.0, %v1377
        %v1379 = vpop.f32.mrf.mxu0
        %1380 = vdwg.mxu0
        %v1381 = vsel %vm759, %v1027, 0
        %v1383 = vsel %vm759, %v1029, 0
        %v1385 = vsel %vm759, %v1031, 0
        %v1387 = vsel %vm759, %v1033, 0
        %1389 = vmatprep.subr.mxu0 0.0
        %1390 = vmatpush1.xpose.msra.mxu0 0.0
        %1391 = vmatprep.subr.mxu0 0.0
        %1392 = vmatpush1.xpose.msra.mxu0 0.0
        %1393 = vmatprep.subr.mxu0 0.0
        %1394 = vmatpush1.xpose.msra.mxu0 0.0
        %1395 = vmatprep.subr.mxu0 0.0
        %1396 = vmatpush1.xpose.msra.mxu0 0.0
        %1397 = vmatprep.subr.mxu0 0.0
        %1398 = vmatpush1.xpose.msra.mxu0 0.0
        %1399 = vmatprep.subr.mxu0 0.0
        %1400 = vmatpush1.xpose.msra.mxu0 0.0
        %1401 = vmatprep.subr.mxu0 0.0
        %1402 = vmatpush1.xpose.msra.mxu0 0.0
        %1403 = vmatprep.subr.mxu0 0.0
        %1404 = vmatpush1.xpose.msra.mxu0 0.0
        %1405 = vmatprep.subr.mxu0 0.0
        %1406 = vmatpush1.xpose.msra.mxu0 0.0
        %1407 = vmatprep.subr.mxu0 0.0
        %1408 = vmatpush1.xpose.msra.mxu0 0.0
        %1409 = vmatprep.subr.mxu0 0.0
        %1410 = vmatpush1.xpose.msra.mxu0 0.0
        %1411 = vmatprep.subr.mxu0 0.0
        %1412 = vmatpush1.xpose.msra.mxu0 0.0
        %1413 = vmatprep.subr.mxu0 0.0
        %1414 = vmatpush1.xpose.msra.mxu0 %v1387
        %1415 = vmatprep.subr.mxu0 0.0
        %1416 = vmatpush1.xpose.msra.mxu0 %v1385
        %1417 = vmatprep.subr.mxu0 0.0
        %1418 = vmatpush1.xpose.msra.mxu0 %v1383
        %1419 = vmatprep.subr.mxu0 0.0
        %1420 = vmatpush1.xpose.msra.mxu0 %v1381
        %1421 = vmatprep.subr.mxu0 0.0
        %1422 = vmatpush2.xpose.msra.mxu0 0.0
        %1423 = vmatprep.subr.mxu0 0.0
        %1424 = vmatpush2.xpose.msra.mxu0 0.0
        %1425 = vmatprep.subr.mxu0 0.0
        %1426 = vmatpush2.xpose.msra.mxu0 0.0
        %1427 = vmatprep.subr.mxu0 0.0
        %1428 = vmatpush2.xpose.msra.mxu0 0.0
        %1429 = vmatprep.subr.mxu0 0.0
        %1430 = vmatpush2.xpose.msra.mxu0 0.0
        %1431 = vmatprep.subr.mxu0 0.0
        %1432 = vmatpush2.xpose.msra.mxu0 0.0
        %1433 = vmatprep.subr.mxu0 0.0
        %1434 = vmatpush2.xpose.msra.mxu0 0.0
        %1435 = vmatprep.subr.mxu0 0.0
        %1436 = vmatpush2.xpose.msra.mxu0 0.0
        %1437 = vmatprep.subr.mxu0 0.0
        %1438 = vmatpush2.xpose.msra.mxu0 0.0
        %1439 = vmatprep.subr.mxu0 0.0
        %1440 = vmatpush2.xpose.msra.mxu0 0.0
        %1441 = vmatprep.subr.mxu0 0.0
        %1442 = vmatpush2.xpose.msra.mxu0 0.0
        %1443 = vmatprep.subr.mxu0 0.0
        %1444 = vmatpush2.xpose.msra.mxu0 0.0
        %1445 = vmatprep.subr.mxu0 0.0
        %1446 = vmatpush2.xpose.msra.mxu0 0.0
        %1447 = vmatprep.subr.mxu0 0.0
        %1448 = vmatpush2.xpose.msra.mxu0 0.0
        %1449 = vmatprep.subr.mxu0 0.0
        %1450 = vmatpush2.xpose.msra.mxu0 0.0
        %1451 = vmatprep.subr.mxu0 0.0
        %1452 = vmatpush2.xpose.msra.mxu0 0.0
        %1453 = vmatprep.mubr.f32.mxu0 0.0
        %1454 = vmatmul.mubr.f32.gmra.mxu0 %v1179
        %v1455 = vpop.f32.mrf.mxu0
        %v1456 = vadd.f32 0.0, %v1455
        %v1457 = vpop.f32.mrf.mxu0
        %1458 = vmatprep.mubr.f32.mxu0 0.0
        %1459 = vmatmul.mubr.f32.gmra.mxu0 %v1181
        %v1460 = vpop.f32.mrf.mxu0
        %v1461 = vadd.f32 0.0, %v1460
        %v1462 = vpop.f32.mrf.mxu0
        %1463 = vmatprep.mubr.f32.mxu0 0.0
        %1464 = vmatmul.mubr.f32.gmra.mxu0 %v1183
        %v1465 = vpop.f32.mrf.mxu0
        %v1466 = vadd.f32 0.0, %v1465
        %v1467 = vpop.f32.mrf.mxu0
        %1468 = vmatprep.mubr.f32.mxu0 0.0
        %1469 = vmatmul.mubr.f32.gmra.mxu0 %v1185
        %v1470 = vpop.f32.mrf.mxu0
        %v1471 = vadd.f32 0.0, %v1470
        %v1472 = vpop.f32.mrf.mxu0
        %1473 = vdwg.mxu0
        %v1474 = vmul.f32 %v1363, %v687
        %v1475 = vmul.f32 %v1368, %v688
        %v1476 = vmul.f32 %v1373, %v689
        %v1477 = vmul.f32 %v1378, %v690
        %v1478 = vmul.f32 %v1456, %v687
        %v1479 = vmul.f32 %v1461, %v688
        %v1480 = vmul.f32 %v1466, %v689
        %v1481 = vmul.f32 %v1471, %v690
        %v1482 = vsel %vm759, %v982, 0
        %v1484 = vsel %vm759, %v983, 0
        %v1486 = vsel %vm759, %v984, 0
        %v1488 = vsel %vm759, %v985, 0
        %1490 = vmatprep.subr.mxu0 0.0
        %1491 = vmatpush1.xpose.msra.mxu0 0.0
        %1492 = vmatprep.subr.mxu0 0.0
        %1493 = vmatpush1.xpose.msra.mxu0 0.0
        %1494 = vmatprep.subr.mxu0 0.0
        %1495 = vmatpush1.xpose.msra.mxu0 0.0
        %1496 = vmatprep.subr.mxu0 0.0
        %1497 = vmatpush1.xpose.msra.mxu0 0.0
        %1498 = vmatprep.subr.mxu0 0.0
        %1499 = vmatpush1.xpose.msra.mxu0 0.0
        %1500 = vmatprep.subr.mxu0 0.0
        %1501 = vmatpush1.xpose.msra.mxu0 0.0
        %1502 = vmatprep.subr.mxu0 0.0
        %1503 = vmatpush1.xpose.msra.mxu0 0.0
        %1504 = vmatprep.subr.mxu0 0.0
        %1505 = vmatpush1.xpose.msra.mxu0 0.0
        %1506 = vmatprep.subr.mxu0 0.0
        %1507 = vmatpush1.xpose.msra.mxu0 0.0
        %1508 = vmatprep.subr.mxu0 0.0
        %1509 = vmatpush1.xpose.msra.mxu0 0.0
        %1510 = vmatprep.subr.mxu0 0.0
        %1511 = vmatpush1.xpose.msra.mxu0 0.0
        %1512 = vmatprep.subr.mxu0 0.0
        %1513 = vmatpush1.xpose.msra.mxu0 0.0
        %1514 = vmatprep.subr.mxu0 0.0
        %1515 = vmatpush1.xpose.msra.mxu0 %v1092
        %1516 = vmatprep.subr.mxu0 0.0
        %1517 = vmatpush1.xpose.msra.mxu0 %v1090
        %1518 = vmatprep.subr.mxu0 0.0
        %1519 = vmatpush1.xpose.msra.mxu0 %v1088
        %1520 = vmatprep.subr.mxu0 0.0
        %1521 = vmatpush1.xpose.msra.mxu0 %v1086
        %1522 = vmatprep.subr.mxu0 0.0
        %1523 = vmatpush2.xpose.msra.mxu0 0.0
        %1524 = vmatprep.subr.mxu0 0.0
        %1525 = vmatpush2.xpose.msra.mxu0 0.0
        %1526 = vmatprep.subr.mxu0 0.0
        %1527 = vmatpush2.xpose.msra.mxu0 0.0
        %1528 = vmatprep.subr.mxu0 0.0
        %1529 = vmatpush2.xpose.msra.mxu0 0.0
        %1530 = vmatprep.subr.mxu0 0.0
        %1531 = vmatpush2.xpose.msra.mxu0 0.0
        %1532 = vmatprep.subr.mxu0 0.0
        %1533 = vmatpush2.xpose.msra.mxu0 0.0
        %1534 = vmatprep.subr.mxu0 0.0
        %1535 = vmatpush2.xpose.msra.mxu0 0.0
        %1536 = vmatprep.subr.mxu0 0.0
        %1537 = vmatpush2.xpose.msra.mxu0 0.0
        %1538 = vmatprep.subr.mxu0 0.0
        %1539 = vmatpush2.xpose.msra.mxu0 0.0
        %1540 = vmatprep.subr.mxu0 0.0
        %1541 = vmatpush2.xpose.msra.mxu0 0.0
        %1542 = vmatprep.subr.mxu0 0.0
        %1543 = vmatpush2.xpose.msra.mxu0 0.0
        %1544 = vmatprep.subr.mxu0 0.0
        %1545 = vmatpush2.xpose.msra.mxu0 0.0
        %1546 = vmatprep.subr.mxu0 0.0
        %1547 = vmatpush2.xpose.msra.mxu0 0.0
        %1548 = vmatprep.subr.mxu0 0.0
        %1549 = vmatpush2.xpose.msra.mxu0 0.0
        %1550 = vmatprep.subr.mxu0 0.0
        %1551 = vmatpush2.xpose.msra.mxu0 0.0
        %1552 = vmatprep.subr.mxu0 0.0
        %1553 = vmatpush2.xpose.msra.mxu0 0.0
        %1554 = vmatprep.mubr.f32.mxu0 0.0
        %1555 = vmatmul.mubr.f32.gmra.mxu0 %v1482
        %v1556 = vpop.f32.mrf.mxu0
        %v1557 = vadd.f32 0.0, %v1556
        %v1558 = vpop.f32.mrf.mxu0
        %1559 = vmatprep.mubr.f32.mxu0 0.0
        %1560 = vmatmul.mubr.f32.gmra.mxu0 %v1484
        %v1561 = vpop.f32.mrf.mxu0
        %v1562 = vadd.f32 0.0, %v1561
        %v1563 = vpop.f32.mrf.mxu0
        %1564 = vmatprep.mubr.f32.mxu0 0.0
        %1565 = vmatmul.mubr.f32.gmra.mxu0 %v1486
        %v1566 = vpop.f32.mrf.mxu0
        %v1567 = vadd.f32 0.0, %v1566
        %v1568 = vpop.f32.mrf.mxu0
        %1569 = vmatprep.mubr.f32.mxu0 0.0
        %1570 = vmatmul.mubr.f32.gmra.mxu0 %v1488
        %v1571 = vpop.f32.mrf.mxu0
        %v1572 = vadd.f32 0.0, %v1571
        %v1573 = vpop.f32.mrf.mxu0
        %1574 = vdwg.mxu0
        %v1575 = vsel %vm759, %v1003, 0
        %v1577 = vsel %vm759, %v1005, 0
        %v1579 = vsel %vm759, %v1007, 0
        %v1581 = vsel %vm759, %v1009, 0
        %1583 = vmatprep.subr.mxu0 0.0
        %1584 = vmatpush1.xpose.msra.mxu0 0.0
        %1585 = vmatprep.subr.mxu0 0.0
        %1586 = vmatpush1.xpose.msra.mxu0 0.0
        %1587 = vmatprep.subr.mxu0 0.0
        %1588 = vmatpush1.xpose.msra.mxu0 0.0
        %1589 = vmatprep.subr.mxu0 0.0
        %1590 = vmatpush1.xpose.msra.mxu0 0.0
        %1591 = vmatprep.subr.mxu0 0.0
        %1592 = vmatpush1.xpose.msra.mxu0 0.0
        %1593 = vmatprep.subr.mxu0 0.0
        %1594 = vmatpush1.xpose.msra.mxu0 0.0
        %1595 = vmatprep.subr.mxu0 0.0
        %1596 = vmatpush1.xpose.msra.mxu0 0.0
        %1597 = vmatprep.subr.mxu0 0.0
        %1598 = vmatpush1.xpose.msra.mxu0 0.0
        %1599 = vmatprep.subr.mxu0 0.0
        %1600 = vmatpush1.xpose.msra.mxu0 0.0
        %1601 = vmatprep.subr.mxu0 0.0
        %1602 = vmatpush1.xpose.msra.mxu0 0.0
        %1603 = vmatprep.subr.mxu0 0.0
        %1604 = vmatpush1.xpose.msra.mxu0 0.0
        %1605 = vmatprep.subr.mxu0 0.0
        %1606 = vmatpush1.xpose.msra.mxu0 0.0
        %1607 = vmatprep.subr.mxu0 0.0
        %1608 = vmatpush1.xpose.msra.mxu0 %v1193
        %1609 = vmatprep.subr.mxu0 0.0
        %1610 = vmatpush1.xpose.msra.mxu0 %v1191
        %1611 = vmatprep.subr.mxu0 0.0
        %1612 = vmatpush1.xpose.msra.mxu0 %v1189
        %1613 = vmatprep.subr.mxu0 0.0
        %1614 = vmatpush1.xpose.msra.mxu0 %v1187
        %1615 = vmatprep.subr.mxu0 0.0
        %1616 = vmatpush2.xpose.msra.mxu0 0.0
        %1617 = vmatprep.subr.mxu0 0.0
        %1618 = vmatpush2.xpose.msra.mxu0 0.0
        %1619 = vmatprep.subr.mxu0 0.0
        %1620 = vmatpush2.xpose.msra.mxu0 0.0
        %1621 = vmatprep.subr.mxu0 0.0
        %1622 = vmatpush2.xpose.msra.mxu0 0.0
        %1623 = vmatprep.subr.mxu0 0.0
        %1624 = vmatpush2.xpose.msra.mxu0 0.0
        %1625 = vmatprep.subr.mxu0 0.0
        %1626 = vmatpush2.xpose.msra.mxu0 0.0
        %1627 = vmatprep.subr.mxu0 0.0
        %1628 = vmatpush2.xpose.msra.mxu0 0.0
        %1629 = vmatprep.subr.mxu0 0.0
        %1630 = vmatpush2.xpose.msra.mxu0 0.0
        %1631 = vmatprep.subr.mxu0 0.0
        %1632 = vmatpush2.xpose.msra.mxu0 0.0
        %1633 = vmatprep.subr.mxu0 0.0
        %1634 = vmatpush2.xpose.msra.mxu0 0.0
        %1635 = vmatprep.subr.mxu0 0.0
        %1636 = vmatpush2.xpose.msra.mxu0 0.0
        %1637 = vmatprep.subr.mxu0 0.0
        %1638 = vmatpush2.xpose.msra.mxu0 0.0
        %1639 = vmatprep.subr.mxu0 0.0
        %1640 = vmatpush2.xpose.msra.mxu0 0.0
        %1641 = vmatprep.subr.mxu0 0.0
        %1642 = vmatpush2.xpose.msra.mxu0 0.0
        %1643 = vmatprep.subr.mxu0 0.0
        %1644 = vmatpush2.xpose.msra.mxu0 0.0
        %1645 = vmatprep.subr.mxu0 0.0
        %1646 = vmatpush2.xpose.msra.mxu0 0.0
        %1647 = vmatprep.mubr.f32.mxu0 0.0
        %1648 = vmatmul.mubr.f32.gmra.mxu0 %v1575
        %v1649 = vpop.f32.mrf.mxu0
        %v1650 = vadd.f32 0.0, %v1649
        %v1651 = vpop.f32.mrf.mxu0
        %1652 = vmatprep.mubr.f32.mxu0 0.0
        %1653 = vmatmul.mubr.f32.gmra.mxu0 %v1577
        %v1654 = vpop.f32.mrf.mxu0
        %v1655 = vadd.f32 0.0, %v1654
        %v1656 = vpop.f32.mrf.mxu0
        %1657 = vmatprep.mubr.f32.mxu0 0.0
        %1658 = vmatmul.mubr.f32.gmra.mxu0 %v1579
        %v1659 = vpop.f32.mrf.mxu0
        %v1660 = vadd.f32 0.0, %v1659
        %v1661 = vpop.f32.mrf.mxu0
        %1662 = vmatprep.mubr.f32.mxu0 0.0
        %1663 = vmatmul.mubr.f32.gmra.mxu0 %v1581
        %v1664 = vpop.f32.mrf.mxu0
        %v1665 = vadd.f32 0.0, %v1664
        %v1666 = vpop.f32.mrf.mxu0
        %1667 = vdwg.mxu0
        %v1668 = vmul.f32 %v1557, %v699
        %v1669 = vmul.f32 %v1562, %v700
        %v1670 = vmul.f32 %v1567, %v701
        %v1671 = vmul.f32 %v1572, %v702
        %v1672 = vmul.f32 %v1650, %v699
        %v1673 = vmul.f32 %v1655, %v700
        %v1674 = vmul.f32 %v1660, %v701
        %v1675 = vmul.f32 %v1665, %v702
        %1676 = vmatprep.subr.mxu0 0.0
        %1677 = vmatpush1.xpose.msra.mxu0 0.0
        %1678 = vmatprep.subr.mxu0 0.0
        %1679 = vmatpush1.xpose.msra.mxu0 0.0
        %1680 = vmatprep.subr.mxu0 0.0
        %1681 = vmatpush1.xpose.msra.mxu0 0.0
        %1682 = vmatprep.subr.mxu0 0.0
        %1683 = vmatpush1.xpose.msra.mxu0 0.0
        %1684 = vmatprep.subr.mxu0 0.0
        %1685 = vmatpush1.xpose.msra.mxu0 0.0
        %1686 = vmatprep.subr.mxu0 0.0
        %1687 = vmatpush1.xpose.msra.mxu0 0.0
        %1688 = vmatprep.subr.mxu0 0.0
        %1689 = vmatpush1.xpose.msra.mxu0 0.0
        %1690 = vmatprep.subr.mxu0 0.0
        %1691 = vmatpush1.xpose.msra.mxu0 0.0
        %1692 = vmatprep.subr.mxu0 0.0
        %1693 = vmatpush1.xpose.msra.mxu0 0.0
        %1694 = vmatprep.subr.mxu0 0.0
        %1695 = vmatpush1.xpose.msra.mxu0 0.0
        %1696 = vmatprep.subr.mxu0 0.0
        %1697 = vmatpush1.xpose.msra.mxu0 0.0
        %1698 = vmatprep.subr.mxu0 0.0
        %1699 = vmatpush1.xpose.msra.mxu0 0.0
        %1700 = vmatprep.subr.mxu0 0.0
        %1701 = vmatpush1.xpose.msra.mxu0 %v1294
        %1702 = vmatprep.subr.mxu0 0.0
        %1703 = vmatpush1.xpose.msra.mxu0 %v1292
        %1704 = vmatprep.subr.mxu0 0.0
        %1705 = vmatpush1.xpose.msra.mxu0 %v1290
        %1706 = vmatprep.subr.mxu0 0.0
        %1707 = vmatpush1.xpose.msra.mxu0 %v1288
        %1708 = vmatprep.subr.mxu0 0.0
        %1709 = vmatpush2.xpose.msra.mxu0 0.0
        %1710 = vmatprep.subr.mxu0 0.0
        %1711 = vmatpush2.xpose.msra.mxu0 0.0
        %1712 = vmatprep.subr.mxu0 0.0
        %1713 = vmatpush2.xpose.msra.mxu0 0.0
        %1714 = vmatprep.subr.mxu0 0.0
        %1715 = vmatpush2.xpose.msra.mxu0 0.0
        %1716 = vmatprep.subr.mxu0 0.0
        %1717 = vmatpush2.xpose.msra.mxu0 0.0
        %1718 = vmatprep.subr.mxu0 0.0
        %1719 = vmatpush2.xpose.msra.mxu0 0.0
        %1720 = vmatprep.subr.mxu0 0.0
        %1721 = vmatpush2.xpose.msra.mxu0 0.0
        %1722 = vmatprep.subr.mxu0 0.0
        %1723 = vmatpush2.xpose.msra.mxu0 0.0
        %1724 = vmatprep.subr.mxu0 0.0
        %1725 = vmatpush2.xpose.msra.mxu0 0.0
        %1726 = vmatprep.subr.mxu0 0.0
        %1727 = vmatpush2.xpose.msra.mxu0 0.0
        %1728 = vmatprep.subr.mxu0 0.0
        %1729 = vmatpush2.xpose.msra.mxu0 0.0
        %1730 = vmatprep.subr.mxu0 0.0
        %1731 = vmatpush2.xpose.msra.mxu0 0.0
        %1732 = vmatprep.subr.mxu0 0.0
        %1733 = vmatpush2.xpose.msra.mxu0 0.0
        %1734 = vmatprep.subr.mxu0 0.0
        %1735 = vmatpush2.xpose.msra.mxu0 0.0
        %1736 = vmatprep.subr.mxu0 0.0
        %1737 = vmatpush2.xpose.msra.mxu0 0.0
        %1738 = vmatprep.subr.mxu0 0.0
        %1739 = vmatpush2.xpose.msra.mxu0 0.0
        %1740 = vmatprep.mubr.f32.mxu0 0.0
        %1741 = vmatmul.mubr.f32.gmra.mxu0 %v1482
        %v1742 = vpop.f32.mrf.mxu0
        %v1743 = vadd.f32 0.0, %v1742
        %v1744 = vpop.f32.mrf.mxu0
        %1745 = vmatprep.mubr.f32.mxu0 0.0
        %1746 = vmatmul.mubr.f32.gmra.mxu0 %v1484
        %v1747 = vpop.f32.mrf.mxu0
        %v1748 = vadd.f32 0.0, %v1747
        %v1749 = vpop.f32.mrf.mxu0
        %1750 = vmatprep.mubr.f32.mxu0 0.0
        %1751 = vmatmul.mubr.f32.gmra.mxu0 %v1486
        %v1752 = vpop.f32.mrf.mxu0
        %v1753 = vadd.f32 0.0, %v1752
        %v1754 = vpop.f32.mrf.mxu0
        %1755 = vmatprep.mubr.f32.mxu0 0.0
        %1756 = vmatmul.mubr.f32.gmra.mxu0 %v1488
        %v1757 = vpop.f32.mrf.mxu0
        %v1758 = vadd.f32 0.0, %v1757
        %v1759 = vpop.f32.mrf.mxu0
        %1760 = vdwg.mxu0
        %1761 = vmatprep.subr.mxu0 0.0
        %1762 = vmatpush1.xpose.msra.mxu0 0.0
        %1763 = vmatprep.subr.mxu0 0.0
        %1764 = vmatpush1.xpose.msra.mxu0 0.0
        %1765 = vmatprep.subr.mxu0 0.0
        %1766 = vmatpush1.xpose.msra.mxu0 0.0
        %1767 = vmatprep.subr.mxu0 0.0
        %1768 = vmatpush1.xpose.msra.mxu0 0.0
        %1769 = vmatprep.subr.mxu0 0.0
        %1770 = vmatpush1.xpose.msra.mxu0 0.0
        %1771 = vmatprep.subr.mxu0 0.0
        %1772 = vmatpush1.xpose.msra.mxu0 0.0
        %1773 = vmatprep.subr.mxu0 0.0
        %1774 = vmatpush1.xpose.msra.mxu0 0.0
        %1775 = vmatprep.subr.mxu0 0.0
        %1776 = vmatpush1.xpose.msra.mxu0 0.0
        %1777 = vmatprep.subr.mxu0 0.0
        %1778 = vmatpush1.xpose.msra.mxu0 0.0
        %1779 = vmatprep.subr.mxu0 0.0
        %1780 = vmatpush1.xpose.msra.mxu0 0.0
        %1781 = vmatprep.subr.mxu0 0.0
        %1782 = vmatpush1.xpose.msra.mxu0 0.0
        %1783 = vmatprep.subr.mxu0 0.0
        %1784 = vmatpush1.xpose.msra.mxu0 0.0
        %1785 = vmatprep.subr.mxu0 0.0
        %1786 = vmatpush1.xpose.msra.mxu0 %v1387
        %1787 = vmatprep.subr.mxu0 0.0
        %1788 = vmatpush1.xpose.msra.mxu0 %v1385
        %1789 = vmatprep.subr.mxu0 0.0
        %1790 = vmatpush1.xpose.msra.mxu0 %v1383
        %1791 = vmatprep.subr.mxu0 0.0
        %1792 = vmatpush1.xpose.msra.mxu0 %v1381
        %1793 = vmatprep.subr.mxu0 0.0
        %1794 = vmatpush2.xpose.msra.mxu0 0.0
        %1795 = vmatprep.subr.mxu0 0.0
        %1796 = vmatpush2.xpose.msra.mxu0 0.0
        %1797 = vmatprep.subr.mxu0 0.0
        %1798 = vmatpush2.xpose.msra.mxu0 0.0
        %1799 = vmatprep.subr.mxu0 0.0
        %1800 = vmatpush2.xpose.msra.mxu0 0.0
        %1801 = vmatprep.subr.mxu0 0.0
        %1802 = vmatpush2.xpose.msra.mxu0 0.0
        %1803 = vmatprep.subr.mxu0 0.0
        %1804 = vmatpush2.xpose.msra.mxu0 0.0
        %1805 = vmatprep.subr.mxu0 0.0
        %1806 = vmatpush2.xpose.msra.mxu0 0.0
        %1807 = vmatprep.subr.mxu0 0.0
        %1808 = vmatpush2.xpose.msra.mxu0 0.0
        %1809 = vmatprep.subr.mxu0 0.0
        %1810 = vmatpush2.xpose.msra.mxu0 0.0
        %1811 = vmatprep.subr.mxu0 0.0
        %1812 = vmatpush2.xpose.msra.mxu0 0.0
        %1813 = vmatprep.subr.mxu0 0.0
        %1814 = vmatpush2.xpose.msra.mxu0 0.0
        %1815 = vmatprep.subr.mxu0 0.0
        %1816 = vmatpush2.xpose.msra.mxu0 0.0
        %1817 = vmatprep.subr.mxu0 0.0
        %1818 = vmatpush2.xpose.msra.mxu0 0.0
        %1819 = vmatprep.subr.mxu0 0.0
        %1820 = vmatpush2.xpose.msra.mxu0 0.0
        %1821 = vmatprep.subr.mxu0 0.0
        %1822 = vmatpush2.xpose.msra.mxu0 0.0
        %1823 = vmatprep.subr.mxu0 0.0
        %1824 = vmatpush2.xpose.msra.mxu0 0.0
        %1825 = vmatprep.mubr.f32.mxu0 0.0
        %1826 = vmatmul.mubr.f32.gmra.mxu0 %v1575
        %v1827 = vpop.f32.mrf.mxu0
        %v1828 = vadd.f32 0.0, %v1827
        %v1829 = vpop.f32.mrf.mxu0
        %1830 = vmatprep.mubr.f32.mxu0 0.0
        %1831 = vmatmul.mubr.f32.gmra.mxu0 %v1577
        %v1832 = vpop.f32.mrf.mxu0
        %v1833 = vadd.f32 0.0, %v1832
        %v1834 = vpop.f32.mrf.mxu0
        %1835 = vmatprep.mubr.f32.mxu0 0.0
        %1836 = vmatmul.mubr.f32.gmra.mxu0 %v1579
        %v1837 = vpop.f32.mrf.mxu0
        %v1838 = vadd.f32 0.0, %v1837
        %v1839 = vpop.f32.mrf.mxu0
        %1840 = vmatprep.mubr.f32.mxu0 0.0
        %1841 = vmatmul.mubr.f32.gmra.mxu0 %v1581
        %v1842 = vpop.f32.mrf.mxu0
        %v1843 = vadd.f32 0.0, %v1842
        %v1844 = vpop.f32.mrf.mxu0
        %1845 = vdwg.mxu0
        %v1846 = vmul.f32 %v1743, %v699
        %v1847 = vmul.f32 %v1748, %v700
        %v1848 = vmul.f32 %v1753, %v701
        %v1849 = vmul.f32 %v1758, %v702
        %v1850 = vmul.f32 %v1828, %v699
        %v1851 = vmul.f32 %v1833, %v700
        %v1852 = vmul.f32 %v1838, %v701
        %v1853 = vmul.f32 %v1843, %v702
        %v1854 = vadd.f32 %v711, %v1280
        %v1855 = vadd.f32 %v712, %v1281
        %v1856 = vadd.f32 %v713, %v1282
        %v1857 = vadd.f32 %v714, %v1283
        %v1858 = vadd.f32 %v711, %v1284
        %v1859 = vadd.f32 %v712, %v1285
        %v1860 = vadd.f32 %v713, %v1286
        %v1861 = vadd.f32 %v714, %v1287
        %v1863 = vsel %vm759, %v1280, 0
        %v1866 = vsel %vm759, %v1281, 0
        %v1869 = vsel %vm759, %v1282, 0
        %v1872 = vsel %vm759, %v1283, 0
        %1874 = vmatprep.subr.mxu0 0.0
        %1875 = vmatpush1.msra.mxu0 0.0
        %1876 = vmatprep.subr.mxu0 0.0
        %1877 = vmatpush1.msra.mxu0 0.0
        %1878 = vmatprep.subr.mxu0 0.0
        %1879 = vmatpush1.msra.mxu0 0.0
        %1880 = vmatprep.subr.mxu0 0.0
        %1881 = vmatpush1.msra.mxu0 0.0
        %1882 = vmatprep.subr.mxu0 0.0
        %1883 = vmatpush1.msra.mxu0 0.0
        %1884 = vmatprep.subr.mxu0 0.0
        %1885 = vmatpush1.msra.mxu0 0.0
        %1886 = vmatprep.subr.mxu0 0.0
        %1887 = vmatpush1.msra.mxu0 0.0
        %1888 = vmatprep.subr.mxu0 0.0
        %1889 = vmatpush1.msra.mxu0 0.0
        %1890 = vmatprep.subr.mxu0 0.0
        %1891 = vmatpush1.msra.mxu0 0.0
        %1892 = vmatprep.subr.mxu0 0.0
        %1893 = vmatpush1.msra.mxu0 0.0
        %1894 = vmatprep.subr.mxu0 0.0
        %1895 = vmatpush1.msra.mxu0 0.0
        %1896 = vmatprep.subr.mxu0 0.0
        %1897 = vmatpush1.msra.mxu0 0.0
        %1898 = vmatprep.subr.mxu0 0.0
        %1899 = vmatpush1.msra.mxu0 %v1283
        %1900 = vmatprep.subr.mxu0 0.0
        %1901 = vmatpush1.msra.mxu0 %v1282
        %1902 = vmatprep.subr.mxu0 0.0
        %1903 = vmatpush1.msra.mxu0 %v1281
        %1904 = vmatprep.subr.mxu0 0.0
        %1905 = vmatpush1.msra.mxu0 %v1280
        %1906 = vmatprep.subr.mxu0 0.0
        %1907 = vmatpush2.msra.mxu0 0.0
        %1908 = vmatprep.subr.mxu0 0.0
        %1909 = vmatpush2.msra.mxu0 0.0
        %1910 = vmatprep.subr.mxu0 0.0
        %1911 = vmatpush2.msra.mxu0 0.0
        %1912 = vmatprep.subr.mxu0 0.0
        %1913 = vmatpush2.msra.mxu0 0.0
        %1914 = vmatprep.subr.mxu0 0.0
        %1915 = vmatpush2.msra.mxu0 0.0
        %1916 = vmatprep.subr.mxu0 0.0
        %1917 = vmatpush2.msra.mxu0 0.0
        %1918 = vmatprep.subr.mxu0 0.0
        %1919 = vmatpush2.msra.mxu0 0.0
        %1920 = vmatprep.subr.mxu0 0.0
        %1921 = vmatpush2.msra.mxu0 0.0
        %1922 = vmatprep.subr.mxu0 0.0
        %1923 = vmatpush2.msra.mxu0 0.0
        %1924 = vmatprep.subr.mxu0 0.0
        %1925 = vmatpush2.msra.mxu0 0.0
        %1926 = vmatprep.subr.mxu0 0.0
        %1927 = vmatpush2.msra.mxu0 0.0
        %1928 = vmatprep.subr.mxu0 0.0
        %1929 = vmatpush2.msra.mxu0 0.0
        %1930 = vmatprep.subr.mxu0 0.0
        %1931 = vmatpush2.msra.mxu0 0.0
        %1932 = vmatprep.subr.mxu0 0.0
        %1933 = vmatpush2.msra.mxu0 0.0
        %1934 = vmatprep.subr.mxu0 0.0
        %1935 = vmatpush2.msra.mxu0 0.0
        %1936 = vmatprep.subr.mxu0 0.0
        %1937 = vmatpush2.msra.mxu0 0.0
        %1938 = vmatprep.mubr.f32.mxu0 0.0
        %1939 = vmatmul.mubr.f32.gmra.mxu0 %v1863
        %v1940 = vpop.f32.mrf.mxu0
        %v1941 = vadd.f32 0.0, %v1940
        %v1942 = vpop.f32.mrf.mxu0
        %1943 = vmatprep.mubr.f32.mxu0 0.0
        %1944 = vmatmul.mubr.f32.gmra.mxu0 %v1866
        %v1945 = vpop.f32.mrf.mxu0
        %v1946 = vadd.f32 0.0, %v1945
        %v1947 = vpop.f32.mrf.mxu0
        %1948 = vmatprep.mubr.f32.mxu0 0.0
        %1949 = vmatmul.mubr.f32.gmra.mxu0 %v1869
        %v1950 = vpop.f32.mrf.mxu0
        %v1951 = vadd.f32 0.0, %v1950
        %v1952 = vpop.f32.mrf.mxu0
        %1953 = vmatprep.mubr.f32.mxu0 0.0
        %1954 = vmatmul.mubr.f32.gmra.mxu0 %v1872
        %v1955 = vpop.f32.mrf.mxu0
        %v1956 = vadd.f32 0.0, %v1955
        %v1957 = vpop.f32.mrf.mxu0
        %1958 = vdwg.mxu0
        %v1960 = vsel %vm759, %v1284, 0
        %v1963 = vsel %vm759, %v1285, 0
        %v1966 = vsel %vm759, %v1286, 0
        %v1969 = vsel %vm759, %v1287, 0
        %1971 = vmatprep.subr.mxu0 0.0
        %1972 = vmatpush1.msra.mxu0 0.0
        %1973 = vmatprep.subr.mxu0 0.0
        %1974 = vmatpush1.msra.mxu0 0.0
        %1975 = vmatprep.subr.mxu0 0.0
        %1976 = vmatpush1.msra.mxu0 0.0
        %1977 = vmatprep.subr.mxu0 0.0
        %1978 = vmatpush1.msra.mxu0 0.0
        %1979 = vmatprep.subr.mxu0 0.0
        %1980 = vmatpush1.msra.mxu0 0.0
        %1981 = vmatprep.subr.mxu0 0.0
        %1982 = vmatpush1.msra.mxu0 0.0
        %1983 = vmatprep.subr.mxu0 0.0
        %1984 = vmatpush1.msra.mxu0 0.0
        %1985 = vmatprep.subr.mxu0 0.0
        %1986 = vmatpush1.msra.mxu0 0.0
        %1987 = vmatprep.subr.mxu0 0.0
        %1988 = vmatpush1.msra.mxu0 0.0
        %1989 = vmatprep.subr.mxu0 0.0
        %1990 = vmatpush1.msra.mxu0 0.0
        %1991 = vmatprep.subr.mxu0 0.0
        %1992 = vmatpush1.msra.mxu0 0.0
        %1993 = vmatprep.subr.mxu0 0.0
        %1994 = vmatpush1.msra.mxu0 0.0
        %1995 = vmatprep.subr.mxu0 0.0
        %1996 = vmatpush1.msra.mxu0 %v1287
        %1997 = vmatprep.subr.mxu0 0.0
        %1998 = vmatpush1.msra.mxu0 %v1286
        %1999 = vmatprep.subr.mxu0 0.0
        %2000 = vmatpush1.msra.mxu0 %v1285
        %2001 = vmatprep.subr.mxu0 0.0
        %2002 = vmatpush1.msra.mxu0 %v1284
        %2003 = vmatprep.subr.mxu0 0.0
        %2004 = vmatpush2.msra.mxu0 0.0
        %2005 = vmatprep.subr.mxu0 0.0
        %2006 = vmatpush2.msra.mxu0 0.0
        %2007 = vmatprep.subr.mxu0 0.0
        %2008 = vmatpush2.msra.mxu0 0.0
        %2009 = vmatprep.subr.mxu0 0.0
        %2010 = vmatpush2.msra.mxu0 0.0
        %2011 = vmatprep.subr.mxu0 0.0
        %2012 = vmatpush2.msra.mxu0 0.0
        %2013 = vmatprep.subr.mxu0 0.0
        %2014 = vmatpush2.msra.mxu0 0.0
        %2015 = vmatprep.subr.mxu0 0.0
        %2016 = vmatpush2.msra.mxu0 0.0
        %2017 = vmatprep.subr.mxu0 0.0
        %2018 = vmatpush2.msra.mxu0 0.0
        %2019 = vmatprep.subr.mxu0 0.0
        %2020 = vmatpush2.msra.mxu0 0.0
        %2021 = vmatprep.subr.mxu0 0.0
        %2022 = vmatpush2.msra.mxu0 0.0
        %2023 = vmatprep.subr.mxu0 0.0
        %2024 = vmatpush2.msra.mxu0 0.0
        %2025 = vmatprep.subr.mxu0 0.0
        %2026 = vmatpush2.msra.mxu0 0.0
        %2027 = vmatprep.subr.mxu0 0.0
        %2028 = vmatpush2.msra.mxu0 0.0
        %2029 = vmatprep.subr.mxu0 0.0
        %2030 = vmatpush2.msra.mxu0 0.0
        %2031 = vmatprep.subr.mxu0 0.0
        %2032 = vmatpush2.msra.mxu0 0.0
        %2033 = vmatprep.subr.mxu0 0.0
        %2034 = vmatpush2.msra.mxu0 0.0
        %2035 = vmatprep.mubr.f32.mxu0 0.0
        %2036 = vmatmul.mubr.f32.gmra.mxu0 %v1960
        %v2037 = vpop.f32.mrf.mxu0
        %v2038 = vadd.f32 0.0, %v2037
        %v2039 = vpop.f32.mrf.mxu0
        %2040 = vmatprep.mubr.f32.mxu0 0.0
        %2041 = vmatmul.mubr.f32.gmra.mxu0 %v1963
        %v2042 = vpop.f32.mrf.mxu0
        %v2043 = vadd.f32 0.0, %v2042
        %v2044 = vpop.f32.mrf.mxu0
        %2045 = vmatprep.mubr.f32.mxu0 0.0
        %2046 = vmatmul.mubr.f32.gmra.mxu0 %v1966
        %v2047 = vpop.f32.mrf.mxu0
        %v2048 = vadd.f32 0.0, %v2047
        %v2049 = vpop.f32.mrf.mxu0
        %2050 = vmatprep.mubr.f32.mxu0 0.0
        %2051 = vmatmul.mubr.f32.gmra.mxu0 %v1969
        %v2052 = vpop.f32.mrf.mxu0
        %v2053 = vadd.f32 0.0, %v2052
        %v2054 = vpop.f32.mrf.mxu0
        %2055 = vdwg.mxu0
        %v2056 = vadd.f32 %v711, %v1941
        %v2057 = vadd.f32 %v712, %v1946
        %v2058 = vadd.f32 %v713, %v1951
        %v2059 = vadd.f32 %v714, %v1956
        %v2060 = vadd.f32 %v711, %v2038
        %v2061 = vadd.f32 %v712, %v2043
        %v2062 = vadd.f32 %v713, %v2048
        %v2063 = vadd.f32 %v714, %v2053
        %v2065 = vsel %vm759, %v1854, 0
        %v2068 = vsel %vm759, %v1855, 0
        %v2071 = vsel %vm759, %v1856, 0
        %v2074 = vsel %vm759, %v1857, 0
        %2076 = vmatprep.subr.mxu0 0.0
        %2077 = vmatpush1.msra.mxu0 0.0
        %2078 = vmatprep.subr.mxu0 0.0
        %2079 = vmatpush1.msra.mxu0 0.0
        %2080 = vmatprep.subr.mxu0 0.0
        %2081 = vmatpush1.msra.mxu0 0.0
        %2082 = vmatprep.subr.mxu0 0.0
        %2083 = vmatpush1.msra.mxu0 0.0
        %2084 = vmatprep.subr.mxu0 0.0
        %2085 = vmatpush1.msra.mxu0 0.0
        %2086 = vmatprep.subr.mxu0 0.0
        %2087 = vmatpush1.msra.mxu0 0.0
        %2088 = vmatprep.subr.mxu0 0.0
        %2089 = vmatpush1.msra.mxu0 0.0
        %2090 = vmatprep.subr.mxu0 0.0
        %2091 = vmatpush1.msra.mxu0 0.0
        %2092 = vmatprep.subr.mxu0 0.0
        %2093 = vmatpush1.msra.mxu0 0.0
        %2094 = vmatprep.subr.mxu0 0.0
        %2095 = vmatpush1.msra.mxu0 0.0
        %2096 = vmatprep.subr.mxu0 0.0
        %2097 = vmatpush1.msra.mxu0 0.0
        %2098 = vmatprep.subr.mxu0 0.0
        %2099 = vmatpush1.msra.mxu0 0.0
        %2100 = vmatprep.subr.mxu0 0.0
        %2101 = vmatpush1.msra.mxu0 %v2059
        %2102 = vmatprep.subr.mxu0 0.0
        %2103 = vmatpush1.msra.mxu0 %v2058
        %2104 = vmatprep.subr.mxu0 0.0
        %2105 = vmatpush1.msra.mxu0 %v2057
        %2106 = vmatprep.subr.mxu0 0.0
        %2107 = vmatpush1.msra.mxu0 %v2056
        %2108 = vmatprep.subr.mxu0 0.0
        %2109 = vmatpush2.msra.mxu0 0.0
        %2110 = vmatprep.subr.mxu0 0.0
        %2111 = vmatpush2.msra.mxu0 0.0
        %2112 = vmatprep.subr.mxu0 0.0
        %2113 = vmatpush2.msra.mxu0 0.0
        %2114 = vmatprep.subr.mxu0 0.0
        %2115 = vmatpush2.msra.mxu0 0.0
        %2116 = vmatprep.subr.mxu0 0.0
        %2117 = vmatpush2.msra.mxu0 0.0
        %2118 = vmatprep.subr.mxu0 0.0
        %2119 = vmatpush2.msra.mxu0 0.0
        %2120 = vmatprep.subr.mxu0 0.0
        %2121 = vmatpush2.msra.mxu0 0.0
        %2122 = vmatprep.subr.mxu0 0.0
        %2123 = vmatpush2.msra.mxu0 0.0
        %2124 = vmatprep.subr.mxu0 0.0
        %2125 = vmatpush2.msra.mxu0 0.0
        %2126 = vmatprep.subr.mxu0 0.0
        %2127 = vmatpush2.msra.mxu0 0.0
        %2128 = vmatprep.subr.mxu0 0.0
        %2129 = vmatpush2.msra.mxu0 0.0
        %2130 = vmatprep.subr.mxu0 0.0
        %2131 = vmatpush2.msra.mxu0 0.0
        %2132 = vmatprep.subr.mxu0 0.0
        %2133 = vmatpush2.msra.mxu0 0.0
        %2134 = vmatprep.subr.mxu0 0.0
        %2135 = vmatpush2.msra.mxu0 0.0
        %2136 = vmatprep.subr.mxu0 0.0
        %2137 = vmatpush2.msra.mxu0 0.0
        %2138 = vmatprep.subr.mxu0 0.0
        %2139 = vmatpush2.msra.mxu0 0.0
        %2140 = vmatprep.mubr.f32.mxu0 0.0
        %2141 = vmatmul.mubr.f32.gmra.mxu0 %v2065
        %v2142 = vpop.f32.mrf.mxu0
        %v2143 = vadd.f32 0.0, %v2142
        %v2144 = vpop.f32.mrf.mxu0
        %2145 = vmatprep.mubr.f32.mxu0 0.0
        %2146 = vmatmul.mubr.f32.gmra.mxu0 %v2068
        %v2147 = vpop.f32.mrf.mxu0
        %v2148 = vadd.f32 0.0, %v2147
        %v2149 = vpop.f32.mrf.mxu0
        %2150 = vmatprep.mubr.f32.mxu0 0.0
        %2151 = vmatmul.mubr.f32.gmra.mxu0 %v2071
        %v2152 = vpop.f32.mrf.mxu0
        %v2153 = vadd.f32 0.0, %v2152
        %v2154 = vpop.f32.mrf.mxu0
        %2155 = vmatprep.mubr.f32.mxu0 0.0
        %2156 = vmatmul.mubr.f32.gmra.mxu0 %v2074
        %v2157 = vpop.f32.mrf.mxu0
        %v2158 = vadd.f32 0.0, %v2157
        %v2159 = vpop.f32.mrf.mxu0
        %2160 = vdwg.mxu0
        %v2162 = vsel %vm759, %v1858, 0
        %v2165 = vsel %vm759, %v1859, 0
        %v2168 = vsel %vm759, %v1860, 0
        %v2171 = vsel %vm759, %v1861, 0
        %2173 = vmatprep.subr.mxu0 0.0
        %2174 = vmatpush1.msra.mxu0 0.0
        %2175 = vmatprep.subr.mxu0 0.0
        %2176 = vmatpush1.msra.mxu0 0.0
        %2177 = vmatprep.subr.mxu0 0.0
        %2178 = vmatpush1.msra.mxu0 0.0
        %2179 = vmatprep.subr.mxu0 0.0
        %2180 = vmatpush1.msra.mxu0 0.0
        %2181 = vmatprep.subr.mxu0 0.0
        %2182 = vmatpush1.msra.mxu0 0.0
        %2183 = vmatprep.subr.mxu0 0.0
        %2184 = vmatpush1.msra.mxu0 0.0
        %2185 = vmatprep.subr.mxu0 0.0
        %2186 = vmatpush1.msra.mxu0 0.0
        %2187 = vmatprep.subr.mxu0 0.0
        %2188 = vmatpush1.msra.mxu0 0.0
        %2189 = vmatprep.subr.mxu0 0.0
        %2190 = vmatpush1.msra.mxu0 0.0
        %2191 = vmatprep.subr.mxu0 0.0
        %2192 = vmatpush1.msra.mxu0 0.0
        %2193 = vmatprep.subr.mxu0 0.0
        %2194 = vmatpush1.msra.mxu0 0.0
        %2195 = vmatprep.subr.mxu0 0.0
        %2196 = vmatpush1.msra.mxu0 0.0
        %2197 = vmatprep.subr.mxu0 0.0
        %2198 = vmatpush1.msra.mxu0 %v2063
        %2199 = vmatprep.subr.mxu0 0.0
        %2200 = vmatpush1.msra.mxu0 %v2062
        %2201 = vmatprep.subr.mxu0 0.0
        %2202 = vmatpush1.msra.mxu0 %v2061
        %2203 = vmatprep.subr.mxu0 0.0
        %2204 = vmatpush1.msra.mxu0 %v2060
        %2205 = vmatprep.subr.mxu0 0.0
        %2206 = vmatpush2.msra.mxu0 0.0
        %2207 = vmatprep.subr.mxu0 0.0
        %2208 = vmatpush2.msra.mxu0 0.0
        %2209 = vmatprep.subr.mxu0 0.0
        %2210 = vmatpush2.msra.mxu0 0.0
        %2211 = vmatprep.subr.mxu0 0.0
        %2212 = vmatpush2.msra.mxu0 0.0
        %2213 = vmatprep.subr.mxu0 0.0
        %2214 = vmatpush2.msra.mxu0 0.0
        %2215 = vmatprep.subr.mxu0 0.0
        %2216 = vmatpush2.msra.mxu0 0.0
        %2217 = vmatprep.subr.mxu0 0.0
        %2218 = vmatpush2.msra.mxu0 0.0
        %2219 = vmatprep.subr.mxu0 0.0
        %2220 = vmatpush2.msra.mxu0 0.0
        %2221 = vmatprep.subr.mxu0 0.0
        %2222 = vmatpush2.msra.mxu0 0.0
        %2223 = vmatprep.subr.mxu0 0.0
        %2224 = vmatpush2.msra.mxu0 0.0
        %2225 = vmatprep.subr.mxu0 0.0
        %2226 = vmatpush2.msra.mxu0 0.0
        %2227 = vmatprep.subr.mxu0 0.0
        %2228 = vmatpush2.msra.mxu0 0.0
        %2229 = vmatprep.subr.mxu0 0.0
        %2230 = vmatpush2.msra.mxu0 0.0
        %2231 = vmatprep.subr.mxu0 0.0
        %2232 = vmatpush2.msra.mxu0 0.0
        %2233 = vmatprep.subr.mxu0 0.0
        %2234 = vmatpush2.msra.mxu0 0.0
        %2235 = vmatprep.subr.mxu0 0.0
        %2236 = vmatpush2.msra.mxu0 0.0
        %2237 = vmatprep.mubr.f32.mxu0 0.0
        %2238 = vmatmul.mubr.f32.gmra.mxu0 %v2162
        %v2239 = vpop.f32.mrf.mxu0
        %v2240 = vadd.f32 0.0, %v2239
        %v2241 = vpop.f32.mrf.mxu0
        %2242 = vmatprep.mubr.f32.mxu0 0.0
        %2243 = vmatmul.mubr.f32.gmra.mxu0 %v2165
        %v2244 = vpop.f32.mrf.mxu0
        %v2245 = vadd.f32 0.0, %v2244
        %v2246 = vpop.f32.mrf.mxu0
        %2247 = vmatprep.mubr.f32.mxu0 0.0
        %2248 = vmatmul.mubr.f32.gmra.mxu0 %v2168
        %v2249 = vpop.f32.mrf.mxu0
        %v2250 = vadd.f32 0.0, %v2249
        %v2251 = vpop.f32.mrf.mxu0
        %2252 = vmatprep.mubr.f32.mxu0 0.0
        %2253 = vmatmul.mubr.f32.gmra.mxu0 %v2171
        %v2254 = vpop.f32.mrf.mxu0
        %v2255 = vadd.f32 0.0, %v2254
        %v2256 = vpop.f32.mrf.mxu0
        %2257 = vdwg.mxu0
        %v2259 = vsel %vm759, %v1941, 0
        %v2262 = vsel %vm759, %v1946, 0
        %v2265 = vsel %vm759, %v1951, 0
        %v2268 = vsel %vm759, %v1956, 0
        %2270 = vmatprep.subr.mxu0 0.0
        %2271 = vmatpush1.msra.mxu0 0.0
        %2272 = vmatprep.subr.mxu0 0.0
        %2273 = vmatpush1.msra.mxu0 0.0
        %2274 = vmatprep.subr.mxu0 0.0
        %2275 = vmatpush1.msra.mxu0 0.0
        %2276 = vmatprep.subr.mxu0 0.0
        %2277 = vmatpush1.msra.mxu0 0.0
        %2278 = vmatprep.subr.mxu0 0.0
        %2279 = vmatpush1.msra.mxu0 0.0
        %2280 = vmatprep.subr.mxu0 0.0
        %2281 = vmatpush1.msra.mxu0 0.0
        %2282 = vmatprep.subr.mxu0 0.0
        %2283 = vmatpush1.msra.mxu0 0.0
        %2284 = vmatprep.subr.mxu0 0.0
        %2285 = vmatpush1.msra.mxu0 0.0
        %2286 = vmatprep.subr.mxu0 0.0
        %2287 = vmatpush1.msra.mxu0 0.0
        %2288 = vmatprep.subr.mxu0 0.0
        %2289 = vmatpush1.msra.mxu0 0.0
        %2290 = vmatprep.subr.mxu0 0.0
        %2291 = vmatpush1.msra.mxu0 0.0
        %2292 = vmatprep.subr.mxu0 0.0
        %2293 = vmatpush1.msra.mxu0 0.0
        %2294 = vmatprep.subr.mxu0 0.0
        %2295 = vmatpush1.msra.mxu0 %v1956
        %2296 = vmatprep.subr.mxu0 0.0
        %2297 = vmatpush1.msra.mxu0 %v1951
        %2298 = vmatprep.subr.mxu0 0.0
        %2299 = vmatpush1.msra.mxu0 %v1946
        %2300 = vmatprep.subr.mxu0 0.0
        %2301 = vmatpush1.msra.mxu0 %v1941
        %2302 = vmatprep.subr.mxu0 0.0
        %2303 = vmatpush2.msra.mxu0 0.0
        %2304 = vmatprep.subr.mxu0 0.0
        %2305 = vmatpush2.msra.mxu0 0.0
        %2306 = vmatprep.subr.mxu0 0.0
        %2307 = vmatpush2.msra.mxu0 0.0
        %2308 = vmatprep.subr.mxu0 0.0
        %2309 = vmatpush2.msra.mxu0 0.0
        %2310 = vmatprep.subr.mxu0 0.0
        %2311 = vmatpush2.msra.mxu0 0.0
        %2312 = vmatprep.subr.mxu0 0.0
        %2313 = vmatpush2.msra.mxu0 0.0
        %2314 = vmatprep.subr.mxu0 0.0
        %2315 = vmatpush2.msra.mxu0 0.0
        %2316 = vmatprep.subr.mxu0 0.0
        %2317 = vmatpush2.msra.mxu0 0.0
        %2318 = vmatprep.subr.mxu0 0.0
        %2319 = vmatpush2.msra.mxu0 0.0
        %2320 = vmatprep.subr.mxu0 0.0
        %2321 = vmatpush2.msra.mxu0 0.0
        %2322 = vmatprep.subr.mxu0 0.0
        %2323 = vmatpush2.msra.mxu0 0.0
        %2324 = vmatprep.subr.mxu0 0.0
        %2325 = vmatpush2.msra.mxu0 0.0
        %2326 = vmatprep.subr.mxu0 0.0
        %2327 = vmatpush2.msra.mxu0 0.0
        %2328 = vmatprep.subr.mxu0 0.0
        %2329 = vmatpush2.msra.mxu0 0.0
        %2330 = vmatprep.subr.mxu0 0.0
        %2331 = vmatpush2.msra.mxu0 0.0
        %2332 = vmatprep.subr.mxu0 0.0
        %2333 = vmatpush2.msra.mxu0 0.0
        %2334 = vmatprep.mubr.f32.mxu0 0.0
        %2335 = vmatmul.mubr.f32.gmra.mxu0 %v2259
        %v2336 = vpop.f32.mrf.mxu0
        %v2337 = vadd.f32 0.0, %v2336
        %v2338 = vpop.f32.mrf.mxu0
        %2339 = vmatprep.mubr.f32.mxu0 0.0
        %2340 = vmatmul.mubr.f32.gmra.mxu0 %v2262
        %v2341 = vpop.f32.mrf.mxu0
        %v2342 = vadd.f32 0.0, %v2341
        %v2343 = vpop.f32.mrf.mxu0
        %2344 = vmatprep.mubr.f32.mxu0 0.0
        %2345 = vmatmul.mubr.f32.gmra.mxu0 %v2265
        %v2346 = vpop.f32.mrf.mxu0
        %v2347 = vadd.f32 0.0, %v2346
        %v2348 = vpop.f32.mrf.mxu0
        %2349 = vmatprep.mubr.f32.mxu0 0.0
        %2350 = vmatmul.mubr.f32.gmra.mxu0 %v2268
        %v2351 = vpop.f32.mrf.mxu0
        %v2352 = vadd.f32 0.0, %v2351
        %v2353 = vpop.f32.mrf.mxu0
        %2354 = vdwg.mxu0
        %v2356 = vsel %vm759, %v2038, 0
        %v2359 = vsel %vm759, %v2043, 0
        %v2362 = vsel %vm759, %v2048, 0
        %v2365 = vsel %vm759, %v2053, 0
        %2367 = vmatprep.subr.mxu0 0.0
        %2368 = vmatpush1.msra.mxu0 0.0
        %2369 = vmatprep.subr.mxu0 0.0
        %2370 = vmatpush1.msra.mxu0 0.0
        %2371 = vmatprep.subr.mxu0 0.0
        %2372 = vmatpush1.msra.mxu0 0.0
        %2373 = vmatprep.subr.mxu0 0.0
        %2374 = vmatpush1.msra.mxu0 0.0
        %2375 = vmatprep.subr.mxu0 0.0
        %2376 = vmatpush1.msra.mxu0 0.0
        %2377 = vmatprep.subr.mxu0 0.0
        %2378 = vmatpush1.msra.mxu0 0.0
        %2379 = vmatprep.subr.mxu0 0.0
        %2380 = vmatpush1.msra.mxu0 0.0
        %2381 = vmatprep.subr.mxu0 0.0
        %2382 = vmatpush1.msra.mxu0 0.0
        %2383 = vmatprep.subr.mxu0 0.0
        %2384 = vmatpush1.msra.mxu0 0.0
        %2385 = vmatprep.subr.mxu0 0.0
        %2386 = vmatpush1.msra.mxu0 0.0
        %2387 = vmatprep.subr.mxu0 0.0
        %2388 = vmatpush1.msra.mxu0 0.0
        %2389 = vmatprep.subr.mxu0 0.0
        %2390 = vmatpush1.msra.mxu0 0.0
        %2391 = vmatprep.subr.mxu0 0.0
        %2392 = vmatpush1.msra.mxu0 %v2053
        %2393 = vmatprep.subr.mxu0 0.0
        %2394 = vmatpush1.msra.mxu0 %v2048
        %2395 = vmatprep.subr.mxu0 0.0
        %2396 = vmatpush1.msra.mxu0 %v2043
        %2397 = vmatprep.subr.mxu0 0.0
        %2398 = vmatpush1.msra.mxu0 %v2038
        %2399 = vmatprep.subr.mxu0 0.0
        %2400 = vmatpush2.msra.mxu0 0.0
        %2401 = vmatprep.subr.mxu0 0.0
        %2402 = vmatpush2.msra.mxu0 0.0
        %2403 = vmatprep.subr.mxu0 0.0
        %2404 = vmatpush2.msra.mxu0 0.0
        %2405 = vmatprep.subr.mxu0 0.0
        %2406 = vmatpush2.msra.mxu0 0.0
        %2407 = vmatprep.subr.mxu0 0.0
        %2408 = vmatpush2.msra.mxu0 0.0
        %2409 = vmatprep.subr.mxu0 0.0
        %2410 = vmatpush2.msra.mxu0 0.0
        %2411 = vmatprep.subr.mxu0 0.0
        %2412 = vmatpush2.msra.mxu0 0.0
        %2413 = vmatprep.subr.mxu0 0.0
        %2414 = vmatpush2.msra.mxu0 0.0
        %2415 = vmatprep.subr.mxu0 0.0
        %2416 = vmatpush2.msra.mxu0 0.0
        %2417 = vmatprep.subr.mxu0 0.0
        %2418 = vmatpush2.msra.mxu0 0.0
        %2419 = vmatprep.subr.mxu0 0.0
        %2420 = vmatpush2.msra.mxu0 0.0
        %2421 = vmatprep.subr.mxu0 0.0
        %2422 = vmatpush2.msra.mxu0 0.0
        %2423 = vmatprep.subr.mxu0 0.0
        %2424 = vmatpush2.msra.mxu0 0.0
        %2425 = vmatprep.subr.mxu0 0.0
        %2426 = vmatpush2.msra.mxu0 0.0
        %2427 = vmatprep.subr.mxu0 0.0
        %2428 = vmatpush2.msra.mxu0 0.0
        %2429 = vmatprep.subr.mxu0 0.0
        %2430 = vmatpush2.msra.mxu0 0.0
        %2431 = vmatprep.mubr.f32.mxu0 0.0
        %2432 = vmatmul.mubr.f32.gmra.mxu0 %v2356
        %v2433 = vpop.f32.mrf.mxu0
        %v2434 = vadd.f32 0.0, %v2433
        %v2435 = vpop.f32.mrf.mxu0
        %2436 = vmatprep.mubr.f32.mxu0 0.0
        %2437 = vmatmul.mubr.f32.gmra.mxu0 %v2359
        %v2438 = vpop.f32.mrf.mxu0
        %v2439 = vadd.f32 0.0, %v2438
        %v2440 = vpop.f32.mrf.mxu0
        %2441 = vmatprep.mubr.f32.mxu0 0.0
        %2442 = vmatmul.mubr.f32.gmra.mxu0 %v2362
        %v2443 = vpop.f32.mrf.mxu0
        %v2444 = vadd.f32 0.0, %v2443
        %v2445 = vpop.f32.mrf.mxu0
        %2446 = vmatprep.mubr.f32.mxu0 0.0
        %2447 = vmatmul.mubr.f32.gmra.mxu0 %v2365
        %v2448 = vpop.f32.mrf.mxu0
        %v2449 = vadd.f32 0.0, %v2448
        %v2450 = vpop.f32.mrf.mxu0
        %2451 = vdwg.mxu0
        %v2452 = vadd.f32 %v711, %v2337
        %v2453 = vadd.f32 %v712, %v2342
        %v2454 = vadd.f32 %v713, %v2347
        %v2455 = vadd.f32 %v714, %v2352
        %v2456 = vadd.f32 %v711, %v2434
        %v2457 = vadd.f32 %v712, %v2439
        %v2458 = vadd.f32 %v713, %v2444
        %v2459 = vadd.f32 %v714, %v2449
        %v2461 = vsel %vm759, %v2143, 0
        %v2464 = vsel %vm759, %v2148, 0
        %v2467 = vsel %vm759, %v2153, 0
        %v2470 = vsel %vm759, %v2158, 0
        %2472 = vmatprep.subr.mxu0 0.0
        %2473 = vmatpush1.msra.mxu0 0.0
        %2474 = vmatprep.subr.mxu0 0.0
        %2475 = vmatpush1.msra.mxu0 0.0
        %2476 = vmatprep.subr.mxu0 0.0
        %2477 = vmatpush1.msra.mxu0 0.0
        %2478 = vmatprep.subr.mxu0 0.0
        %2479 = vmatpush1.msra.mxu0 0.0
        %2480 = vmatprep.subr.mxu0 0.0
        %2481 = vmatpush1.msra.mxu0 0.0
        %2482 = vmatprep.subr.mxu0 0.0
        %2483 = vmatpush1.msra.mxu0 0.0
        %2484 = vmatprep.subr.mxu0 0.0
        %2485 = vmatpush1.msra.mxu0 0.0
        %2486 = vmatprep.subr.mxu0 0.0
        %2487 = vmatpush1.msra.mxu0 0.0
        %2488 = vmatprep.subr.mxu0 0.0
        %2489 = vmatpush1.msra.mxu0 0.0
        %2490 = vmatprep.subr.mxu0 0.0
        %2491 = vmatpush1.msra.mxu0 0.0
        %2492 = vmatprep.subr.mxu0 0.0
        %2493 = vmatpush1.msra.mxu0 0.0
        %2494 = vmatprep.subr.mxu0 0.0
        %2495 = vmatpush1.msra.mxu0 0.0
        %2496 = vmatprep.subr.mxu0 0.0
        %2497 = vmatpush1.msra.mxu0 %v2455
        %2498 = vmatprep.subr.mxu0 0.0
        %2499 = vmatpush1.msra.mxu0 %v2454
        %2500 = vmatprep.subr.mxu0 0.0
        %2501 = vmatpush1.msra.mxu0 %v2453
        %2502 = vmatprep.subr.mxu0 0.0
        %2503 = vmatpush1.msra.mxu0 %v2452
        %2504 = vmatprep.subr.mxu0 0.0
        %2505 = vmatpush2.msra.mxu0 0.0
        %2506 = vmatprep.subr.mxu0 0.0
        %2507 = vmatpush2.msra.mxu0 0.0
        %2508 = vmatprep.subr.mxu0 0.0
        %2509 = vmatpush2.msra.mxu0 0.0
        %2510 = vmatprep.subr.mxu0 0.0
        %2511 = vmatpush2.msra.mxu0 0.0
        %2512 = vmatprep.subr.mxu0 0.0
        %2513 = vmatpush2.msra.mxu0 0.0
        %2514 = vmatprep.subr.mxu0 0.0
        %2515 = vmatpush2.msra.mxu0 0.0
        %2516 = vmatprep.subr.mxu0 0.0
        %2517 = vmatpush2.msra.mxu0 0.0
        %2518 = vmatprep.subr.mxu0 0.0
        %2519 = vmatpush2.msra.mxu0 0.0
        %2520 = vmatprep.subr.mxu0 0.0
        %2521 = vmatpush2.msra.mxu0 0.0
        %2522 = vmatprep.subr.mxu0 0.0
        %2523 = vmatpush2.msra.mxu0 0.0
        %2524 = vmatprep.subr.mxu0 0.0
        %2525 = vmatpush2.msra.mxu0 0.0
        %2526 = vmatprep.subr.mxu0 0.0
        %2527 = vmatpush2.msra.mxu0 0.0
        %2528 = vmatprep.subr.mxu0 0.0
        %2529 = vmatpush2.msra.mxu0 0.0
        %2530 = vmatprep.subr.mxu0 0.0
        %2531 = vmatpush2.msra.mxu0 0.0
        %2532 = vmatprep.subr.mxu0 0.0
        %2533 = vmatpush2.msra.mxu0 0.0
        %2534 = vmatprep.subr.mxu0 0.0
        %2535 = vmatpush2.msra.mxu0 0.0
        %2536 = vmatprep.mubr.f32.mxu0 0.0
        %2537 = vmatmul.mubr.f32.gmra.mxu0 %v2461
        %v2538 = vpop.f32.mrf.mxu0
        %v2539 = vadd.f32 0.0, %v2538
        %v2540 = vpop.f32.mrf.mxu0
        %2541 = vmatprep.mubr.f32.mxu0 0.0
        %2542 = vmatmul.mubr.f32.gmra.mxu0 %v2464
        %v2543 = vpop.f32.mrf.mxu0
        %v2544 = vadd.f32 0.0, %v2543
        %v2545 = vpop.f32.mrf.mxu0
        %2546 = vmatprep.mubr.f32.mxu0 0.0
        %2547 = vmatmul.mubr.f32.gmra.mxu0 %v2467
        %v2548 = vpop.f32.mrf.mxu0
        %v2549 = vadd.f32 0.0, %v2548
        %v2550 = vpop.f32.mrf.mxu0
        %2551 = vmatprep.mubr.f32.mxu0 0.0
        %2552 = vmatmul.mubr.f32.gmra.mxu0 %v2470
        %v2553 = vpop.f32.mrf.mxu0
        %v2554 = vadd.f32 0.0, %v2553
        %v2555 = vpop.f32.mrf.mxu0
        %2556 = vdwg.mxu0
        %v2558 = vsel %vm759, %v2240, 0
        %v2561 = vsel %vm759, %v2245, 0
        %v2564 = vsel %vm759, %v2250, 0
        %v2567 = vsel %vm759, %v2255, 0
        %2569 = vmatprep.subr.mxu0 0.0
        %2570 = vmatpush1.msra.mxu0 0.0
        %2571 = vmatprep.subr.mxu0 0.0
        %2572 = vmatpush1.msra.mxu0 0.0
        %2573 = vmatprep.subr.mxu0 0.0
        %2574 = vmatpush1.msra.mxu0 0.0
        %2575 = vmatprep.subr.mxu0 0.0
        %2576 = vmatpush1.msra.mxu0 0.0
        %2577 = vmatprep.subr.mxu0 0.0
        %2578 = vmatpush1.msra.mxu0 0.0
        %2579 = vmatprep.subr.mxu0 0.0
        %2580 = vmatpush1.msra.mxu0 0.0
        %2581 = vmatprep.subr.mxu0 0.0
        %2582 = vmatpush1.msra.mxu0 0.0
        %2583 = vmatprep.subr.mxu0 0.0
        %2584 = vmatpush1.msra.mxu0 0.0
        %2585 = vmatprep.subr.mxu0 0.0
        %2586 = vmatpush1.msra.mxu0 0.0
        %2587 = vmatprep.subr.mxu0 0.0
        %2588 = vmatpush1.msra.mxu0 0.0
        %2589 = vmatprep.subr.mxu0 0.0
        %2590 = vmatpush1.msra.mxu0 0.0
        %2591 = vmatprep.subr.mxu0 0.0
        %2592 = vmatpush1.msra.mxu0 0.0
        %2593 = vmatprep.subr.mxu0 0.0
        %2594 = vmatpush1.msra.mxu0 %v2459
        %2595 = vmatprep.subr.mxu0 0.0
        %2596 = vmatpush1.msra.mxu0 %v2458
        %2597 = vmatprep.subr.mxu0 0.0
        %2598 = vmatpush1.msra.mxu0 %v2457
        %2599 = vmatprep.subr.mxu0 0.0
        %2600 = vmatpush1.msra.mxu0 %v2456
        %2601 = vmatprep.subr.mxu0 0.0
        %2602 = vmatpush2.msra.mxu0 0.0
        %2603 = vmatprep.subr.mxu0 0.0
        %2604 = vmatpush2.msra.mxu0 0.0
        %2605 = vmatprep.subr.mxu0 0.0
        %2606 = vmatpush2.msra.mxu0 0.0
        %2607 = vmatprep.subr.mxu0 0.0
        %2608 = vmatpush2.msra.mxu0 0.0
        %2609 = vmatprep.subr.mxu0 0.0
        %2610 = vmatpush2.msra.mxu0 0.0
        %2611 = vmatprep.subr.mxu0 0.0
        %2612 = vmatpush2.msra.mxu0 0.0
        %2613 = vmatprep.subr.mxu0 0.0
        %2614 = vmatpush2.msra.mxu0 0.0
        %2615 = vmatprep.subr.mxu0 0.0
        %2616 = vmatpush2.msra.mxu0 0.0
        %2617 = vmatprep.subr.mxu0 0.0
        %2618 = vmatpush2.msra.mxu0 0.0
        %2619 = vmatprep.subr.mxu0 0.0
        %2620 = vmatpush2.msra.mxu0 0.0
        %2621 = vmatprep.subr.mxu0 0.0
        %2622 = vmatpush2.msra.mxu0 0.0
        %2623 = vmatprep.subr.mxu0 0.0
        %2624 = vmatpush2.msra.mxu0 0.0
        %2625 = vmatprep.subr.mxu0 0.0
        %2626 = vmatpush2.msra.mxu0 0.0
        %2627 = vmatprep.subr.mxu0 0.0
        %2628 = vmatpush2.msra.mxu0 0.0
        %2629 = vmatprep.subr.mxu0 0.0
        %2630 = vmatpush2.msra.mxu0 0.0
        %2631 = vmatprep.subr.mxu0 0.0
        %2632 = vmatpush2.msra.mxu0 0.0
        %2633 = vmatprep.mubr.f32.mxu0 0.0
        %2634 = vmatmul.mubr.f32.gmra.mxu0 %v2558
        %v2635 = vpop.f32.mrf.mxu0
        %v2636 = vadd.f32 0.0, %v2635
        %v2637 = vpop.f32.mrf.mxu0
        %2638 = vmatprep.mubr.f32.mxu0 0.0
        %2639 = vmatmul.mubr.f32.gmra.mxu0 %v2561
        %v2640 = vpop.f32.mrf.mxu0
        %v2641 = vadd.f32 0.0, %v2640
        %v2642 = vpop.f32.mrf.mxu0
        %2643 = vmatprep.mubr.f32.mxu0 0.0
        %2644 = vmatmul.mubr.f32.gmra.mxu0 %v2564
        %v2645 = vpop.f32.mrf.mxu0
        %v2646 = vadd.f32 0.0, %v2645
        %v2647 = vpop.f32.mrf.mxu0
        %2648 = vmatprep.mubr.f32.mxu0 0.0
        %2649 = vmatmul.mubr.f32.gmra.mxu0 %v2567
        %v2650 = vpop.f32.mrf.mxu0
        %v2651 = vadd.f32 0.0, %v2650
        %v2652 = vpop.f32.mrf.mxu0
        %2653 = vdwg.mxu0
        %v2655 = vsel %vm759, %v2337, 0
        %v2658 = vsel %vm759, %v2342, 0
        %v2661 = vsel %vm759, %v2347, 0
        %v2664 = vsel %vm759, %v2352, 0
        %2666 = vmatprep.subr.mxu0 0.0
        %2667 = vmatpush1.msra.mxu0 0.0
        %2668 = vmatprep.subr.mxu0 0.0
        %2669 = vmatpush1.msra.mxu0 0.0
        %2670 = vmatprep.subr.mxu0 0.0
        %2671 = vmatpush1.msra.mxu0 0.0
        %2672 = vmatprep.subr.mxu0 0.0
        %2673 = vmatpush1.msra.mxu0 0.0
        %2674 = vmatprep.subr.mxu0 0.0
        %2675 = vmatpush1.msra.mxu0 0.0
        %2676 = vmatprep.subr.mxu0 0.0
        %2677 = vmatpush1.msra.mxu0 0.0
        %2678 = vmatprep.subr.mxu0 0.0
        %2679 = vmatpush1.msra.mxu0 0.0
        %2680 = vmatprep.subr.mxu0 0.0
        %2681 = vmatpush1.msra.mxu0 0.0
        %2682 = vmatprep.subr.mxu0 0.0
        %2683 = vmatpush1.msra.mxu0 0.0
        %2684 = vmatprep.subr.mxu0 0.0
        %2685 = vmatpush1.msra.mxu0 0.0
        %2686 = vmatprep.subr.mxu0 0.0
        %2687 = vmatpush1.msra.mxu0 0.0
        %2688 = vmatprep.subr.mxu0 0.0
        %2689 = vmatpush1.msra.mxu0 0.0
        %2690 = vmatprep.subr.mxu0 0.0
        %2691 = vmatpush1.msra.mxu0 %v2352
        %2692 = vmatprep.subr.mxu0 0.0
        %2693 = vmatpush1.msra.mxu0 %v2347
        %2694 = vmatprep.subr.mxu0 0.0
        %2695 = vmatpush1.msra.mxu0 %v2342
        %2696 = vmatprep.subr.mxu0 0.0
        %2697 = vmatpush1.msra.mxu0 %v2337
        %2698 = vmatprep.subr.mxu0 0.0
        %2699 = vmatpush2.msra.mxu0 0.0
        %2700 = vmatprep.subr.mxu0 0.0
        %2701 = vmatpush2.msra.mxu0 0.0
        %2702 = vmatprep.subr.mxu0 0.0
        %2703 = vmatpush2.msra.mxu0 0.0
        %2704 = vmatprep.subr.mxu0 0.0
        %2705 = vmatpush2.msra.mxu0 0.0
        %2706 = vmatprep.subr.mxu0 0.0
        %2707 = vmatpush2.msra.mxu0 0.0
        %2708 = vmatprep.subr.mxu0 0.0
        %2709 = vmatpush2.msra.mxu0 0.0
        %2710 = vmatprep.subr.mxu0 0.0
        %2711 = vmatpush2.msra.mxu0 0.0
        %2712 = vmatprep.subr.mxu0 0.0
        %2713 = vmatpush2.msra.mxu0 0.0
        %2714 = vmatprep.subr.mxu0 0.0
        %2715 = vmatpush2.msra.mxu0 0.0
        %2716 = vmatprep.subr.mxu0 0.0
        %2717 = vmatpush2.msra.mxu0 0.0
        %2718 = vmatprep.subr.mxu0 0.0
        %2719 = vmatpush2.msra.mxu0 0.0
        %2720 = vmatprep.subr.mxu0 0.0
        %2721 = vmatpush2.msra.mxu0 0.0
        %2722 = vmatprep.subr.mxu0 0.0
        %2723 = vmatpush2.msra.mxu0 0.0
        %2724 = vmatprep.subr.mxu0 0.0
        %2725 = vmatpush2.msra.mxu0 0.0
        %2726 = vmatprep.subr.mxu0 0.0
        %2727 = vmatpush2.msra.mxu0 0.0
        %2728 = vmatprep.subr.mxu0 0.0
        %2729 = vmatpush2.msra.mxu0 0.0
        %2730 = vmatprep.mubr.f32.mxu0 0.0
        %2731 = vmatmul.mubr.f32.gmra.mxu0 %v2655
        %v2732 = vpop.f32.mrf.mxu0
        %v2733 = vadd.f32 0.0, %v2732
        %v2734 = vpop.f32.mrf.mxu0
        %2735 = vmatprep.mubr.f32.mxu0 0.0
        %2736 = vmatmul.mubr.f32.gmra.mxu0 %v2658
        %v2737 = vpop.f32.mrf.mxu0
        %v2738 = vadd.f32 0.0, %v2737
        %v2739 = vpop.f32.mrf.mxu0
        %2740 = vmatprep.mubr.f32.mxu0 0.0
        %2741 = vmatmul.mubr.f32.gmra.mxu0 %v2661
        %v2742 = vpop.f32.mrf.mxu0
        %v2743 = vadd.f32 0.0, %v2742
        %v2744 = vpop.f32.mrf.mxu0
        %2745 = vmatprep.mubr.f32.mxu0 0.0
        %2746 = vmatmul.mubr.f32.gmra.mxu0 %v2664
        %v2747 = vpop.f32.mrf.mxu0
        %v2748 = vadd.f32 0.0, %v2747
        %v2749 = vpop.f32.mrf.mxu0
        %2750 = vdwg.mxu0
        %v2752 = vsel %vm759, %v2434, 0
        %v2755 = vsel %vm759, %v2439, 0
        %v2758 = vsel %vm759, %v2444, 0
        %v2761 = vsel %vm759, %v2449, 0
        %2763 = vmatprep.subr.mxu0 0.0
        %2764 = vmatpush1.msra.mxu0 0.0
        %2765 = vmatprep.subr.mxu0 0.0
        %2766 = vmatpush1.msra.mxu0 0.0
        %2767 = vmatprep.subr.mxu0 0.0
        %2768 = vmatpush1.msra.mxu0 0.0
        %2769 = vmatprep.subr.mxu0 0.0
        %2770 = vmatpush1.msra.mxu0 0.0
        %2771 = vmatprep.subr.mxu0 0.0
        %2772 = vmatpush1.msra.mxu0 0.0
        %2773 = vmatprep.subr.mxu0 0.0
        %2774 = vmatpush1.msra.mxu0 0.0
        %2775 = vmatprep.subr.mxu0 0.0
        %2776 = vmatpush1.msra.mxu0 0.0
        %2777 = vmatprep.subr.mxu0 0.0
        %2778 = vmatpush1.msra.mxu0 0.0
        %2779 = vmatprep.subr.mxu0 0.0
        %2780 = vmatpush1.msra.mxu0 0.0
        %2781 = vmatprep.subr.mxu0 0.0
        %2782 = vmatpush1.msra.mxu0 0.0
        %2783 = vmatprep.subr.mxu0 0.0
        %2784 = vmatpush1.msra.mxu0 0.0
        %2785 = vmatprep.subr.mxu0 0.0
        %2786 = vmatpush1.msra.mxu0 0.0
        %2787 = vmatprep.subr.mxu0 0.0
        %2788 = vmatpush1.msra.mxu0 %v2449
        %2789 = vmatprep.subr.mxu0 0.0
        %2790 = vmatpush1.msra.mxu0 %v2444
        %2791 = vmatprep.subr.mxu0 0.0
        %2792 = vmatpush1.msra.mxu0 %v2439
        %2793 = vmatprep.subr.mxu0 0.0
        %2794 = vmatpush1.msra.mxu0 %v2434
        %2795 = vmatprep.subr.mxu0 0.0
        %2796 = vmatpush2.msra.mxu0 0.0
        %2797 = vmatprep.subr.mxu0 0.0
        %2798 = vmatpush2.msra.mxu0 0.0
        %2799 = vmatprep.subr.mxu0 0.0
        %2800 = vmatpush2.msra.mxu0 0.0
        %2801 = vmatprep.subr.mxu0 0.0
        %2802 = vmatpush2.msra.mxu0 0.0
        %2803 = vmatprep.subr.mxu0 0.0
        %2804 = vmatpush2.msra.mxu0 0.0
        %2805 = vmatprep.subr.mxu0 0.0
        %2806 = vmatpush2.msra.mxu0 0.0
        %2807 = vmatprep.subr.mxu0 0.0
        %2808 = vmatpush2.msra.mxu0 0.0
        %2809 = vmatprep.subr.mxu0 0.0
        %2810 = vmatpush2.msra.mxu0 0.0
        %2811 = vmatprep.subr.mxu0 0.0
        %2812 = vmatpush2.msra.mxu0 0.0
        %2813 = vmatprep.subr.mxu0 0.0
        %2814 = vmatpush2.msra.mxu0 0.0
        %2815 = vmatprep.subr.mxu0 0.0
        %2816 = vmatpush2.msra.mxu0 0.0
        %2817 = vmatprep.subr.mxu0 0.0
        %2818 = vmatpush2.msra.mxu0 0.0
        %2819 = vmatprep.subr.mxu0 0.0
        %2820 = vmatpush2.msra.mxu0 0.0
        %2821 = vmatprep.subr.mxu0 0.0
        %2822 = vmatpush2.msra.mxu0 0.0
        %2823 = vmatprep.subr.mxu0 0.0
        %2824 = vmatpush2.msra.mxu0 0.0
        %2825 = vmatprep.subr.mxu0 0.0
        %2826 = vmatpush2.msra.mxu0 0.0
        %2827 = vmatprep.mubr.f32.mxu0 0.0
        %2828 = vmatmul.mubr.f32.gmra.mxu0 %v2752
        %v2829 = vpop.f32.mrf.mxu0
        %v2830 = vadd.f32 0.0, %v2829
        %v2831 = vpop.f32.mrf.mxu0
        %2832 = vmatprep.mubr.f32.mxu0 0.0
        %2833 = vmatmul.mubr.f32.gmra.mxu0 %v2755
        %v2834 = vpop.f32.mrf.mxu0
        %v2835 = vadd.f32 0.0, %v2834
        %v2836 = vpop.f32.mrf.mxu0
        %2837 = vmatprep.mubr.f32.mxu0 0.0
        %2838 = vmatmul.mubr.f32.gmra.mxu0 %v2758
        %v2839 = vpop.f32.mrf.mxu0
        %v2840 = vadd.f32 0.0, %v2839
        %v2841 = vpop.f32.mrf.mxu0
        %2842 = vmatprep.mubr.f32.mxu0 0.0
        %2843 = vmatmul.mubr.f32.gmra.mxu0 %v2761
        %v2844 = vpop.f32.mrf.mxu0
        %v2845 = vadd.f32 0.0, %v2844
        %v2846 = vpop.f32.mrf.mxu0
        %2847 = vdwg.mxu0
        %v2848 = vadd.f32 %v711, %v2733
        %v2849 = vadd.f32 %v712, %v2738
        %v2850 = vadd.f32 %v713, %v2743
        %v2851 = vadd.f32 %v714, %v2748
        %v2852 = vadd.f32 %v711, %v2830
        %v2853 = vadd.f32 %v712, %v2835
        %v2854 = vadd.f32 %v713, %v2840
        %v2855 = vadd.f32 %v714, %v2845
        %v2857 = vsel %vm759, %v2539, 0
        %v2860 = vsel %vm759, %v2544, 0
        %v2863 = vsel %vm759, %v2549, 0
        %v2866 = vsel %vm759, %v2554, 0
        %2868 = vmatprep.subr.mxu0 0.0
        %2869 = vmatpush1.msra.mxu0 0.0
        %2870 = vmatprep.subr.mxu0 0.0
        %2871 = vmatpush1.msra.mxu0 0.0
        %2872 = vmatprep.subr.mxu0 0.0
        %2873 = vmatpush1.msra.mxu0 0.0
        %2874 = vmatprep.subr.mxu0 0.0
        %2875 = vmatpush1.msra.mxu0 0.0
        %2876 = vmatprep.subr.mxu0 0.0
        %2877 = vmatpush1.msra.mxu0 0.0
        %2878 = vmatprep.subr.mxu0 0.0
        %2879 = vmatpush1.msra.mxu0 0.0
        %2880 = vmatprep.subr.mxu0 0.0
        %2881 = vmatpush1.msra.mxu0 0.0
        %2882 = vmatprep.subr.mxu0 0.0
        %2883 = vmatpush1.msra.mxu0 0.0
        %2884 = vmatprep.subr.mxu0 0.0
        %2885 = vmatpush1.msra.mxu0 0.0
        %2886 = vmatprep.subr.mxu0 0.0
        %2887 = vmatpush1.msra.mxu0 0.0
        %2888 = vmatprep.subr.mxu0 0.0
        %2889 = vmatpush1.msra.mxu0 0.0
        %2890 = vmatprep.subr.mxu0 0.0
        %2891 = vmatpush1.msra.mxu0 0.0
        %2892 = vmatprep.subr.mxu0 0.0
        %2893 = vmatpush1.msra.mxu0 %v2851
        %2894 = vmatprep.subr.mxu0 0.0
        %2895 = vmatpush1.msra.mxu0 %v2850
        %2896 = vmatprep.subr.mxu0 0.0
        %2897 = vmatpush1.msra.mxu0 %v2849
        %2898 = vmatprep.subr.mxu0 0.0
        %2899 = vmatpush1.msra.mxu0 %v2848
        %2900 = vmatprep.subr.mxu0 0.0
        %2901 = vmatpush2.msra.mxu0 0.0
        %2902 = vmatprep.subr.mxu0 0.0
        %2903 = vmatpush2.msra.mxu0 0.0
        %2904 = vmatprep.subr.mxu0 0.0
        %2905 = vmatpush2.msra.mxu0 0.0
        %2906 = vmatprep.subr.mxu0 0.0
        %2907 = vmatpush2.msra.mxu0 0.0
        %2908 = vmatprep.subr.mxu0 0.0
        %2909 = vmatpush2.msra.mxu0 0.0
        %2910 = vmatprep.subr.mxu0 0.0
        %2911 = vmatpush2.msra.mxu0 0.0
        %2912 = vmatprep.subr.mxu0 0.0
        %2913 = vmatpush2.msra.mxu0 0.0
        %2914 = vmatprep.subr.mxu0 0.0
        %2915 = vmatpush2.msra.mxu0 0.0
        %2916 = vmatprep.subr.mxu0 0.0
        %2917 = vmatpush2.msra.mxu0 0.0
        %2918 = vmatprep.subr.mxu0 0.0
        %2919 = vmatpush2.msra.mxu0 0.0
        %2920 = vmatprep.subr.mxu0 0.0
        %2921 = vmatpush2.msra.mxu0 0.0
        %2922 = vmatprep.subr.mxu0 0.0
        %2923 = vmatpush2.msra.mxu0 0.0
        %2924 = vmatprep.subr.mxu0 0.0
        %2925 = vmatpush2.msra.mxu0 0.0
        %2926 = vmatprep.subr.mxu0 0.0
        %2927 = vmatpush2.msra.mxu0 0.0
        %2928 = vmatprep.subr.mxu0 0.0
        %2929 = vmatpush2.msra.mxu0 0.0
        %2930 = vmatprep.subr.mxu0 0.0
        %2931 = vmatpush2.msra.mxu0 0.0
        %2932 = vmatprep.mubr.f32.mxu0 0.0
        %2933 = vmatmul.mubr.f32.gmra.mxu0 %v2857
        %v2934 = vpop.f32.mrf.mxu0
        %v2935 = vadd.f32 0.0, %v2934
        %v2936 = vpop.f32.mrf.mxu0
        %2937 = vmatprep.mubr.f32.mxu0 0.0
        %2938 = vmatmul.mubr.f32.gmra.mxu0 %v2860
        %v2939 = vpop.f32.mrf.mxu0
        %v2940 = vadd.f32 0.0, %v2939
        %v2941 = vpop.f32.mrf.mxu0
        %2942 = vmatprep.mubr.f32.mxu0 0.0
        %2943 = vmatmul.mubr.f32.gmra.mxu0 %v2863
        %v2944 = vpop.f32.mrf.mxu0
        %v2945 = vadd.f32 0.0, %v2944
        %v2946 = vpop.f32.mrf.mxu0
        %2947 = vmatprep.mubr.f32.mxu0 0.0
        %2948 = vmatmul.mubr.f32.gmra.mxu0 %v2866
        %v2949 = vpop.f32.mrf.mxu0
        %v2950 = vadd.f32 0.0, %v2949
        %v2951 = vpop.f32.mrf.mxu0
        %2952 = vdwg.mxu0
        %v2954 = vsel %vm759, %v2636, 0
        %v2957 = vsel %vm759, %v2641, 0
        %v2960 = vsel %vm759, %v2646, 0
        %v2963 = vsel %vm759, %v2651, 0
        %2965 = vmatprep.subr.mxu0 0.0
        %2966 = vmatpush1.msra.mxu0 0.0
        %2967 = vmatprep.subr.mxu0 0.0
        %2968 = vmatpush1.msra.mxu0 0.0
        %2969 = vmatprep.subr.mxu0 0.0
        %2970 = vmatpush1.msra.mxu0 0.0
        %2971 = vmatprep.subr.mxu0 0.0
        %2972 = vmatpush1.msra.mxu0 0.0
        %2973 = vmatprep.subr.mxu0 0.0
        %2974 = vmatpush1.msra.mxu0 0.0
        %2975 = vmatprep.subr.mxu0 0.0
        %2976 = vmatpush1.msra.mxu0 0.0
        %2977 = vmatprep.subr.mxu0 0.0
        %2978 = vmatpush1.msra.mxu0 0.0
        %2979 = vmatprep.subr.mxu0 0.0
        %2980 = vmatpush1.msra.mxu0 0.0
        %2981 = vmatprep.subr.mxu0 0.0
        %2982 = vmatpush1.msra.mxu0 0.0
        %2983 = vmatprep.subr.mxu0 0.0
        %2984 = vmatpush1.msra.mxu0 0.0
        %2985 = vmatprep.subr.mxu0 0.0
        %2986 = vmatpush1.msra.mxu0 0.0
        %2987 = vmatprep.subr.mxu0 0.0
        %2988 = vmatpush1.msra.mxu0 0.0
        %2989 = vmatprep.subr.mxu0 0.0
        %2990 = vmatpush1.msra.mxu0 %v2855
        %2991 = vmatprep.subr.mxu0 0.0
        %2992 = vmatpush1.msra.mxu0 %v2854
        %2993 = vmatprep.subr.mxu0 0.0
        %2994 = vmatpush1.msra.mxu0 %v2853
        %2995 = vmatprep.subr.mxu0 0.0
        %2996 = vmatpush1.msra.mxu0 %v2852
        %2997 = vmatprep.subr.mxu0 0.0
        %2998 = vmatpush2.msra.mxu0 0.0
        %2999 = vmatprep.subr.mxu0 0.0
        %3000 = vmatpush2.msra.mxu0 0.0
        %3001 = vmatprep.subr.mxu0 0.0
        %3002 = vmatpush2.msra.mxu0 0.0
        %3003 = vmatprep.subr.mxu0 0.0
        %3004 = vmatpush2.msra.mxu0 0.0
        %3005 = vmatprep.subr.mxu0 0.0
        %3006 = vmatpush2.msra.mxu0 0.0
        %3007 = vmatprep.subr.mxu0 0.0
        %3008 = vmatpush2.msra.mxu0 0.0
        %3009 = vmatprep.subr.mxu0 0.0
        %3010 = vmatpush2.msra.mxu0 0.0
        %3011 = vmatprep.subr.mxu0 0.0
        %3012 = vmatpush2.msra.mxu0 0.0
        %3013 = vmatprep.subr.mxu0 0.0
        %3014 = vmatpush2.msra.mxu0 0.0
        %3015 = vmatprep.subr.mxu0 0.0
        %3016 = vmatpush2.msra.mxu0 0.0
        %3017 = vmatprep.subr.mxu0 0.0
        %3018 = vmatpush2.msra.mxu0 0.0
        %3019 = vmatprep.subr.mxu0 0.0
        %3020 = vmatpush2.msra.mxu0 0.0
        %3021 = vmatprep.subr.mxu0 0.0
        %3022 = vmatpush2.msra.mxu0 0.0
        %3023 = vmatprep.subr.mxu0 0.0
        %3024 = vmatpush2.msra.mxu0 0.0
        %3025 = vmatprep.subr.mxu0 0.0
        %3026 = vmatpush2.msra.mxu0 0.0
        %3027 = vmatprep.subr.mxu0 0.0
        %3028 = vmatpush2.msra.mxu0 0.0
        %3029 = vmatprep.mubr.f32.mxu0 0.0
        %3030 = vmatmul.mubr.f32.gmra.mxu0 %v2954
        %v3031 = vpop.f32.mrf.mxu0
        %v3032 = vadd.f32 0.0, %v3031
        %v3033 = vpop.f32.mrf.mxu0
        %3034 = vmatprep.mubr.f32.mxu0 0.0
        %3035 = vmatmul.mubr.f32.gmra.mxu0 %v2957
        %v3036 = vpop.f32.mrf.mxu0
        %v3037 = vadd.f32 0.0, %v3036
        %v3038 = vpop.f32.mrf.mxu0
        %3039 = vmatprep.mubr.f32.mxu0 0.0
        %3040 = vmatmul.mubr.f32.gmra.mxu0 %v2960
        %v3041 = vpop.f32.mrf.mxu0
        %v3042 = vadd.f32 0.0, %v3041
        %v3043 = vpop.f32.mrf.mxu0
        %3044 = vmatprep.mubr.f32.mxu0 0.0
        %3045 = vmatmul.mubr.f32.gmra.mxu0 %v2963
        %v3046 = vpop.f32.mrf.mxu0
        %v3047 = vadd.f32 0.0, %v3046
        %v3048 = vpop.f32.mrf.mxu0
        %3049 = vdwg.mxu0
        %v3051 = vsel %vm759, %v2733, 0
        %v3054 = vsel %vm759, %v2738, 0
        %v3057 = vsel %vm759, %v2743, 0
        %v3060 = vsel %vm759, %v2748, 0
        %3062 = vmatprep.subr.mxu0 0.0
        %3063 = vmatpush1.msra.mxu0 0.0
        %3064 = vmatprep.subr.mxu0 0.0
        %3065 = vmatpush1.msra.mxu0 0.0
        %3066 = vmatprep.subr.mxu0 0.0
        %3067 = vmatpush1.msra.mxu0 0.0
        %3068 = vmatprep.subr.mxu0 0.0
        %3069 = vmatpush1.msra.mxu0 0.0
        %3070 = vmatprep.subr.mxu0 0.0
        %3071 = vmatpush1.msra.mxu0 0.0
        %3072 = vmatprep.subr.mxu0 0.0
        %3073 = vmatpush1.msra.mxu0 0.0
        %3074 = vmatprep.subr.mxu0 0.0
        %3075 = vmatpush1.msra.mxu0 0.0
        %3076 = vmatprep.subr.mxu0 0.0
        %3077 = vmatpush1.msra.mxu0 0.0
        %3078 = vmatprep.subr.mxu0 0.0
        %3079 = vmatpush1.msra.mxu0 0.0
        %3080 = vmatprep.subr.mxu0 0.0
        %3081 = vmatpush1.msra.mxu0 0.0
        %3082 = vmatprep.subr.mxu0 0.0
        %3083 = vmatpush1.msra.mxu0 0.0
        %3084 = vmatprep.subr.mxu0 0.0
        %3085 = vmatpush1.msra.mxu0 0.0
        %3086 = vmatprep.subr.mxu0 0.0
        %3087 = vmatpush1.msra.mxu0 %v2748
        %3088 = vmatprep.subr.mxu0 0.0
        %3089 = vmatpush1.msra.mxu0 %v2743
        %3090 = vmatprep.subr.mxu0 0.0
        %3091 = vmatpush1.msra.mxu0 %v2738
        %3092 = vmatprep.subr.mxu0 0.0
        %3093 = vmatpush1.msra.mxu0 %v2733
        %3094 = vmatprep.subr.mxu0 0.0
        %3095 = vmatpush2.msra.mxu0 0.0
        %3096 = vmatprep.subr.mxu0 0.0
        %3097 = vmatpush2.msra.mxu0 0.0
        %3098 = vmatprep.subr.mxu0 0.0
        %3099 = vmatpush2.msra.mxu0 0.0
        %3100 = vmatprep.subr.mxu0 0.0
        %3101 = vmatpush2.msra.mxu0 0.0
        %3102 = vmatprep.subr.mxu0 0.0
        %3103 = vmatpush2.msra.mxu0 0.0
        %3104 = vmatprep.subr.mxu0 0.0
        %3105 = vmatpush2.msra.mxu0 0.0
        %3106 = vmatprep.subr.mxu0 0.0
        %3107 = vmatpush2.msra.mxu0 0.0
        %3108 = vmatprep.subr.mxu0 0.0
        %3109 = vmatpush2.msra.mxu0 0.0
        %3110 = vmatprep.subr.mxu0 0.0
        %3111 = vmatpush2.msra.mxu0 0.0
        %3112 = vmatprep.subr.mxu0 0.0
        %3113 = vmatpush2.msra.mxu0 0.0
        %3114 = vmatprep.subr.mxu0 0.0
        %3115 = vmatpush2.msra.mxu0 0.0
        %3116 = vmatprep.subr.mxu0 0.0
        %3117 = vmatpush2.msra.mxu0 0.0
        %3118 = vmatprep.subr.mxu0 0.0
        %3119 = vmatpush2.msra.mxu0 0.0
        %3120 = vmatprep.subr.mxu0 0.0
        %3121 = vmatpush2.msra.mxu0 0.0
        %3122 = vmatprep.subr.mxu0 0.0
        %3123 = vmatpush2.msra.mxu0 0.0
        %3124 = vmatprep.subr.mxu0 0.0
        %3125 = vmatpush2.msra.mxu0 0.0
        %3126 = vmatprep.mubr.f32.mxu0 0.0
        %3127 = vmatmul.mubr.f32.gmra.mxu0 %v3051
        %v3128 = vpop.f32.mrf.mxu0
        %v3129 = vadd.f32 0.0, %v3128
        %v3130 = vpop.f32.mrf.mxu0
        %3131 = vmatprep.mubr.f32.mxu0 0.0
        %3132 = vmatmul.mubr.f32.gmra.mxu0 %v3054
        %v3133 = vpop.f32.mrf.mxu0
        %v3134 = vadd.f32 0.0, %v3133
        %v3135 = vpop.f32.mrf.mxu0
        %3136 = vmatprep.mubr.f32.mxu0 0.0
        %3137 = vmatmul.mubr.f32.gmra.mxu0 %v3057
        %v3138 = vpop.f32.mrf.mxu0
        %v3139 = vadd.f32 0.0, %v3138
        %v3140 = vpop.f32.mrf.mxu0
        %3141 = vmatprep.mubr.f32.mxu0 0.0
        %3142 = vmatmul.mubr.f32.gmra.mxu0 %v3060
        %v3143 = vpop.f32.mrf.mxu0
        %v3144 = vadd.f32 0.0, %v3143
        %v3145 = vpop.f32.mrf.mxu0
        %3146 = vdwg.mxu0
        %v3148 = vsel %vm759, %v2830, 0
        %v3151 = vsel %vm759, %v2835, 0
        %v3154 = vsel %vm759, %v2840, 0
        %v3157 = vsel %vm759, %v2845, 0
        %3159 = vmatprep.subr.mxu0 0.0
        %3160 = vmatpush1.msra.mxu0 0.0
        %3161 = vmatprep.subr.mxu0 0.0
        %3162 = vmatpush1.msra.mxu0 0.0
        %3163 = vmatprep.subr.mxu0 0.0
        %3164 = vmatpush1.msra.mxu0 0.0
        %3165 = vmatprep.subr.mxu0 0.0
        %3166 = vmatpush1.msra.mxu0 0.0
        %3167 = vmatprep.subr.mxu0 0.0
        %3168 = vmatpush1.msra.mxu0 0.0
        %3169 = vmatprep.subr.mxu0 0.0
        %3170 = vmatpush1.msra.mxu0 0.0
        %3171 = vmatprep.subr.mxu0 0.0
        %3172 = vmatpush1.msra.mxu0 0.0
        %3173 = vmatprep.subr.mxu0 0.0
        %3174 = vmatpush1.msra.mxu0 0.0
        %3175 = vmatprep.subr.mxu0 0.0
        %3176 = vmatpush1.msra.mxu0 0.0
        %3177 = vmatprep.subr.mxu0 0.0
        %3178 = vmatpush1.msra.mxu0 0.0
        %3179 = vmatprep.subr.mxu0 0.0
        %3180 = vmatpush1.msra.mxu0 0.0
        %3181 = vmatprep.subr.mxu0 0.0
        %3182 = vmatpush1.msra.mxu0 0.0
        %3183 = vmatprep.subr.mxu0 0.0
        %3184 = vmatpush1.msra.mxu0 %v2845
        %3185 = vmatprep.subr.mxu0 0.0
        %3186 = vmatpush1.msra.mxu0 %v2840
        %3187 = vmatprep.subr.mxu0 0.0
        %3188 = vmatpush1.msra.mxu0 %v2835
        %3189 = vmatprep.subr.mxu0 0.0
        %3190 = vmatpush1.msra.mxu0 %v2830
        %3191 = vmatprep.subr.mxu0 0.0
        %3192 = vmatpush2.msra.mxu0 0.0
        %3193 = vmatprep.subr.mxu0 0.0
        %3194 = vmatpush2.msra.mxu0 0.0
        %3195 = vmatprep.subr.mxu0 0.0
        %3196 = vmatpush2.msra.mxu0 0.0
        %3197 = vmatprep.subr.mxu0 0.0
        %3198 = vmatpush2.msra.mxu0 0.0
        %3199 = vmatprep.subr.mxu0 0.0
        %3200 = vmatpush2.msra.mxu0 0.0
        %3201 = vmatprep.subr.mxu0 0.0
        %3202 = vmatpush2.msra.mxu0 0.0
        %3203 = vmatprep.subr.mxu0 0.0
        %3204 = vmatpush2.msra.mxu0 0.0
        %3205 = vmatprep.subr.mxu0 0.0
        %3206 = vmatpush2.msra.mxu0 0.0
        %3207 = vmatprep.subr.mxu0 0.0
        %3208 = vmatpush2.msra.mxu0 0.0
        %3209 = vmatprep.subr.mxu0 0.0
        %3210 = vmatpush2.msra.mxu0 0.0
        %3211 = vmatprep.subr.mxu0 0.0
        %3212 = vmatpush2.msra.mxu0 0.0
        %3213 = vmatprep.subr.mxu0 0.0
        %3214 = vmatpush2.msra.mxu0 0.0
        %3215 = vmatprep.subr.mxu0 0.0
        %3216 = vmatpush2.msra.mxu0 0.0
        %3217 = vmatprep.subr.mxu0 0.0
        %3218 = vmatpush2.msra.mxu0 0.0
        %3219 = vmatprep.subr.mxu0 0.0
        %3220 = vmatpush2.msra.mxu0 0.0
        %3221 = vmatprep.subr.mxu0 0.0
        %3222 = vmatpush2.msra.mxu0 0.0
        %3223 = vmatprep.mubr.f32.mxu0 0.0
        %3224 = vmatmul.mubr.f32.gmra.mxu0 %v3148
        %v3225 = vpop.f32.mrf.mxu0
        %v3226 = vadd.f32 0.0, %v3225
        %v3227 = vpop.f32.mrf.mxu0
        %3228 = vmatprep.mubr.f32.mxu0 0.0
        %3229 = vmatmul.mubr.f32.gmra.mxu0 %v3151
        %v3230 = vpop.f32.mrf.mxu0
        %v3231 = vadd.f32 0.0, %v3230
        %v3232 = vpop.f32.mrf.mxu0
        %3233 = vmatprep.mubr.f32.mxu0 0.0
        %3234 = vmatmul.mubr.f32.gmra.mxu0 %v3154
        %v3235 = vpop.f32.mrf.mxu0
        %v3236 = vadd.f32 0.0, %v3235
        %v3237 = vpop.f32.mrf.mxu0
        %3238 = vmatprep.mubr.f32.mxu0 0.0
        %3239 = vmatmul.mubr.f32.gmra.mxu0 %v3157
        %v3240 = vpop.f32.mrf.mxu0
        %v3241 = vadd.f32 0.0, %v3240
        %v3242 = vpop.f32.mrf.mxu0
        %3243 = vdwg.mxu0
        %v3244 = vadd.f32 %v711, %v3129
        %v3245 = vadd.f32 %v712, %v3134
        %v3246 = vadd.f32 %v713, %v3139
        %v3247 = vadd.f32 %v714, %v3144
        %v3248 = vadd.f32 %v711, %v3226
        %v3249 = vadd.f32 %v712, %v3231
        %v3250 = vadd.f32 %v713, %v3236
        %v3251 = vadd.f32 %v714, %v3241
        %v3253 = vsel %vm759, %v2935, 0
        %v3256 = vsel %vm759, %v2940, 0
        %v3259 = vsel %vm759, %v2945, 0
        %v3262 = vsel %vm759, %v2950, 0
        %3264 = vmatprep.subr.mxu0 0.0
        %3265 = vmatpush1.msra.mxu0 0.0
        %3266 = vmatprep.subr.mxu0 0.0
        %3267 = vmatpush1.msra.mxu0 0.0
        %3268 = vmatprep.subr.mxu0 0.0
        %3269 = vmatpush1.msra.mxu0 0.0
        %3270 = vmatprep.subr.mxu0 0.0
        %3271 = vmatpush1.msra.mxu0 0.0
        %3272 = vmatprep.subr.mxu0 0.0
        %3273 = vmatpush1.msra.mxu0 0.0
        %3274 = vmatprep.subr.mxu0 0.0
        %3275 = vmatpush1.msra.mxu0 0.0
        %3276 = vmatprep.subr.mxu0 0.0
        %3277 = vmatpush1.msra.mxu0 0.0
        %3278 = vmatprep.subr.mxu0 0.0
        %3279 = vmatpush1.msra.mxu0 0.0
        %3280 = vmatprep.subr.mxu0 0.0
        %3281 = vmatpush1.msra.mxu0 0.0
        %3282 = vmatprep.subr.mxu0 0.0
        %3283 = vmatpush1.msra.mxu0 0.0
        %3284 = vmatprep.subr.mxu0 0.0
        %3285 = vmatpush1.msra.mxu0 0.0
        %3286 = vmatprep.subr.mxu0 0.0
        %3287 = vmatpush1.msra.mxu0 0.0
        %3288 = vmatprep.subr.mxu0 0.0
        %3289 = vmatpush1.msra.mxu0 %v3247
        %3290 = vmatprep.subr.mxu0 0.0
        %3291 = vmatpush1.msra.mxu0 %v3246
        %3292 = vmatprep.subr.mxu0 0.0
        %3293 = vmatpush1.msra.mxu0 %v3245
        %3294 = vmatprep.subr.mxu0 0.0
        %3295 = vmatpush1.msra.mxu0 %v3244
        %3296 = vmatprep.subr.mxu0 0.0
        %3297 = vmatpush2.msra.mxu0 0.0
        %3298 = vmatprep.subr.mxu0 0.0
        %3299 = vmatpush2.msra.mxu0 0.0
        %3300 = vmatprep.subr.mxu0 0.0
        %3301 = vmatpush2.msra.mxu0 0.0
        %3302 = vmatprep.subr.mxu0 0.0
        %3303 = vmatpush2.msra.mxu0 0.0
        %3304 = vmatprep.subr.mxu0 0.0
        %3305 = vmatpush2.msra.mxu0 0.0
        %3306 = vmatprep.subr.mxu0 0.0
        %3307 = vmatpush2.msra.mxu0 0.0
        %3308 = vmatprep.subr.mxu0 0.0
        %3309 = vmatpush2.msra.mxu0 0.0
        %3310 = vmatprep.subr.mxu0 0.0
        %3311 = vmatpush2.msra.mxu0 0.0
        %3312 = vmatprep.subr.mxu0 0.0
        %3313 = vmatpush2.msra.mxu0 0.0
        %3314 = vmatprep.subr.mxu0 0.0
        %3315 = vmatpush2.msra.mxu0 0.0
        %3316 = vmatprep.subr.mxu0 0.0
        %3317 = vmatpush2.msra.mxu0 0.0
        %3318 = vmatprep.subr.mxu0 0.0
        %3319 = vmatpush2.msra.mxu0 0.0
        %3320 = vmatprep.subr.mxu0 0.0
        %3321 = vmatpush2.msra.mxu0 0.0
        %3322 = vmatprep.subr.mxu0 0.0
        %3323 = vmatpush2.msra.mxu0 0.0
        %3324 = vmatprep.subr.mxu0 0.0
        %3325 = vmatpush2.msra.mxu0 0.0
        %3326 = vmatprep.subr.mxu0 0.0
        %3327 = vmatpush2.msra.mxu0 0.0
        %3328 = vmatprep.mubr.f32.mxu0 0.0
        %3329 = vmatmul.mubr.f32.gmra.mxu0 %v3253
        %v3330 = vpop.f32.mrf.mxu0
        %v3331 = vadd.f32 0.0, %v3330
        %v3332 = vpop.f32.mrf.mxu0
        %3333 = vmatprep.mubr.f32.mxu0 0.0
        %3334 = vmatmul.mubr.f32.gmra.mxu0 %v3256
        %v3335 = vpop.f32.mrf.mxu0
        %v3336 = vadd.f32 0.0, %v3335
        %v3337 = vpop.f32.mrf.mxu0
        %3338 = vmatprep.mubr.f32.mxu0 0.0
        %3339 = vmatmul.mubr.f32.gmra.mxu0 %v3259
        %v3340 = vpop.f32.mrf.mxu0
        %v3341 = vadd.f32 0.0, %v3340
        %v3342 = vpop.f32.mrf.mxu0
        %3343 = vmatprep.mubr.f32.mxu0 0.0
        %3344 = vmatmul.mubr.f32.gmra.mxu0 %v3262
        %v3345 = vpop.f32.mrf.mxu0
        %v3346 = vadd.f32 0.0, %v3345
        %v3347 = vpop.f32.mrf.mxu0
        %3348 = vdwg.mxu0
        %v3350 = vsel %vm759, %v3032, 0
        %v3353 = vsel %vm759, %v3037, 0
        %v3356 = vsel %vm759, %v3042, 0
        %v3359 = vsel %vm759, %v3047, 0
        %3361 = vmatprep.subr.mxu0 0.0
        %3362 = vmatpush1.msra.mxu0 0.0
        %3363 = vmatprep.subr.mxu0 0.0
        %3364 = vmatpush1.msra.mxu0 0.0
        %3365 = vmatprep.subr.mxu0 0.0
        %3366 = vmatpush1.msra.mxu0 0.0
        %3367 = vmatprep.subr.mxu0 0.0
        %3368 = vmatpush1.msra.mxu0 0.0
        %3369 = vmatprep.subr.mxu0 0.0
        %3370 = vmatpush1.msra.mxu0 0.0
        %3371 = vmatprep.subr.mxu0 0.0
        %3372 = vmatpush1.msra.mxu0 0.0
        %3373 = vmatprep.subr.mxu0 0.0
        %3374 = vmatpush1.msra.mxu0 0.0
        %3375 = vmatprep.subr.mxu0 0.0
        %3376 = vmatpush1.msra.mxu0 0.0
        %3377 = vmatprep.subr.mxu0 0.0
        %3378 = vmatpush1.msra.mxu0 0.0
        %3379 = vmatprep.subr.mxu0 0.0
        %3380 = vmatpush1.msra.mxu0 0.0
        %3381 = vmatprep.subr.mxu0 0.0
        %3382 = vmatpush1.msra.mxu0 0.0
        %3383 = vmatprep.subr.mxu0 0.0
        %3384 = vmatpush1.msra.mxu0 0.0
        %3385 = vmatprep.subr.mxu0 0.0
        %3386 = vmatpush1.msra.mxu0 %v3251
        %3387 = vmatprep.subr.mxu0 0.0
        %3388 = vmatpush1.msra.mxu0 %v3250
        %3389 = vmatprep.subr.mxu0 0.0
        %3390 = vmatpush1.msra.mxu0 %v3249
        %3391 = vmatprep.subr.mxu0 0.0
        %3392 = vmatpush1.msra.mxu0 %v3248
        %3393 = vmatprep.subr.mxu0 0.0
        %3394 = vmatpush2.msra.mxu0 0.0
        %3395 = vmatprep.subr.mxu0 0.0
        %3396 = vmatpush2.msra.mxu0 0.0
        %3397 = vmatprep.subr.mxu0 0.0
        %3398 = vmatpush2.msra.mxu0 0.0
        %3399 = vmatprep.subr.mxu0 0.0
        %3400 = vmatpush2.msra.mxu0 0.0
        %3401 = vmatprep.subr.mxu0 0.0
        %3402 = vmatpush2.msra.mxu0 0.0
        %3403 = vmatprep.subr.mxu0 0.0
        %3404 = vmatpush2.msra.mxu0 0.0
        %3405 = vmatprep.subr.mxu0 0.0
        %3406 = vmatpush2.msra.mxu0 0.0
        %3407 = vmatprep.subr.mxu0 0.0
        %3408 = vmatpush2.msra.mxu0 0.0
        %3409 = vmatprep.subr.mxu0 0.0
        %3410 = vmatpush2.msra.mxu0 0.0
        %3411 = vmatprep.subr.mxu0 0.0
        %3412 = vmatpush2.msra.mxu0 0.0
        %3413 = vmatprep.subr.mxu0 0.0
        %3414 = vmatpush2.msra.mxu0 0.0
        %3415 = vmatprep.subr.mxu0 0.0
        %3416 = vmatpush2.msra.mxu0 0.0
        %3417 = vmatprep.subr.mxu0 0.0
        %3418 = vmatpush2.msra.mxu0 0.0
        %3419 = vmatprep.subr.mxu0 0.0
        %3420 = vmatpush2.msra.mxu0 0.0
        %3421 = vmatprep.subr.mxu0 0.0
        %3422 = vmatpush2.msra.mxu0 0.0
        %3423 = vmatprep.subr.mxu0 0.0
        %3424 = vmatpush2.msra.mxu0 0.0
        %3425 = vmatprep.mubr.f32.mxu0 0.0
        %3426 = vmatmul.mubr.f32.gmra.mxu0 %v3350
        %v3427 = vpop.f32.mrf.mxu0
        %v3428 = vadd.f32 0.0, %v3427
        %v3429 = vpop.f32.mrf.mxu0
        %3430 = vmatprep.mubr.f32.mxu0 0.0
        %3431 = vmatmul.mubr.f32.gmra.mxu0 %v3353
        %v3432 = vpop.f32.mrf.mxu0
        %v3433 = vadd.f32 0.0, %v3432
        %v3434 = vpop.f32.mrf.mxu0
        %3435 = vmatprep.mubr.f32.mxu0 0.0
        %3436 = vmatmul.mubr.f32.gmra.mxu0 %v3356
        %v3437 = vpop.f32.mrf.mxu0
        %v3438 = vadd.f32 0.0, %v3437
        %v3439 = vpop.f32.mrf.mxu0
        %3440 = vmatprep.mubr.f32.mxu0 0.0
        %3441 = vmatmul.mubr.f32.gmra.mxu0 %v3359
        %v3442 = vpop.f32.mrf.mxu0
        %v3443 = vadd.f32 0.0, %v3442
        %v3444 = vpop.f32.mrf.mxu0
        %3445 = vdwg.mxu0
        %v3447 = vsel %vm759, %v1474, 0
        %v3450 = vsel %vm759, %v1475, 0
        %v3453 = vsel %vm759, %v1476, 0
        %v3456 = vsel %vm759, %v1477, 0
        %3458 = vmatprep.subr.mxu0 0.0
        %3459 = vmatpush1.msra.mxu0 0.0
        %3460 = vmatprep.subr.mxu0 0.0
        %3461 = vmatpush1.msra.mxu0 0.0
        %3462 = vmatprep.subr.mxu0 0.0
        %3463 = vmatpush1.msra.mxu0 0.0
        %3464 = vmatprep.subr.mxu0 0.0
        %3465 = vmatpush1.msra.mxu0 0.0
        %3466 = vmatprep.subr.mxu0 0.0
        %3467 = vmatpush1.msra.mxu0 0.0
        %3468 = vmatprep.subr.mxu0 0.0
        %3469 = vmatpush1.msra.mxu0 0.0
        %3470 = vmatprep.subr.mxu0 0.0
        %3471 = vmatpush1.msra.mxu0 0.0
        %3472 = vmatprep.subr.mxu0 0.0
        %3473 = vmatpush1.msra.mxu0 0.0
        %3474 = vmatprep.subr.mxu0 0.0
        %3475 = vmatpush1.msra.mxu0 0.0
        %3476 = vmatprep.subr.mxu0 0.0
        %3477 = vmatpush1.msra.mxu0 0.0
        %3478 = vmatprep.subr.mxu0 0.0
        %3479 = vmatpush1.msra.mxu0 0.0
        %3480 = vmatprep.subr.mxu0 0.0
        %3481 = vmatpush1.msra.mxu0 0.0
        %3482 = vmatprep.subr.mxu0 0.0
        %3483 = vmatpush1.msra.mxu0 %v738
        %3484 = vmatprep.subr.mxu0 0.0
        %3485 = vmatpush1.msra.mxu0 %v737
        %3486 = vmatprep.subr.mxu0 0.0
        %3487 = vmatpush1.msra.mxu0 %v736
        %3488 = vmatprep.subr.mxu0 0.0
        %3489 = vmatpush1.msra.mxu0 %v735
        %3490 = vmatprep.subr.mxu0 0.0
        %3491 = vmatpush2.msra.mxu0 0.0
        %3492 = vmatprep.subr.mxu0 0.0
        %3493 = vmatpush2.msra.mxu0 0.0
        %3494 = vmatprep.subr.mxu0 0.0
        %3495 = vmatpush2.msra.mxu0 0.0
        %3496 = vmatprep.subr.mxu0 0.0
        %3497 = vmatpush2.msra.mxu0 0.0
        %3498 = vmatprep.subr.mxu0 0.0
        %3499 = vmatpush2.msra.mxu0 0.0
        %3500 = vmatprep.subr.mxu0 0.0
        %3501 = vmatpush2.msra.mxu0 0.0
        %3502 = vmatprep.subr.mxu0 0.0
        %3503 = vmatpush2.msra.mxu0 0.0
        %3504 = vmatprep.subr.mxu0 0.0
        %3505 = vmatpush2.msra.mxu0 0.0
        %3506 = vmatprep.subr.mxu0 0.0
        %3507 = vmatpush2.msra.mxu0 0.0
        %3508 = vmatprep.subr.mxu0 0.0
        %3509 = vmatpush2.msra.mxu0 0.0
        %3510 = vmatprep.subr.mxu0 0.0
        %3511 = vmatpush2.msra.mxu0 0.0
        %3512 = vmatprep.subr.mxu0 0.0
        %3513 = vmatpush2.msra.mxu0 0.0
        %3514 = vmatprep.subr.mxu0 0.0
        %3515 = vmatpush2.msra.mxu0 0.0
        %3516 = vmatprep.subr.mxu0 0.0
        %3517 = vmatpush2.msra.mxu0 0.0
        %3518 = vmatprep.subr.mxu0 0.0
        %3519 = vmatpush2.msra.mxu0 0.0
        %3520 = vmatprep.subr.mxu0 0.0
        %3521 = vmatpush2.msra.mxu0 0.0
        %3522 = vmatprep.mubr.f32.mxu0 0.0
        %3523 = vmatmul.mubr.f32.gmra.mxu0 %v3447
        %v3524 = vpop.f32.mrf.mxu0
        %v3525 = vadd.f32 0.0, %v3524
        %v3526 = vpop.f32.mrf.mxu0
        %3527 = vmatprep.mubr.f32.mxu0 0.0
        %3528 = vmatmul.mubr.f32.gmra.mxu0 %v3450
        %v3529 = vpop.f32.mrf.mxu0
        %v3530 = vadd.f32 0.0, %v3529
        %v3531 = vpop.f32.mrf.mxu0
        %3532 = vmatprep.mubr.f32.mxu0 0.0
        %3533 = vmatmul.mubr.f32.gmra.mxu0 %v3453
        %v3534 = vpop.f32.mrf.mxu0
        %v3535 = vadd.f32 0.0, %v3534
        %v3536 = vpop.f32.mrf.mxu0
        %3537 = vmatprep.mubr.f32.mxu0 0.0
        %3538 = vmatmul.mubr.f32.gmra.mxu0 %v3456
        %v3539 = vpop.f32.mrf.mxu0
        %v3540 = vadd.f32 0.0, %v3539
        %v3541 = vpop.f32.mrf.mxu0
        %3542 = vdwg.mxu0
        %v3544 = vsel %vm759, %v1478, 0
        %v3547 = vsel %vm759, %v1479, 0
        %v3550 = vsel %vm759, %v1480, 0
        %v3553 = vsel %vm759, %v1481, 0
        %3555 = vmatprep.subr.mxu0 0.0
        %3556 = vmatpush1.msra.mxu0 0.0
        %3557 = vmatprep.subr.mxu0 0.0
        %3558 = vmatpush1.msra.mxu0 0.0
        %3559 = vmatprep.subr.mxu0 0.0
        %3560 = vmatpush1.msra.mxu0 0.0
        %3561 = vmatprep.subr.mxu0 0.0
        %3562 = vmatpush1.msra.mxu0 0.0
        %3563 = vmatprep.subr.mxu0 0.0
        %3564 = vmatpush1.msra.mxu0 0.0
        %3565 = vmatprep.subr.mxu0 0.0
        %3566 = vmatpush1.msra.mxu0 0.0
        %3567 = vmatprep.subr.mxu0 0.0
        %3568 = vmatpush1.msra.mxu0 0.0
        %3569 = vmatprep.subr.mxu0 0.0
        %3570 = vmatpush1.msra.mxu0 0.0
        %3571 = vmatprep.subr.mxu0 0.0
        %3572 = vmatpush1.msra.mxu0 0.0
        %3573 = vmatprep.subr.mxu0 0.0
        %3574 = vmatpush1.msra.mxu0 0.0
        %3575 = vmatprep.subr.mxu0 0.0
        %3576 = vmatpush1.msra.mxu0 0.0
        %3577 = vmatprep.subr.mxu0 0.0
        %3578 = vmatpush1.msra.mxu0 0.0
        %3579 = vmatprep.subr.mxu0 0.0
        %3580 = vmatpush1.msra.mxu0 %v1065
        %3581 = vmatprep.subr.mxu0 0.0
        %3582 = vmatpush1.msra.mxu0 %v1063
        %3583 = vmatprep.subr.mxu0 0.0
        %3584 = vmatpush1.msra.mxu0 %v1061
        %3585 = vmatprep.subr.mxu0 0.0
        %3586 = vmatpush1.msra.mxu0 %v1059
        %3587 = vmatprep.subr.mxu0 0.0
        %3588 = vmatpush2.msra.mxu0 0.0
        %3589 = vmatprep.subr.mxu0 0.0
        %3590 = vmatpush2.msra.mxu0 0.0
        %3591 = vmatprep.subr.mxu0 0.0
        %3592 = vmatpush2.msra.mxu0 0.0
        %3593 = vmatprep.subr.mxu0 0.0
        %3594 = vmatpush2.msra.mxu0 0.0
        %3595 = vmatprep.subr.mxu0 0.0
        %3596 = vmatpush2.msra.mxu0 0.0
        %3597 = vmatprep.subr.mxu0 0.0
        %3598 = vmatpush2.msra.mxu0 0.0
        %3599 = vmatprep.subr.mxu0 0.0
        %3600 = vmatpush2.msra.mxu0 0.0
        %3601 = vmatprep.subr.mxu0 0.0
        %3602 = vmatpush2.msra.mxu0 0.0
        %3603 = vmatprep.subr.mxu0 0.0
        %3604 = vmatpush2.msra.mxu0 0.0
        %3605 = vmatprep.subr.mxu0 0.0
        %3606 = vmatpush2.msra.mxu0 0.0
        %3607 = vmatprep.subr.mxu0 0.0
        %3608 = vmatpush2.msra.mxu0 0.0
        %3609 = vmatprep.subr.mxu0 0.0
        %3610 = vmatpush2.msra.mxu0 0.0
        %3611 = vmatprep.subr.mxu0 0.0
        %3612 = vmatpush2.msra.mxu0 0.0
        %3613 = vmatprep.subr.mxu0 0.0
        %3614 = vmatpush2.msra.mxu0 0.0
        %3615 = vmatprep.subr.mxu0 0.0
        %3616 = vmatpush2.msra.mxu0 0.0
        %3617 = vmatprep.subr.mxu0 0.0
        %3618 = vmatpush2.msra.mxu0 0.0
        %3619 = vmatprep.mubr.f32.mxu0 0.0
        %3620 = vmatmul.mubr.f32.gmra.mxu0 %v3544
        %v3621 = vpop.f32.mrf.mxu0
        %v3622 = vadd.f32 0.0, %v3621
        %v3623 = vpop.f32.mrf.mxu0
        %3624 = vmatprep.mubr.f32.mxu0 0.0
        %3625 = vmatmul.mubr.f32.gmra.mxu0 %v3547
        %v3626 = vpop.f32.mrf.mxu0
        %v3627 = vadd.f32 0.0, %v3626
        %v3628 = vpop.f32.mrf.mxu0
        %3629 = vmatprep.mubr.f32.mxu0 0.0
        %3630 = vmatmul.mubr.f32.gmra.mxu0 %v3550
        %v3631 = vpop.f32.mrf.mxu0
        %v3632 = vadd.f32 0.0, %v3631
        %v3633 = vpop.f32.mrf.mxu0
        %3634 = vmatprep.mubr.f32.mxu0 0.0
        %3635 = vmatmul.mubr.f32.gmra.mxu0 %v3553
        %v3636 = vpop.f32.mrf.mxu0
        %v3637 = vadd.f32 0.0, %v3636
        %v3638 = vpop.f32.mrf.mxu0
        %3639 = vdwg.mxu0
        %v3641 = vsel %vm759, %v1070, 0
        %v3644 = vsel %vm759, %v1071, 0
        %v3647 = vsel %vm759, %v1072, 0
        %v3650 = vsel %vm759, %v1073, 0
        %3652 = vmatprep.subr.mxu0 0.0
        %3653 = vmatpush1.xpose.msra.mxu0 0.0
        %3654 = vmatprep.subr.mxu0 0.0
        %3655 = vmatpush1.xpose.msra.mxu0 0.0
        %3656 = vmatprep.subr.mxu0 0.0
        %3657 = vmatpush1.xpose.msra.mxu0 0.0
        %3658 = vmatprep.subr.mxu0 0.0
        %3659 = vmatpush1.xpose.msra.mxu0 0.0
        %3660 = vmatprep.subr.mxu0 0.0
        %3661 = vmatpush1.xpose.msra.mxu0 0.0
        %3662 = vmatprep.subr.mxu0 0.0
        %3663 = vmatpush1.xpose.msra.mxu0 0.0
        %3664 = vmatprep.subr.mxu0 0.0
        %3665 = vmatpush1.xpose.msra.mxu0 0.0
        %3666 = vmatprep.subr.mxu0 0.0
        %3667 = vmatpush1.xpose.msra.mxu0 0.0
        %3668 = vmatprep.subr.mxu0 0.0
        %3669 = vmatpush1.xpose.msra.mxu0 0.0
        %3670 = vmatprep.subr.mxu0 0.0
        %3671 = vmatpush1.xpose.msra.mxu0 0.0
        %3672 = vmatprep.subr.mxu0 0.0
        %3673 = vmatpush1.xpose.msra.mxu0 0.0
        %3674 = vmatprep.subr.mxu0 0.0
        %3675 = vmatpush1.xpose.msra.mxu0 0.0
        %3676 = vmatprep.subr.mxu0 0.0
        %3677 = vmatpush1.xpose.msra.mxu0 %v3650
        %3678 = vmatprep.subr.mxu0 0.0
        %3679 = vmatpush1.xpose.msra.mxu0 %v3647
        %3680 = vmatprep.subr.mxu0 0.0
        %3681 = vmatpush1.xpose.msra.mxu0 %v3644
        %3682 = vmatprep.subr.mxu0 0.0
        %3683 = vmatpush1.xpose.msra.mxu0 %v3641
        %3684 = vmatprep.subr.mxu0 0.0
        %3685 = vmatpush2.xpose.msra.mxu0 0.0
        %3686 = vmatprep.subr.mxu0 0.0
        %3687 = vmatpush2.xpose.msra.mxu0 0.0
        %3688 = vmatprep.subr.mxu0 0.0
        %3689 = vmatpush2.xpose.msra.mxu0 0.0
        %3690 = vmatprep.subr.mxu0 0.0
        %3691 = vmatpush2.xpose.msra.mxu0 0.0
        %3692 = vmatprep.subr.mxu0 0.0
        %3693 = vmatpush2.xpose.msra.mxu0 0.0
        %3694 = vmatprep.subr.mxu0 0.0
        %3695 = vmatpush2.xpose.msra.mxu0 0.0
        %3696 = vmatprep.subr.mxu0 0.0
        %3697 = vmatpush2.xpose.msra.mxu0 0.0
        %3698 = vmatprep.subr.mxu0 0.0
        %3699 = vmatpush2.xpose.msra.mxu0 0.0
        %3700 = vmatprep.subr.mxu0 0.0
        %3701 = vmatpush2.xpose.msra.mxu0 0.0
        %3702 = vmatprep.subr.mxu0 0.0
        %3703 = vmatpush2.xpose.msra.mxu0 0.0
        %3704 = vmatprep.subr.mxu0 0.0
        %3705 = vmatpush2.xpose.msra.mxu0 0.0
        %3706 = vmatprep.subr.mxu0 0.0
        %3707 = vmatpush2.xpose.msra.mxu0 0.0
        %3708 = vmatprep.subr.mxu0 0.0
        %3709 = vmatpush2.xpose.msra.mxu0 0.0
        %3710 = vmatprep.subr.mxu0 0.0
        %3711 = vmatpush2.xpose.msra.mxu0 0.0
        %3712 = vmatprep.subr.mxu0 0.0
        %3713 = vmatpush2.xpose.msra.mxu0 0.0
        %3714 = vmatprep.subr.mxu0 0.0
        %3715 = vmatpush2.xpose.msra.mxu0 0.0
        %3716 = vmatprep.mubr.f32.mxu0 0.0
        %3717 = vmatmul.mubr.f32.gmra.mxu0 %v1078
        %v3718 = vpop.f32.mrf.mxu0
        %v3719 = vadd.f32 %v3525, %v3718
        %v3720 = vpop.f32.mrf.mxu0
        %3721 = vmatprep.mubr.f32.mxu0 0.0
        %3722 = vmatmul.mubr.f32.gmra.mxu0 %v1080
        %v3723 = vpop.f32.mrf.mxu0
        %v3724 = vadd.f32 %v3530, %v3723
        %v3725 = vpop.f32.mrf.mxu0
        %3726 = vmatprep.mubr.f32.mxu0 0.0
        %3727 = vmatmul.mubr.f32.gmra.mxu0 %v1082
        %v3728 = vpop.f32.mrf.mxu0
        %v3729 = vadd.f32 %v3535, %v3728
        %v3730 = vpop.f32.mrf.mxu0
        %3731 = vmatprep.mubr.f32.mxu0 0.0
        %3732 = vmatmul.mubr.f32.gmra.mxu0 %v1084
        %v3733 = vpop.f32.mrf.mxu0
        %v3734 = vadd.f32 %v3540, %v3733
        %v3735 = vpop.f32.mrf.mxu0
        %3736 = vdwg.mxu0
        %v3738 = vsel %vm759, %v1074, 0
        %v3741 = vsel %vm759, %v1075, 0
        %v3744 = vsel %vm759, %v1076, 0
        %v3747 = vsel %vm759, %v1077, 0
        %3749 = vmatprep.subr.mxu0 0.0
        %3750 = vmatpush1.xpose.msra.mxu0 0.0
        %3751 = vmatprep.subr.mxu0 0.0
        %3752 = vmatpush1.xpose.msra.mxu0 0.0
        %3753 = vmatprep.subr.mxu0 0.0
        %3754 = vmatpush1.xpose.msra.mxu0 0.0
        %3755 = vmatprep.subr.mxu0 0.0
        %3756 = vmatpush1.xpose.msra.mxu0 0.0
        %3757 = vmatprep.subr.mxu0 0.0
        %3758 = vmatpush1.xpose.msra.mxu0 0.0
        %3759 = vmatprep.subr.mxu0 0.0
        %3760 = vmatpush1.xpose.msra.mxu0 0.0
        %3761 = vmatprep.subr.mxu0 0.0
        %3762 = vmatpush1.xpose.msra.mxu0 0.0
        %3763 = vmatprep.subr.mxu0 0.0
        %3764 = vmatpush1.xpose.msra.mxu0 0.0
        %3765 = vmatprep.subr.mxu0 0.0
        %3766 = vmatpush1.xpose.msra.mxu0 0.0
        %3767 = vmatprep.subr.mxu0 0.0
        %3768 = vmatpush1.xpose.msra.mxu0 0.0
        %3769 = vmatprep.subr.mxu0 0.0
        %3770 = vmatpush1.xpose.msra.mxu0 0.0
        %3771 = vmatprep.subr.mxu0 0.0
        %3772 = vmatpush1.xpose.msra.mxu0 0.0
        %3773 = vmatprep.subr.mxu0 0.0
        %3774 = vmatpush1.xpose.msra.mxu0 %v3747
        %3775 = vmatprep.subr.mxu0 0.0
        %3776 = vmatpush1.xpose.msra.mxu0 %v3744
        %3777 = vmatprep.subr.mxu0 0.0
        %3778 = vmatpush1.xpose.msra.mxu0 %v3741
        %3779 = vmatprep.subr.mxu0 0.0
        %3780 = vmatpush1.xpose.msra.mxu0 %v3738
        %3781 = vmatprep.subr.mxu0 0.0
        %3782 = vmatpush2.xpose.msra.mxu0 0.0
        %3783 = vmatprep.subr.mxu0 0.0
        %3784 = vmatpush2.xpose.msra.mxu0 0.0
        %3785 = vmatprep.subr.mxu0 0.0
        %3786 = vmatpush2.xpose.msra.mxu0 0.0
        %3787 = vmatprep.subr.mxu0 0.0
        %3788 = vmatpush2.xpose.msra.mxu0 0.0
        %3789 = vmatprep.subr.mxu0 0.0
        %3790 = vmatpush2.xpose.msra.mxu0 0.0
        %3791 = vmatprep.subr.mxu0 0.0
        %3792 = vmatpush2.xpose.msra.mxu0 0.0
        %3793 = vmatprep.subr.mxu0 0.0
        %3794 = vmatpush2.xpose.msra.mxu0 0.0
        %3795 = vmatprep.subr.mxu0 0.0
        %3796 = vmatpush2.xpose.msra.mxu0 0.0
        %3797 = vmatprep.subr.mxu0 0.0
        %3798 = vmatpush2.xpose.msra.mxu0 0.0
        %3799 = vmatprep.subr.mxu0 0.0
        %3800 = vmatpush2.xpose.msra.mxu0 0.0
        %3801 = vmatprep.subr.mxu0 0.0
        %3802 = vmatpush2.xpose.msra.mxu0 0.0
        %3803 = vmatprep.subr.mxu0 0.0
        %3804 = vmatpush2.xpose.msra.mxu0 0.0
        %3805 = vmatprep.subr.mxu0 0.0
        %3806 = vmatpush2.xpose.msra.mxu0 0.0
        %3807 = vmatprep.subr.mxu0 0.0
        %3808 = vmatpush2.xpose.msra.mxu0 0.0
        %3809 = vmatprep.subr.mxu0 0.0
        %3810 = vmatpush2.xpose.msra.mxu0 0.0
        %3811 = vmatprep.subr.mxu0 0.0
        %3812 = vmatpush2.xpose.msra.mxu0 0.0
        %3813 = vmatprep.mubr.f32.mxu0 0.0
        %3814 = vmatmul.mubr.f32.gmra.mxu0 %v1179
        %v3815 = vpop.f32.mrf.mxu0
        %v3816 = vadd.f32 %v3622, %v3815
        %v3817 = vpop.f32.mrf.mxu0
        %3818 = vmatprep.mubr.f32.mxu0 0.0
        %3819 = vmatmul.mubr.f32.gmra.mxu0 %v1181
        %v3820 = vpop.f32.mrf.mxu0
        %v3821 = vadd.f32 %v3627, %v3820
        %v3822 = vpop.f32.mrf.mxu0
        %3823 = vmatprep.mubr.f32.mxu0 0.0
        %3824 = vmatmul.mubr.f32.gmra.mxu0 %v1183
        %v3825 = vpop.f32.mrf.mxu0
        %v3826 = vadd.f32 %v3632, %v3825
        %v3827 = vpop.f32.mrf.mxu0
        %3828 = vmatprep.mubr.f32.mxu0 0.0
        %3829 = vmatmul.mubr.f32.gmra.mxu0 %v1185
        %v3830 = vpop.f32.mrf.mxu0
        %v3831 = vadd.f32 %v3637, %v3830
        %v3832 = vpop.f32.mrf.mxu0
        %3833 = vdwg.mxu0
        %v3835 = vsel %vm759, %v3331, 0
        %v3838 = vsel %vm759, %v3336, 0
        %v3841 = vsel %vm759, %v3341, 0
        %v3844 = vsel %vm759, %v3346, 0
        %3846 = vmatprep.subr.mxu0 0.0
        %3847 = vmatpush1.msra.mxu0 0.0
        %3848 = vmatprep.subr.mxu0 0.0
        %3849 = vmatpush1.msra.mxu0 0.0
        %3850 = vmatprep.subr.mxu0 0.0
        %3851 = vmatpush1.msra.mxu0 0.0
        %3852 = vmatprep.subr.mxu0 0.0
        %3853 = vmatpush1.msra.mxu0 0.0
        %3854 = vmatprep.subr.mxu0 0.0
        %3855 = vmatpush1.msra.mxu0 0.0
        %3856 = vmatprep.subr.mxu0 0.0
        %3857 = vmatpush1.msra.mxu0 0.0
        %3858 = vmatprep.subr.mxu0 0.0
        %3859 = vmatpush1.msra.mxu0 0.0
        %3860 = vmatprep.subr.mxu0 0.0
        %3861 = vmatpush1.msra.mxu0 0.0
        %3862 = vmatprep.subr.mxu0 0.0
        %3863 = vmatpush1.msra.mxu0 0.0
        %3864 = vmatprep.subr.mxu0 0.0
        %3865 = vmatpush1.msra.mxu0 0.0
        %3866 = vmatprep.subr.mxu0 0.0
        %3867 = vmatpush1.msra.mxu0 0.0
        %3868 = vmatprep.subr.mxu0 0.0
        %3869 = vmatpush1.msra.mxu0 0.0
        %3870 = vmatprep.subr.mxu0 0.0
        %3871 = vmatpush1.msra.mxu0 %v3734
        %3872 = vmatprep.subr.mxu0 0.0
        %3873 = vmatpush1.msra.mxu0 %v3729
        %3874 = vmatprep.subr.mxu0 0.0
        %3875 = vmatpush1.msra.mxu0 %v3724
        %3876 = vmatprep.subr.mxu0 0.0
        %3877 = vmatpush1.msra.mxu0 %v3719
        %3878 = vmatprep.subr.mxu0 0.0
        %3879 = vmatpush2.msra.mxu0 0.0
        %3880 = vmatprep.subr.mxu0 0.0
        %3881 = vmatpush2.msra.mxu0 0.0
        %3882 = vmatprep.subr.mxu0 0.0
        %3883 = vmatpush2.msra.mxu0 0.0
        %3884 = vmatprep.subr.mxu0 0.0
        %3885 = vmatpush2.msra.mxu0 0.0
        %3886 = vmatprep.subr.mxu0 0.0
        %3887 = vmatpush2.msra.mxu0 0.0
        %3888 = vmatprep.subr.mxu0 0.0
        %3889 = vmatpush2.msra.mxu0 0.0
        %3890 = vmatprep.subr.mxu0 0.0
        %3891 = vmatpush2.msra.mxu0 0.0
        %3892 = vmatprep.subr.mxu0 0.0
        %3893 = vmatpush2.msra.mxu0 0.0
        %3894 = vmatprep.subr.mxu0 0.0
        %3895 = vmatpush2.msra.mxu0 0.0
        %3896 = vmatprep.subr.mxu0 0.0
        %3897 = vmatpush2.msra.mxu0 0.0
        %3898 = vmatprep.subr.mxu0 0.0
        %3899 = vmatpush2.msra.mxu0 0.0
        %3900 = vmatprep.subr.mxu0 0.0
        %3901 = vmatpush2.msra.mxu0 0.0
        %3902 = vmatprep.subr.mxu0 0.0
        %3903 = vmatpush2.msra.mxu0 0.0
        %3904 = vmatprep.subr.mxu0 0.0
        %3905 = vmatpush2.msra.mxu0 0.0
        %3906 = vmatprep.subr.mxu0 0.0
        %3907 = vmatpush2.msra.mxu0 0.0
        %3908 = vmatprep.subr.mxu0 0.0
        %3909 = vmatpush2.msra.mxu0 0.0
        %3910 = vmatprep.mubr.f32.mxu0 0.0
        %3911 = vmatmul.mubr.f32.gmra.mxu0 %v3835
        %v3912 = vpop.f32.mrf.mxu0
        %v3913 = vadd.f32 0.0, %v3912
        %v3914 = vpop.f32.mrf.mxu0
        %3915 = vmatprep.mubr.f32.mxu0 0.0
        %3916 = vmatmul.mubr.f32.gmra.mxu0 %v3838
        %v3917 = vpop.f32.mrf.mxu0
        %v3918 = vadd.f32 0.0, %v3917
        %v3919 = vpop.f32.mrf.mxu0
        %3920 = vmatprep.mubr.f32.mxu0 0.0
        %3921 = vmatmul.mubr.f32.gmra.mxu0 %v3841
        %v3922 = vpop.f32.mrf.mxu0
        %v3923 = vadd.f32 0.0, %v3922
        %v3924 = vpop.f32.mrf.mxu0
        %3925 = vmatprep.mubr.f32.mxu0 0.0
        %3926 = vmatmul.mubr.f32.gmra.mxu0 %v3844
        %v3927 = vpop.f32.mrf.mxu0
        %v3928 = vadd.f32 0.0, %v3927
        %v3929 = vpop.f32.mrf.mxu0
        %3930 = vdwg.mxu0
        %v3932 = vsel %vm759, %v3428, 0
        %v3935 = vsel %vm759, %v3433, 0
        %v3938 = vsel %vm759, %v3438, 0
        %v3941 = vsel %vm759, %v3443, 0
        %3943 = vmatprep.subr.mxu0 0.0
        %3944 = vmatpush1.msra.mxu0 0.0
        %3945 = vmatprep.subr.mxu0 0.0
        %3946 = vmatpush1.msra.mxu0 0.0
        %3947 = vmatprep.subr.mxu0 0.0
        %3948 = vmatpush1.msra.mxu0 0.0
        %3949 = vmatprep.subr.mxu0 0.0
        %3950 = vmatpush1.msra.mxu0 0.0
        %3951 = vmatprep.subr.mxu0 0.0
        %3952 = vmatpush1.msra.mxu0 0.0
        %3953 = vmatprep.subr.mxu0 0.0
        %3954 = vmatpush1.msra.mxu0 0.0
        %3955 = vmatprep.subr.mxu0 0.0
        %3956 = vmatpush1.msra.mxu0 0.0
        %3957 = vmatprep.subr.mxu0 0.0
        %3958 = vmatpush1.msra.mxu0 0.0
        %3959 = vmatprep.subr.mxu0 0.0
        %3960 = vmatpush1.msra.mxu0 0.0
        %3961 = vmatprep.subr.mxu0 0.0
        %3962 = vmatpush1.msra.mxu0 0.0
        %3963 = vmatprep.subr.mxu0 0.0
        %3964 = vmatpush1.msra.mxu0 0.0
        %3965 = vmatprep.subr.mxu0 0.0
        %3966 = vmatpush1.msra.mxu0 0.0
        %3967 = vmatprep.subr.mxu0 0.0
        %3968 = vmatpush1.msra.mxu0 %v3831
        %3969 = vmatprep.subr.mxu0 0.0
        %3970 = vmatpush1.msra.mxu0 %v3826
        %3971 = vmatprep.subr.mxu0 0.0
        %3972 = vmatpush1.msra.mxu0 %v3821
        %3973 = vmatprep.subr.mxu0 0.0
        %3974 = vmatpush1.msra.mxu0 %v3816
        %3975 = vmatprep.subr.mxu0 0.0
        %3976 = vmatpush2.msra.mxu0 0.0
        %3977 = vmatprep.subr.mxu0 0.0
        %3978 = vmatpush2.msra.mxu0 0.0
        %3979 = vmatprep.subr.mxu0 0.0
        %3980 = vmatpush2.msra.mxu0 0.0
        %3981 = vmatprep.subr.mxu0 0.0
        %3982 = vmatpush2.msra.mxu0 0.0
        %3983 = vmatprep.subr.mxu0 0.0
        %3984 = vmatpush2.msra.mxu0 0.0
        %3985 = vmatprep.subr.mxu0 0.0
        %3986 = vmatpush2.msra.mxu0 0.0
        %3987 = vmatprep.subr.mxu0 0.0
        %3988 = vmatpush2.msra.mxu0 0.0
        %3989 = vmatprep.subr.mxu0 0.0
        %3990 = vmatpush2.msra.mxu0 0.0
        %3991 = vmatprep.subr.mxu0 0.0
        %3992 = vmatpush2.msra.mxu0 0.0
        %3993 = vmatprep.subr.mxu0 0.0
        %3994 = vmatpush2.msra.mxu0 0.0
        %3995 = vmatprep.subr.mxu0 0.0
        %3996 = vmatpush2.msra.mxu0 0.0
        %3997 = vmatprep.subr.mxu0 0.0
        %3998 = vmatpush2.msra.mxu0 0.0
        %3999 = vmatprep.subr.mxu0 0.0
        %4000 = vmatpush2.msra.mxu0 0.0
        %4001 = vmatprep.subr.mxu0 0.0
        %4002 = vmatpush2.msra.mxu0 0.0
        %4003 = vmatprep.subr.mxu0 0.0
        %4004 = vmatpush2.msra.mxu0 0.0
        %4005 = vmatprep.subr.mxu0 0.0
        %4006 = vmatpush2.msra.mxu0 0.0
        %4007 = vmatprep.mubr.f32.mxu0 0.0
        %4008 = vmatmul.mubr.f32.gmra.mxu0 %v3932
        %v4009 = vpop.f32.mrf.mxu0
        %v4010 = vadd.f32 0.0, %v4009
        %v4011 = vpop.f32.mrf.mxu0
        %4012 = vmatprep.mubr.f32.mxu0 0.0
        %4013 = vmatmul.mubr.f32.gmra.mxu0 %v3935
        %v4014 = vpop.f32.mrf.mxu0
        %v4015 = vadd.f32 0.0, %v4014
        %v4016 = vpop.f32.mrf.mxu0
        %4017 = vmatprep.mubr.f32.mxu0 0.0
        %4018 = vmatmul.mubr.f32.gmra.mxu0 %v3938
        %v4019 = vpop.f32.mrf.mxu0
        %v4020 = vadd.f32 0.0, %v4019
        %v4021 = vpop.f32.mrf.mxu0
        %4022 = vmatprep.mubr.f32.mxu0 0.0
        %4023 = vmatmul.mubr.f32.gmra.mxu0 %v3941
        %v4024 = vpop.f32.mrf.mxu0
        %v4025 = vadd.f32 0.0, %v4024
        %v4026 = vpop.f32.mrf.mxu0
        %4027 = vdwg.mxu0
        %v4029 = vsel %vm759, %v1668, 0
        %v4032 = vsel %vm759, %v1669, 0
        %v4035 = vsel %vm759, %v1670, 0
        %v4038 = vsel %vm759, %v1671, 0
        %4040 = vmatprep.subr.mxu0 0.0
        %4041 = vmatpush1.msra.mxu0 0.0
        %4042 = vmatprep.subr.mxu0 0.0
        %4043 = vmatpush1.msra.mxu0 0.0
        %4044 = vmatprep.subr.mxu0 0.0
        %4045 = vmatpush1.msra.mxu0 0.0
        %4046 = vmatprep.subr.mxu0 0.0
        %4047 = vmatpush1.msra.mxu0 0.0
        %4048 = vmatprep.subr.mxu0 0.0
        %4049 = vmatpush1.msra.mxu0 0.0
        %4050 = vmatprep.subr.mxu0 0.0
        %4051 = vmatpush1.msra.mxu0 0.0
        %4052 = vmatprep.subr.mxu0 0.0
        %4053 = vmatpush1.msra.mxu0 0.0
        %4054 = vmatprep.subr.mxu0 0.0
        %4055 = vmatpush1.msra.mxu0 0.0
        %4056 = vmatprep.subr.mxu0 0.0
        %4057 = vmatpush1.msra.mxu0 0.0
        %4058 = vmatprep.subr.mxu0 0.0
        %4059 = vmatpush1.msra.mxu0 0.0
        %4060 = vmatprep.subr.mxu0 0.0
        %4061 = vmatpush1.msra.mxu0 0.0
        %4062 = vmatprep.subr.mxu0 0.0
        %4063 = vmatpush1.msra.mxu0 0.0
        %4064 = vmatprep.subr.mxu0 0.0
        %4065 = vmatpush1.msra.mxu0 %v3928
        %4066 = vmatprep.subr.mxu0 0.0
        %4067 = vmatpush1.msra.mxu0 %v3923
        %4068 = vmatprep.subr.mxu0 0.0
        %4069 = vmatpush1.msra.mxu0 %v3918
        %4070 = vmatprep.subr.mxu0 0.0
        %4071 = vmatpush1.msra.mxu0 %v3913
        %4072 = vmatprep.subr.mxu0 0.0
        %4073 = vmatpush2.msra.mxu0 0.0
        %4074 = vmatprep.subr.mxu0 0.0
        %4075 = vmatpush2.msra.mxu0 0.0
        %4076 = vmatprep.subr.mxu0 0.0
        %4077 = vmatpush2.msra.mxu0 0.0
        %4078 = vmatprep.subr.mxu0 0.0
        %4079 = vmatpush2.msra.mxu0 0.0
        %4080 = vmatprep.subr.mxu0 0.0
        %4081 = vmatpush2.msra.mxu0 0.0
        %4082 = vmatprep.subr.mxu0 0.0
        %4083 = vmatpush2.msra.mxu0 0.0
        %4084 = vmatprep.subr.mxu0 0.0
        %4085 = vmatpush2.msra.mxu0 0.0
        %4086 = vmatprep.subr.mxu0 0.0
        %4087 = vmatpush2.msra.mxu0 0.0
        %4088 = vmatprep.subr.mxu0 0.0
        %4089 = vmatpush2.msra.mxu0 0.0
        %4090 = vmatprep.subr.mxu0 0.0
        %4091 = vmatpush2.msra.mxu0 0.0
        %4092 = vmatprep.subr.mxu0 0.0
        %4093 = vmatpush2.msra.mxu0 0.0
        %4094 = vmatprep.subr.mxu0 0.0
        %4095 = vmatpush2.msra.mxu0 0.0
        %4096 = vmatprep.subr.mxu0 0.0
        %4097 = vmatpush2.msra.mxu0 0.0
        %4098 = vmatprep.subr.mxu0 0.0
        %4099 = vmatpush2.msra.mxu0 0.0
        %4100 = vmatprep.subr.mxu0 0.0
        %4101 = vmatpush2.msra.mxu0 0.0
        %4102 = vmatprep.subr.mxu0 0.0
        %4103 = vmatpush2.msra.mxu0 0.0
        %4104 = vmatprep.mubr.f32.mxu0 0.0
        %4105 = vmatmul.mubr.f32.gmra.mxu0 %v4029
        %v4106 = vpop.f32.mrf.mxu0
        %v4107 = vadd.f32 0.0, %v4106
        %v4108 = vpop.f32.mrf.mxu0
        %4109 = vmatprep.mubr.f32.mxu0 0.0
        %4110 = vmatmul.mubr.f32.gmra.mxu0 %v4032
        %v4111 = vpop.f32.mrf.mxu0
        %v4112 = vadd.f32 0.0, %v4111
        %v4113 = vpop.f32.mrf.mxu0
        %4114 = vmatprep.mubr.f32.mxu0 0.0
        %4115 = vmatmul.mubr.f32.gmra.mxu0 %v4035
        %v4116 = vpop.f32.mrf.mxu0
        %v4117 = vadd.f32 0.0, %v4116
        %v4118 = vpop.f32.mrf.mxu0
        %4119 = vmatprep.mubr.f32.mxu0 0.0
        %4120 = vmatmul.mubr.f32.gmra.mxu0 %v4038
        %v4121 = vpop.f32.mrf.mxu0
        %v4122 = vadd.f32 0.0, %v4121
        %v4123 = vpop.f32.mrf.mxu0
        %4124 = vdwg.mxu0
        %v4126 = vsel %vm759, %v1672, 0
        %v4129 = vsel %vm759, %v1673, 0
        %v4132 = vsel %vm759, %v1674, 0
        %v4135 = vsel %vm759, %v1675, 0
        %4137 = vmatprep.subr.mxu0 0.0
        %4138 = vmatpush1.msra.mxu0 0.0
        %4139 = vmatprep.subr.mxu0 0.0
        %4140 = vmatpush1.msra.mxu0 0.0
        %4141 = vmatprep.subr.mxu0 0.0
        %4142 = vmatpush1.msra.mxu0 0.0
        %4143 = vmatprep.subr.mxu0 0.0
        %4144 = vmatpush1.msra.mxu0 0.0
        %4145 = vmatprep.subr.mxu0 0.0
        %4146 = vmatpush1.msra.mxu0 0.0
        %4147 = vmatprep.subr.mxu0 0.0
        %4148 = vmatpush1.msra.mxu0 0.0
        %4149 = vmatprep.subr.mxu0 0.0
        %4150 = vmatpush1.msra.mxu0 0.0
        %4151 = vmatprep.subr.mxu0 0.0
        %4152 = vmatpush1.msra.mxu0 0.0
        %4153 = vmatprep.subr.mxu0 0.0
        %4154 = vmatpush1.msra.mxu0 0.0
        %4155 = vmatprep.subr.mxu0 0.0
        %4156 = vmatpush1.msra.mxu0 0.0
        %4157 = vmatprep.subr.mxu0 0.0
        %4158 = vmatpush1.msra.mxu0 0.0
        %4159 = vmatprep.subr.mxu0 0.0
        %4160 = vmatpush1.msra.mxu0 0.0
        %4161 = vmatprep.subr.mxu0 0.0
        %4162 = vmatpush1.msra.mxu0 %v4025
        %4163 = vmatprep.subr.mxu0 0.0
        %4164 = vmatpush1.msra.mxu0 %v4020
        %4165 = vmatprep.subr.mxu0 0.0
        %4166 = vmatpush1.msra.mxu0 %v4015
        %4167 = vmatprep.subr.mxu0 0.0
        %4168 = vmatpush1.msra.mxu0 %v4010
        %4169 = vmatprep.subr.mxu0 0.0
        %4170 = vmatpush2.msra.mxu0 0.0
        %4171 = vmatprep.subr.mxu0 0.0
        %4172 = vmatpush2.msra.mxu0 0.0
        %4173 = vmatprep.subr.mxu0 0.0
        %4174 = vmatpush2.msra.mxu0 0.0
        %4175 = vmatprep.subr.mxu0 0.0
        %4176 = vmatpush2.msra.mxu0 0.0
        %4177 = vmatprep.subr.mxu0 0.0
        %4178 = vmatpush2.msra.mxu0 0.0
        %4179 = vmatprep.subr.mxu0 0.0
        %4180 = vmatpush2.msra.mxu0 0.0
        %4181 = vmatprep.subr.mxu0 0.0
        %4182 = vmatpush2.msra.mxu0 0.0
        %4183 = vmatprep.subr.mxu0 0.0
        %4184 = vmatpush2.msra.mxu0 0.0
        %4185 = vmatprep.subr.mxu0 0.0
        %4186 = vmatpush2.msra.mxu0 0.0
        %4187 = vmatprep.subr.mxu0 0.0
        %4188 = vmatpush2.msra.mxu0 0.0
        %4189 = vmatprep.subr.mxu0 0.0
        %4190 = vmatpush2.msra.mxu0 0.0
        %4191 = vmatprep.subr.mxu0 0.0
        %4192 = vmatpush2.msra.mxu0 0.0
        %4193 = vmatprep.subr.mxu0 0.0
        %4194 = vmatpush2.msra.mxu0 0.0
        %4195 = vmatprep.subr.mxu0 0.0
        %4196 = vmatpush2.msra.mxu0 0.0
        %4197 = vmatprep.subr.mxu0 0.0
        %4198 = vmatpush2.msra.mxu0 0.0
        %4199 = vmatprep.subr.mxu0 0.0
        %4200 = vmatpush2.msra.mxu0 0.0
        %4201 = vmatprep.mubr.f32.mxu0 0.0
        %4202 = vmatmul.mubr.f32.gmra.mxu0 %v4126
        %v4203 = vpop.f32.mrf.mxu0
        %v4204 = vadd.f32 0.0, %v4203
        %v4205 = vpop.f32.mrf.mxu0
        %4206 = vmatprep.mubr.f32.mxu0 0.0
        %4207 = vmatmul.mubr.f32.gmra.mxu0 %v4129
        %v4208 = vpop.f32.mrf.mxu0
        %v4209 = vadd.f32 0.0, %v4208
        %v4210 = vpop.f32.mrf.mxu0
        %4211 = vmatprep.mubr.f32.mxu0 0.0
        %4212 = vmatmul.mubr.f32.gmra.mxu0 %v4132
        %v4213 = vpop.f32.mrf.mxu0
        %v4214 = vadd.f32 0.0, %v4213
        %v4215 = vpop.f32.mrf.mxu0
        %4216 = vmatprep.mubr.f32.mxu0 0.0
        %4217 = vmatmul.mubr.f32.gmra.mxu0 %v4135
        %v4218 = vpop.f32.mrf.mxu0
        %v4219 = vadd.f32 0.0, %v4218
        %v4220 = vpop.f32.mrf.mxu0
        %4221 = vdwg.mxu0
        %4222 = vmatprep.subr.mxu0 0.0
        %4223 = vmatpush1.xpose.msra.mxu0 0.0
        %4224 = vmatprep.subr.mxu0 0.0
        %4225 = vmatpush1.xpose.msra.mxu0 0.0
        %4226 = vmatprep.subr.mxu0 0.0
        %4227 = vmatpush1.xpose.msra.mxu0 0.0
        %4228 = vmatprep.subr.mxu0 0.0
        %4229 = vmatpush1.xpose.msra.mxu0 0.0
        %4230 = vmatprep.subr.mxu0 0.0
        %4231 = vmatpush1.xpose.msra.mxu0 0.0
        %4232 = vmatprep.subr.mxu0 0.0
        %4233 = vmatpush1.xpose.msra.mxu0 0.0
        %4234 = vmatprep.subr.mxu0 0.0
        %4235 = vmatpush1.xpose.msra.mxu0 0.0
        %4236 = vmatprep.subr.mxu0 0.0
        %4237 = vmatpush1.xpose.msra.mxu0 0.0
        %4238 = vmatprep.subr.mxu0 0.0
        %4239 = vmatpush1.xpose.msra.mxu0 0.0
        %4240 = vmatprep.subr.mxu0 0.0
        %4241 = vmatpush1.xpose.msra.mxu0 0.0
        %4242 = vmatprep.subr.mxu0 0.0
        %4243 = vmatpush1.xpose.msra.mxu0 0.0
        %4244 = vmatprep.subr.mxu0 0.0
        %4245 = vmatpush1.xpose.msra.mxu0 0.0
        %4246 = vmatprep.subr.mxu0 0.0
        %4247 = vmatpush1.xpose.msra.mxu0 %v3650
        %4248 = vmatprep.subr.mxu0 0.0
        %4249 = vmatpush1.xpose.msra.mxu0 %v3647
        %4250 = vmatprep.subr.mxu0 0.0
        %4251 = vmatpush1.xpose.msra.mxu0 %v3644
        %4252 = vmatprep.subr.mxu0 0.0
        %4253 = vmatpush1.xpose.msra.mxu0 %v3641
        %4254 = vmatprep.subr.mxu0 0.0
        %4255 = vmatpush2.xpose.msra.mxu0 0.0
        %4256 = vmatprep.subr.mxu0 0.0
        %4257 = vmatpush2.xpose.msra.mxu0 0.0
        %4258 = vmatprep.subr.mxu0 0.0
        %4259 = vmatpush2.xpose.msra.mxu0 0.0
        %4260 = vmatprep.subr.mxu0 0.0
        %4261 = vmatpush2.xpose.msra.mxu0 0.0
        %4262 = vmatprep.subr.mxu0 0.0
        %4263 = vmatpush2.xpose.msra.mxu0 0.0
        %4264 = vmatprep.subr.mxu0 0.0
        %4265 = vmatpush2.xpose.msra.mxu0 0.0
        %4266 = vmatprep.subr.mxu0 0.0
        %4267 = vmatpush2.xpose.msra.mxu0 0.0
        %4268 = vmatprep.subr.mxu0 0.0
        %4269 = vmatpush2.xpose.msra.mxu0 0.0
        %4270 = vmatprep.subr.mxu0 0.0
        %4271 = vmatpush2.xpose.msra.mxu0 0.0
        %4272 = vmatprep.subr.mxu0 0.0
        %4273 = vmatpush2.xpose.msra.mxu0 0.0
        %4274 = vmatprep.subr.mxu0 0.0
        %4275 = vmatpush2.xpose.msra.mxu0 0.0
        %4276 = vmatprep.subr.mxu0 0.0
        %4277 = vmatpush2.xpose.msra.mxu0 0.0
        %4278 = vmatprep.subr.mxu0 0.0
        %4279 = vmatpush2.xpose.msra.mxu0 0.0
        %4280 = vmatprep.subr.mxu0 0.0
        %4281 = vmatpush2.xpose.msra.mxu0 0.0
        %4282 = vmatprep.subr.mxu0 0.0
        %4283 = vmatpush2.xpose.msra.mxu0 0.0
        %4284 = vmatprep.subr.mxu0 0.0
        %4285 = vmatpush2.xpose.msra.mxu0 0.0
        %4286 = vmatprep.mubr.f32.mxu0 0.0
        %4287 = vmatmul.mubr.f32.gmra.mxu0 %v1482
        %v4288 = vpop.f32.mrf.mxu0
        %v4289 = vadd.f32 %v4107, %v4288
        %v4290 = vpop.f32.mrf.mxu0
        %4291 = vmatprep.mubr.f32.mxu0 0.0
        %4292 = vmatmul.mubr.f32.gmra.mxu0 %v1484
        %v4293 = vpop.f32.mrf.mxu0
        %v4294 = vadd.f32 %v4112, %v4293
        %v4295 = vpop.f32.mrf.mxu0
        %4296 = vmatprep.mubr.f32.mxu0 0.0
        %4297 = vmatmul.mubr.f32.gmra.mxu0 %v1486
        %v4298 = vpop.f32.mrf.mxu0
        %v4299 = vadd.f32 %v4117, %v4298
        %v4300 = vpop.f32.mrf.mxu0
        %4301 = vmatprep.mubr.f32.mxu0 0.0
        %4302 = vmatmul.mubr.f32.gmra.mxu0 %v1488
        %v4303 = vpop.f32.mrf.mxu0
        %v4304 = vadd.f32 %v4122, %v4303
        %v4305 = vpop.f32.mrf.mxu0
        %4306 = vdwg.mxu0
        %4307 = vmatprep.subr.mxu0 0.0
        %4308 = vmatpush1.xpose.msra.mxu0 0.0
        %4309 = vmatprep.subr.mxu0 0.0
        %4310 = vmatpush1.xpose.msra.mxu0 0.0
        %4311 = vmatprep.subr.mxu0 0.0
        %4312 = vmatpush1.xpose.msra.mxu0 0.0
        %4313 = vmatprep.subr.mxu0 0.0
        %4314 = vmatpush1.xpose.msra.mxu0 0.0
        %4315 = vmatprep.subr.mxu0 0.0
        %4316 = vmatpush1.xpose.msra.mxu0 0.0
        %4317 = vmatprep.subr.mxu0 0.0
        %4318 = vmatpush1.xpose.msra.mxu0 0.0
        %4319 = vmatprep.subr.mxu0 0.0
        %4320 = vmatpush1.xpose.msra.mxu0 0.0
        %4321 = vmatprep.subr.mxu0 0.0
        %4322 = vmatpush1.xpose.msra.mxu0 0.0
        %4323 = vmatprep.subr.mxu0 0.0
        %4324 = vmatpush1.xpose.msra.mxu0 0.0
        %4325 = vmatprep.subr.mxu0 0.0
        %4326 = vmatpush1.xpose.msra.mxu0 0.0
        %4327 = vmatprep.subr.mxu0 0.0
        %4328 = vmatpush1.xpose.msra.mxu0 0.0
        %4329 = vmatprep.subr.mxu0 0.0
        %4330 = vmatpush1.xpose.msra.mxu0 0.0
        %4331 = vmatprep.subr.mxu0 0.0
        %4332 = vmatpush1.xpose.msra.mxu0 %v3747
        %4333 = vmatprep.subr.mxu0 0.0
        %4334 = vmatpush1.xpose.msra.mxu0 %v3744
        %4335 = vmatprep.subr.mxu0 0.0
        %4336 = vmatpush1.xpose.msra.mxu0 %v3741
        %4337 = vmatprep.subr.mxu0 0.0
        %4338 = vmatpush1.xpose.msra.mxu0 %v3738
        %4339 = vmatprep.subr.mxu0 0.0
        %4340 = vmatpush2.xpose.msra.mxu0 0.0
        %4341 = vmatprep.subr.mxu0 0.0
        %4342 = vmatpush2.xpose.msra.mxu0 0.0
        %4343 = vmatprep.subr.mxu0 0.0
        %4344 = vmatpush2.xpose.msra.mxu0 0.0
        %4345 = vmatprep.subr.mxu0 0.0
        %4346 = vmatpush2.xpose.msra.mxu0 0.0
        %4347 = vmatprep.subr.mxu0 0.0
        %4348 = vmatpush2.xpose.msra.mxu0 0.0
        %4349 = vmatprep.subr.mxu0 0.0
        %4350 = vmatpush2.xpose.msra.mxu0 0.0
        %4351 = vmatprep.subr.mxu0 0.0
        %4352 = vmatpush2.xpose.msra.mxu0 0.0
        %4353 = vmatprep.subr.mxu0 0.0
        %4354 = vmatpush2.xpose.msra.mxu0 0.0
        %4355 = vmatprep.subr.mxu0 0.0
        %4356 = vmatpush2.xpose.msra.mxu0 0.0
        %4357 = vmatprep.subr.mxu0 0.0
        %4358 = vmatpush2.xpose.msra.mxu0 0.0
        %4359 = vmatprep.subr.mxu0 0.0
        %4360 = vmatpush2.xpose.msra.mxu0 0.0
        %4361 = vmatprep.subr.mxu0 0.0
        %4362 = vmatpush2.xpose.msra.mxu0 0.0
        %4363 = vmatprep.subr.mxu0 0.0
        %4364 = vmatpush2.xpose.msra.mxu0 0.0
        %4365 = vmatprep.subr.mxu0 0.0
        %4366 = vmatpush2.xpose.msra.mxu0 0.0
        %4367 = vmatprep.subr.mxu0 0.0
        %4368 = vmatpush2.xpose.msra.mxu0 0.0
        %4369 = vmatprep.subr.mxu0 0.0
        %4370 = vmatpush2.xpose.msra.mxu0 0.0
        %4371 = vmatprep.mubr.f32.mxu0 0.0
        %4372 = vmatmul.mubr.f32.gmra.mxu0 %v1575
        %v4373 = vpop.f32.mrf.mxu0
        %v4374 = vadd.f32 %v4204, %v4373
        %v4375 = vpop.f32.mrf.mxu0
        %4376 = vmatprep.mubr.f32.mxu0 0.0
        %4377 = vmatmul.mubr.f32.gmra.mxu0 %v1577
        %v4378 = vpop.f32.mrf.mxu0
        %v4379 = vadd.f32 %v4209, %v4378
        %v4380 = vpop.f32.mrf.mxu0
        %4381 = vmatprep.mubr.f32.mxu0 0.0
        %4382 = vmatmul.mubr.f32.gmra.mxu0 %v1579
        %v4383 = vpop.f32.mrf.mxu0
        %v4384 = vadd.f32 %v4214, %v4383
        %v4385 = vpop.f32.mrf.mxu0
        %4386 = vmatprep.mubr.f32.mxu0 0.0
        %4387 = vmatmul.mubr.f32.gmra.mxu0 %v1581
        %v4388 = vpop.f32.mrf.mxu0
        %v4389 = vadd.f32 %v4219, %v4388
        %v4390 = vpop.f32.mrf.mxu0
        %4391 = vdwg.mxu0
        %v4393 = vsel %vm759, %v1846, 0
        %v4396 = vsel %vm759, %v1847, 0
        %v4399 = vsel %vm759, %v1848, 0
        %v4402 = vsel %vm759, %v1849, 0
        %4404 = vmatprep.subr.mxu0 0.0
        %4405 = vmatpush1.msra.mxu0 0.0
        %4406 = vmatprep.subr.mxu0 0.0
        %4407 = vmatpush1.msra.mxu0 0.0
        %4408 = vmatprep.subr.mxu0 0.0
        %4409 = vmatpush1.msra.mxu0 0.0
        %4410 = vmatprep.subr.mxu0 0.0
        %4411 = vmatpush1.msra.mxu0 0.0
        %4412 = vmatprep.subr.mxu0 0.0
        %4413 = vmatpush1.msra.mxu0 0.0
        %4414 = vmatprep.subr.mxu0 0.0
        %4415 = vmatpush1.msra.mxu0 0.0
        %4416 = vmatprep.subr.mxu0 0.0
        %4417 = vmatpush1.msra.mxu0 0.0
        %4418 = vmatprep.subr.mxu0 0.0
        %4419 = vmatpush1.msra.mxu0 0.0
        %4420 = vmatprep.subr.mxu0 0.0
        %4421 = vmatpush1.msra.mxu0 0.0
        %4422 = vmatprep.subr.mxu0 0.0
        %4423 = vmatpush1.msra.mxu0 0.0
        %4424 = vmatprep.subr.mxu0 0.0
        %4425 = vmatpush1.msra.mxu0 0.0
        %4426 = vmatprep.subr.mxu0 0.0
        %4427 = vmatpush1.msra.mxu0 0.0
        %4428 = vmatprep.subr.mxu0 0.0
        %4429 = vmatpush1.msra.mxu0 %v738
        %4430 = vmatprep.subr.mxu0 0.0
        %4431 = vmatpush1.msra.mxu0 %v737
        %4432 = vmatprep.subr.mxu0 0.0
        %4433 = vmatpush1.msra.mxu0 %v736
        %4434 = vmatprep.subr.mxu0 0.0
        %4435 = vmatpush1.msra.mxu0 %v735
        %4436 = vmatprep.subr.mxu0 0.0
        %4437 = vmatpush2.msra.mxu0 0.0
        %4438 = vmatprep.subr.mxu0 0.0
        %4439 = vmatpush2.msra.mxu0 0.0
        %4440 = vmatprep.subr.mxu0 0.0
        %4441 = vmatpush2.msra.mxu0 0.0
        %4442 = vmatprep.subr.mxu0 0.0
        %4443 = vmatpush2.msra.mxu0 0.0
        %4444 = vmatprep.subr.mxu0 0.0
        %4445 = vmatpush2.msra.mxu0 0.0
        %4446 = vmatprep.subr.mxu0 0.0
        %4447 = vmatpush2.msra.mxu0 0.0
        %4448 = vmatprep.subr.mxu0 0.0
        %4449 = vmatpush2.msra.mxu0 0.0
        %4450 = vmatprep.subr.mxu0 0.0
        %4451 = vmatpush2.msra.mxu0 0.0
        %4452 = vmatprep.subr.mxu0 0.0
        %4453 = vmatpush2.msra.mxu0 0.0
        %4454 = vmatprep.subr.mxu0 0.0
        %4455 = vmatpush2.msra.mxu0 0.0
        %4456 = vmatprep.subr.mxu0 0.0
        %4457 = vmatpush2.msra.mxu0 0.0
        %4458 = vmatprep.subr.mxu0 0.0
        %4459 = vmatpush2.msra.mxu0 0.0
        %4460 = vmatprep.subr.mxu0 0.0
        %4461 = vmatpush2.msra.mxu0 0.0
        %4462 = vmatprep.subr.mxu0 0.0
        %4463 = vmatpush2.msra.mxu0 0.0
        %4464 = vmatprep.subr.mxu0 0.0
        %4465 = vmatpush2.msra.mxu0 0.0
        %4466 = vmatprep.subr.mxu0 0.0
        %4467 = vmatpush2.msra.mxu0 0.0
        %4468 = vmatprep.mubr.f32.mxu0 0.0
        %4469 = vmatmul.mubr.f32.gmra.mxu0 %v4393
        %v4470 = vpop.f32.mrf.mxu0
        %v4471 = vadd.f32 0.0, %v4470
        %v4472 = vpop.f32.mrf.mxu0
        %4473 = vmatprep.mubr.f32.mxu0 0.0
        %4474 = vmatmul.mubr.f32.gmra.mxu0 %v4396
        %v4475 = vpop.f32.mrf.mxu0
        %v4476 = vadd.f32 0.0, %v4475
        %v4477 = vpop.f32.mrf.mxu0
        %4478 = vmatprep.mubr.f32.mxu0 0.0
        %4479 = vmatmul.mubr.f32.gmra.mxu0 %v4399
        %v4480 = vpop.f32.mrf.mxu0
        %v4481 = vadd.f32 0.0, %v4480
        %v4482 = vpop.f32.mrf.mxu0
        %4483 = vmatprep.mubr.f32.mxu0 0.0
        %4484 = vmatmul.mubr.f32.gmra.mxu0 %v4402
        %v4485 = vpop.f32.mrf.mxu0
        %v4486 = vadd.f32 0.0, %v4485
        %v4487 = vpop.f32.mrf.mxu0
        %4488 = vdwg.mxu0
        %v4490 = vsel %vm759, %v1850, 0
        %v4493 = vsel %vm759, %v1851, 0
        %v4496 = vsel %vm759, %v1852, 0
        %v4499 = vsel %vm759, %v1853, 0
        %4501 = vmatprep.subr.mxu0 0.0
        %4502 = vmatpush1.msra.mxu0 0.0
        %4503 = vmatprep.subr.mxu0 0.0
        %4504 = vmatpush1.msra.mxu0 0.0
        %4505 = vmatprep.subr.mxu0 0.0
        %4506 = vmatpush1.msra.mxu0 0.0
        %4507 = vmatprep.subr.mxu0 0.0
        %4508 = vmatpush1.msra.mxu0 0.0
        %4509 = vmatprep.subr.mxu0 0.0
        %4510 = vmatpush1.msra.mxu0 0.0
        %4511 = vmatprep.subr.mxu0 0.0
        %4512 = vmatpush1.msra.mxu0 0.0
        %4513 = vmatprep.subr.mxu0 0.0
        %4514 = vmatpush1.msra.mxu0 0.0
        %4515 = vmatprep.subr.mxu0 0.0
        %4516 = vmatpush1.msra.mxu0 0.0
        %4517 = vmatprep.subr.mxu0 0.0
        %4518 = vmatpush1.msra.mxu0 0.0
        %4519 = vmatprep.subr.mxu0 0.0
        %4520 = vmatpush1.msra.mxu0 0.0
        %4521 = vmatprep.subr.mxu0 0.0
        %4522 = vmatpush1.msra.mxu0 0.0
        %4523 = vmatprep.subr.mxu0 0.0
        %4524 = vmatpush1.msra.mxu0 0.0
        %4525 = vmatprep.subr.mxu0 0.0
        %4526 = vmatpush1.msra.mxu0 %v1065
        %4527 = vmatprep.subr.mxu0 0.0
        %4528 = vmatpush1.msra.mxu0 %v1063
        %4529 = vmatprep.subr.mxu0 0.0
        %4530 = vmatpush1.msra.mxu0 %v1061
        %4531 = vmatprep.subr.mxu0 0.0
        %4532 = vmatpush1.msra.mxu0 %v1059
        %4533 = vmatprep.subr.mxu0 0.0
        %4534 = vmatpush2.msra.mxu0 0.0
        %4535 = vmatprep.subr.mxu0 0.0
        %4536 = vmatpush2.msra.mxu0 0.0
        %4537 = vmatprep.subr.mxu0 0.0
        %4538 = vmatpush2.msra.mxu0 0.0
        %4539 = vmatprep.subr.mxu0 0.0
        %4540 = vmatpush2.msra.mxu0 0.0
        %4541 = vmatprep.subr.mxu0 0.0
        %4542 = vmatpush2.msra.mxu0 0.0
        %4543 = vmatprep.subr.mxu0 0.0
        %4544 = vmatpush2.msra.mxu0 0.0
        %4545 = vmatprep.subr.mxu0 0.0
        %4546 = vmatpush2.msra.mxu0 0.0
        %4547 = vmatprep.subr.mxu0 0.0
        %4548 = vmatpush2.msra.mxu0 0.0
        %4549 = vmatprep.subr.mxu0 0.0
        %4550 = vmatpush2.msra.mxu0 0.0
        %4551 = vmatprep.subr.mxu0 0.0
        %4552 = vmatpush2.msra.mxu0 0.0
        %4553 = vmatprep.subr.mxu0 0.0
        %4554 = vmatpush2.msra.mxu0 0.0
        %4555 = vmatprep.subr.mxu0 0.0
        %4556 = vmatpush2.msra.mxu0 0.0
        %4557 = vmatprep.subr.mxu0 0.0
        %4558 = vmatpush2.msra.mxu0 0.0
        %4559 = vmatprep.subr.mxu0 0.0
        %4560 = vmatpush2.msra.mxu0 0.0
        %4561 = vmatprep.subr.mxu0 0.0
        %4562 = vmatpush2.msra.mxu0 0.0
        %4563 = vmatprep.subr.mxu0 0.0
        %4564 = vmatpush2.msra.mxu0 0.0
        %4565 = vmatprep.mubr.f32.mxu0 0.0
        %4566 = vmatmul.mubr.f32.gmra.mxu0 %v4490
        %v4567 = vpop.f32.mrf.mxu0
        %v4568 = vadd.f32 0.0, %v4567
        %v4569 = vpop.f32.mrf.mxu0
        %4570 = vmatprep.mubr.f32.mxu0 0.0
        %4571 = vmatmul.mubr.f32.gmra.mxu0 %v4493
        %v4572 = vpop.f32.mrf.mxu0
        %v4573 = vadd.f32 0.0, %v4572
        %v4574 = vpop.f32.mrf.mxu0
        %4575 = vmatprep.mubr.f32.mxu0 0.0
        %4576 = vmatmul.mubr.f32.gmra.mxu0 %v4496
        %v4577 = vpop.f32.mrf.mxu0
        %v4578 = vadd.f32 0.0, %v4577
        %v4579 = vpop.f32.mrf.mxu0
        %4580 = vmatprep.mubr.f32.mxu0 0.0
        %4581 = vmatmul.mubr.f32.gmra.mxu0 %v4499
        %v4582 = vpop.f32.mrf.mxu0
        %v4583 = vadd.f32 0.0, %v4582
        %v4584 = vpop.f32.mrf.mxu0
        %4585 = vdwg.mxu0
        %v4586 = vadd.f32 %v4289, %v4471
        %v4587 = vadd.f32 %v4294, %v4476
        %v4588 = vadd.f32 %v4299, %v4481
        %v4589 = vadd.f32 %v4304, %v4486
        %v4590 = vadd.f32 %v4374, %v4568
        %v4591 = vadd.f32 %v4379, %v4573
        %v4592 = vadd.f32 %v4384, %v4578
        %v4593 = vadd.f32 %v4389, %v4583
        %4595 = vrot.lane.b32.xlu0 %v864, 96
        %v4596 = vpop.permute.xlu0 %4595
        %v4598 = vlaneseq
        %v4599 = vshrl.u32 %v4598, 7
        %v4600 = vsub.s32 7, %v4599
        %v4601 = vrot.slane %v864, %v4600
        %v4602 = vlaneseq
        %v4603 = vshrl.u32 %v4602, 7
        %v4604 = vsub.s32 7, %v4603
        %v4605 = vrot.slane %v4596, %v4604
        %v4606 = vmul.f32 %v1070, %v4601
        %v4607 = vmul.f32 %v1071, %v4601
        %v4608 = vmul.f32 %v1072, %v4601
        %v4609 = vmul.f32 %v1073, %v4601
        %v4610 = vmul.f32 %v1074, %v4605
        %v4611 = vmul.f32 %v1075, %v4605
        %v4612 = vmul.f32 %v1076, %v4605
        %v4613 = vmul.f32 %v1077, %v4605
        %v4614 = vmul.f32 %v994, %v4601
        %v4615 = vmul.f32 %v995, %v4601
        %v4616 = vmul.f32 %v996, %v4601
        %v4617 = vmul.f32 %v997, %v4601
        %v4618 = vmul.f32 %v1043, %v4605
        %v4619 = vmul.f32 %v1045, %v4605
        %v4620 = vmul.f32 %v1047, %v4605
        %v4621 = vmul.f32 %v1049, %v4605
        %4622 = vxpose.xlu0.b32.start [1/16] %v3913, 128
        %4623 = vxpose.xlu0.b32.cont [2/16] %v3918, 128
        %4624 = vxpose.xlu0.b32.cont [3/16] %v3923, 128
        %4625 = vxpose.xlu0.b32.cont [4/16] %v3928, 128
        %4626 = vxpose.xlu0.b32.cont [5/16] 0.0, 128
        %4627 = vxpose.xlu0.b32.cont [6/16] 0.0, 128
        %4628 = vxpose.xlu0.b32.cont [7/16] 0.0, 128
        %4629 = vxpose.xlu0.b32.cont [8/16] 0.0, 128
        %4630 = vxpose.xlu0.b32.cont [9/16] 0.0, 128
        %4631 = vxpose.xlu0.b32.cont [10/16] 0.0, 128
        %4632 = vxpose.xlu0.b32.cont [11/16] 0.0, 128
        %4633 = vxpose.xlu0.b32.cont [12/16] 0.0, 128
        %4634 = vxpose.xlu0.b32.cont [13/16] 0.0, 128
        %4635 = vxpose.xlu0.b32.cont [14/16] 0.0, 128
        %4636 = vxpose.xlu0.b32.cont [15/16] 0.0, 128
        %4637 = vxpose.xlu0.b32.end [16/16] 0.0, 128
        %v4638 = vpop.trf.xlu0
        %v4639 = vpop.trf.xlu0
        %v4640 = vpop.trf.xlu0
        %v4641 = vpop.trf.xlu0
        %v4642 = vpop.trf.xlu0
        %v4643 = vpop.trf.xlu0
        %v4644 = vpop.trf.xlu0
        %v4645 = vpop.trf.xlu0
        %v4646 = vpop.trf.xlu0
        %v4647 = vpop.trf.xlu0
        %v4648 = vpop.trf.xlu0
        %v4649 = vpop.trf.xlu0
        %v4650 = vpop.trf.xlu0
        %v4651 = vpop.trf.xlu0
        %v4652 = vpop.trf.xlu0
        %v4653 = vpop.trf.xlu0
        %v4655 = vsel %vm759, %v4638, 0
        %v4658 = vsel %vm759, %v4639, 0
        %v4661 = vsel %vm759, %v4640, 0
        %v4664 = vsel %vm759, %v4641, 0
        %4666 = vmatprep.subr.mxu0 0.0
        %4667 = vmatpush1.msra.mxu0 0.0
        %4668 = vmatprep.subr.mxu0 0.0
        %4669 = vmatpush1.msra.mxu0 0.0
        %4670 = vmatprep.subr.mxu0 0.0
        %4671 = vmatpush1.msra.mxu0 0.0
        %4672 = vmatprep.subr.mxu0 0.0
        %4673 = vmatpush1.msra.mxu0 0.0
        %4674 = vmatprep.subr.mxu0 0.0
        %4675 = vmatpush1.msra.mxu0 0.0
        %4676 = vmatprep.subr.mxu0 0.0
        %4677 = vmatpush1.msra.mxu0 0.0
        %4678 = vmatprep.subr.mxu0 0.0
        %4679 = vmatpush1.msra.mxu0 0.0
        %4680 = vmatprep.subr.mxu0 0.0
        %4681 = vmatpush1.msra.mxu0 0.0
        %4682 = vmatprep.subr.mxu0 0.0
        %4683 = vmatpush1.msra.mxu0 0.0
        %4684 = vmatprep.subr.mxu0 0.0
        %4685 = vmatpush1.msra.mxu0 0.0
        %4686 = vmatprep.subr.mxu0 0.0
        %4687 = vmatpush1.msra.mxu0 0.0
        %4688 = vmatprep.subr.mxu0 0.0
        %4689 = vmatpush1.msra.mxu0 0.0
        %4690 = vmatprep.subr.mxu0 0.0
        %4691 = vmatpush1.msra.mxu0 %v4617
        %4692 = vmatprep.subr.mxu0 0.0
        %4693 = vmatpush1.msra.mxu0 %v4616
        %4694 = vmatprep.subr.mxu0 0.0
        %4695 = vmatpush1.msra.mxu0 %v4615
        %4696 = vmatprep.subr.mxu0 0.0
        %4697 = vmatpush1.msra.mxu0 %v4614
        %4698 = vmatprep.subr.mxu0 0.0
        %4699 = vmatpush2.msra.mxu0 0.0
        %4700 = vmatprep.subr.mxu0 0.0
        %4701 = vmatpush2.msra.mxu0 0.0
        %4702 = vmatprep.subr.mxu0 0.0
        %4703 = vmatpush2.msra.mxu0 0.0
        %4704 = vmatprep.subr.mxu0 0.0
        %4705 = vmatpush2.msra.mxu0 0.0
        %4706 = vmatprep.subr.mxu0 0.0
        %4707 = vmatpush2.msra.mxu0 0.0
        %4708 = vmatprep.subr.mxu0 0.0
        %4709 = vmatpush2.msra.mxu0 0.0
        %4710 = vmatprep.subr.mxu0 0.0
        %4711 = vmatpush2.msra.mxu0 0.0
        %4712 = vmatprep.subr.mxu0 0.0
        %4713 = vmatpush2.msra.mxu0 0.0
        %4714 = vmatprep.subr.mxu0 0.0
        %4715 = vmatpush2.msra.mxu0 0.0
        %4716 = vmatprep.subr.mxu0 0.0
        %4717 = vmatpush2.msra.mxu0 0.0
        %4718 = vmatprep.subr.mxu0 0.0
        %4719 = vmatpush2.msra.mxu0 0.0
        %4720 = vmatprep.subr.mxu0 0.0
        %4721 = vmatpush2.msra.mxu0 0.0
        %4722 = vmatprep.subr.mxu0 0.0
        %4723 = vmatpush2.msra.mxu0 0.0
        %4724 = vmatprep.subr.mxu0 0.0
        %4725 = vmatpush2.msra.mxu0 0.0
        %4726 = vmatprep.subr.mxu0 0.0
        %4727 = vmatpush2.msra.mxu0 0.0
        %4728 = vmatprep.subr.mxu0 0.0
        %4729 = vmatpush2.msra.mxu0 0.0
        %4730 = vmatprep.mubr.f32.mxu0 0.0
        %4731 = vmatmul.mubr.f32.gmra.mxu0 %v4655
        %v4732 = vpop.f32.mrf.mxu0
        %v4733 = vadd.f32 0.0, %v4732
        %v4734 = vpop.f32.mrf.mxu0
        %4735 = vmatprep.mubr.f32.mxu0 0.0
        %4736 = vmatmul.mubr.f32.gmra.mxu0 %v4658
        %v4737 = vpop.f32.mrf.mxu0
        %v4738 = vadd.f32 0.0, %v4737
        %v4739 = vpop.f32.mrf.mxu0
        %4740 = vmatprep.mubr.f32.mxu0 0.0
        %4741 = vmatmul.mubr.f32.gmra.mxu0 %v4661
        %v4742 = vpop.f32.mrf.mxu0
        %v4743 = vadd.f32 0.0, %v4742
        %v4744 = vpop.f32.mrf.mxu0
        %4745 = vmatprep.mubr.f32.mxu0 0.0
        %4746 = vmatmul.mubr.f32.gmra.mxu0 %v4664
        %v4747 = vpop.f32.mrf.mxu0
        %v4748 = vadd.f32 0.0, %v4747
        %v4749 = vpop.f32.mrf.mxu0
        %4750 = vdwg.mxu0
        %4751 = vxpose.xlu0.b32.start [1/16] %v4010, 128
        %4752 = vxpose.xlu0.b32.cont [2/16] %v4015, 128
        %4753 = vxpose.xlu0.b32.cont [3/16] %v4020, 128
        %4754 = vxpose.xlu0.b32.cont [4/16] %v4025, 128
        %4755 = vxpose.xlu0.b32.cont [5/16] 0.0, 128
        %4756 = vxpose.xlu0.b32.cont [6/16] 0.0, 128
        %4757 = vxpose.xlu0.b32.cont [7/16] 0.0, 128
        %4758 = vxpose.xlu0.b32.cont [8/16] 0.0, 128
        %4759 = vxpose.xlu0.b32.cont [9/16] 0.0, 128
        %4760 = vxpose.xlu0.b32.cont [10/16] 0.0, 128
        %4761 = vxpose.xlu0.b32.cont [11/16] 0.0, 128
        %4762 = vxpose.xlu0.b32.cont [12/16] 0.0, 128
        %4763 = vxpose.xlu0.b32.cont [13/16] 0.0, 128
        %4764 = vxpose.xlu0.b32.cont [14/16] 0.0, 128
        %4765 = vxpose.xlu0.b32.cont [15/16] 0.0, 128
        %4766 = vxpose.xlu0.b32.end [16/16] 0.0, 128
        %v4767 = vpop.trf.xlu0
        %v4768 = vpop.trf.xlu0
        %v4769 = vpop.trf.xlu0
        %v4770 = vpop.trf.xlu0
        %v4771 = vpop.trf.xlu0
        %v4772 = vpop.trf.xlu0
        %v4773 = vpop.trf.xlu0
        %v4774 = vpop.trf.xlu0
        %v4775 = vpop.trf.xlu0
        %v4776 = vpop.trf.xlu0
        %v4777 = vpop.trf.xlu0
        %v4778 = vpop.trf.xlu0
        %v4779 = vpop.trf.xlu0
        %v4780 = vpop.trf.xlu0
        %v4781 = vpop.trf.xlu0
        %v4782 = vpop.trf.xlu0
        %v4784 = vsel %vm759, %v4767, 0
        %v4787 = vsel %vm759, %v4768, 0
        %v4790 = vsel %vm759, %v4769, 0
        %v4793 = vsel %vm759, %v4770, 0
        %4795 = vmatprep.subr.mxu0 0.0
        %4796 = vmatpush1.msra.mxu0 0.0
        %4797 = vmatprep.subr.mxu0 0.0
        %4798 = vmatpush1.msra.mxu0 0.0
        %4799 = vmatprep.subr.mxu0 0.0
        %4800 = vmatpush1.msra.mxu0 0.0
        %4801 = vmatprep.subr.mxu0 0.0
        %4802 = vmatpush1.msra.mxu0 0.0
        %4803 = vmatprep.subr.mxu0 0.0
        %4804 = vmatpush1.msra.mxu0 0.0
        %4805 = vmatprep.subr.mxu0 0.0
        %4806 = vmatpush1.msra.mxu0 0.0
        %4807 = vmatprep.subr.mxu0 0.0
        %4808 = vmatpush1.msra.mxu0 0.0
        %4809 = vmatprep.subr.mxu0 0.0
        %4810 = vmatpush1.msra.mxu0 0.0
        %4811 = vmatprep.subr.mxu0 0.0
        %4812 = vmatpush1.msra.mxu0 0.0
        %4813 = vmatprep.subr.mxu0 0.0
        %4814 = vmatpush1.msra.mxu0 0.0
        %4815 = vmatprep.subr.mxu0 0.0
        %4816 = vmatpush1.msra.mxu0 0.0
        %4817 = vmatprep.subr.mxu0 0.0
        %4818 = vmatpush1.msra.mxu0 0.0
        %4819 = vmatprep.subr.mxu0 0.0
        %4820 = vmatpush1.msra.mxu0 %v4621
        %4821 = vmatprep.subr.mxu0 0.0
        %4822 = vmatpush1.msra.mxu0 %v4620
        %4823 = vmatprep.subr.mxu0 0.0
        %4824 = vmatpush1.msra.mxu0 %v4619
        %4825 = vmatprep.subr.mxu0 0.0
        %4826 = vmatpush1.msra.mxu0 %v4618
        %4827 = vmatprep.subr.mxu0 0.0
        %4828 = vmatpush2.msra.mxu0 0.0
        %4829 = vmatprep.subr.mxu0 0.0
        %4830 = vmatpush2.msra.mxu0 0.0
        %4831 = vmatprep.subr.mxu0 0.0
        %4832 = vmatpush2.msra.mxu0 0.0
        %4833 = vmatprep.subr.mxu0 0.0
        %4834 = vmatpush2.msra.mxu0 0.0
        %4835 = vmatprep.subr.mxu0 0.0
        %4836 = vmatpush2.msra.mxu0 0.0
        %4837 = vmatprep.subr.mxu0 0.0
        %4838 = vmatpush2.msra.mxu0 0.0
        %4839 = vmatprep.subr.mxu0 0.0
        %4840 = vmatpush2.msra.mxu0 0.0
        %4841 = vmatprep.subr.mxu0 0.0
        %4842 = vmatpush2.msra.mxu0 0.0
        %4843 = vmatprep.subr.mxu0 0.0
        %4844 = vmatpush2.msra.mxu0 0.0
        %4845 = vmatprep.subr.mxu0 0.0
        %4846 = vmatpush2.msra.mxu0 0.0
        %4847 = vmatprep.subr.mxu0 0.0
        %4848 = vmatpush2.msra.mxu0 0.0
        %4849 = vmatprep.subr.mxu0 0.0
        %4850 = vmatpush2.msra.mxu0 0.0
        %4851 = vmatprep.subr.mxu0 0.0
        %4852 = vmatpush2.msra.mxu0 0.0
        %4853 = vmatprep.subr.mxu0 0.0
        %4854 = vmatpush2.msra.mxu0 0.0
        %4855 = vmatprep.subr.mxu0 0.0
        %4856 = vmatpush2.msra.mxu0 0.0
        %4857 = vmatprep.subr.mxu0 0.0
        %4858 = vmatpush2.msra.mxu0 0.0
        %4859 = vmatprep.mubr.f32.mxu0 0.0
        %4860 = vmatmul.mubr.f32.gmra.mxu0 %v4784
        %v4861 = vpop.f32.mrf.mxu0
        %v4862 = vadd.f32 0.0, %v4861
        %v4863 = vpop.f32.mrf.mxu0
        %4864 = vmatprep.mubr.f32.mxu0 0.0
        %4865 = vmatmul.mubr.f32.gmra.mxu0 %v4787
        %v4866 = vpop.f32.mrf.mxu0
        %v4867 = vadd.f32 0.0, %v4866
        %v4868 = vpop.f32.mrf.mxu0
        %4869 = vmatprep.mubr.f32.mxu0 0.0
        %4870 = vmatmul.mubr.f32.gmra.mxu0 %v4790
        %v4871 = vpop.f32.mrf.mxu0
        %v4872 = vadd.f32 0.0, %v4871
        %v4873 = vpop.f32.mrf.mxu0
        %4874 = vmatprep.mubr.f32.mxu0 0.0
        %4875 = vmatmul.mubr.f32.gmra.mxu0 %v4793
        %v4876 = vpop.f32.mrf.mxu0
        %v4877 = vadd.f32 0.0, %v4876
        %v4878 = vpop.f32.mrf.mxu0
        %4879 = vdwg.mxu0
        %v4880 = vadd.f32 %v4606, %v4733
        %v4881 = vadd.f32 %v4607, %v4738
        %v4882 = vadd.f32 %v4608, %v4743
        %v4883 = vadd.f32 %v4609, %v4748
        %v4884 = vadd.f32 %v4610, %v4862
        %v4885 = vadd.f32 %v4611, %v4867
        %v4886 = vadd.f32 %v4612, %v4872
        %v4887 = vadd.f32 %v4613, %v4877
        %v4888 = vmul.f32 %v990, %v4601
        %v4889 = vmul.f32 %v991, %v4601
        %v4890 = vmul.f32 %v992, %v4601
        %v4891 = vmul.f32 %v993, %v4601
        %v4892 = vmul.f32 %v1027, %v4605
        %v4893 = vmul.f32 %v1029, %v4605
        %v4894 = vmul.f32 %v1031, %v4605
        %v4895 = vmul.f32 %v1033, %v4605
        %4896 = vxpose.xlu0.b32.start [1/16] %v735, 128
        %4897 = vxpose.xlu0.b32.cont [2/16] %v736, 128
        %4898 = vxpose.xlu0.b32.cont [3/16] %v737, 128
        %4899 = vxpose.xlu0.b32.cont [4/16] %v738, 128
        %4900 = vxpose.xlu0.b32.cont [5/16] 0.0, 128
        %4901 = vxpose.xlu0.b32.cont [6/16] 0.0, 128
        %4902 = vxpose.xlu0.b32.cont [7/16] 0.0, 128
        %4903 = vxpose.xlu0.b32.cont [8/16] 0.0, 128
        %4904 = vxpose.xlu0.b32.cont [9/16] 0.0, 128
        %4905 = vxpose.xlu0.b32.cont [10/16] 0.0, 128
        %4906 = vxpose.xlu0.b32.cont [11/16] 0.0, 128
        %4907 = vxpose.xlu0.b32.cont [12/16] 0.0, 128
        %4908 = vxpose.xlu0.b32.cont [13/16] 0.0, 128
        %4909 = vxpose.xlu0.b32.cont [14/16] 0.0, 128
        %4910 = vxpose.xlu0.b32.cont [15/16] 0.0, 128
        %4911 = vxpose.xlu0.b32.end [16/16] 0.0, 128
        %v4912 = vpop.trf.xlu0
        %v4913 = vpop.trf.xlu0
        %v4914 = vpop.trf.xlu0
        %v4915 = vpop.trf.xlu0
        %v4916 = vpop.trf.xlu0
        %v4917 = vpop.trf.xlu0
        %v4918 = vpop.trf.xlu0
        %v4919 = vpop.trf.xlu0
        %v4920 = vpop.trf.xlu0
        %v4921 = vpop.trf.xlu0
        %v4922 = vpop.trf.xlu0
        %v4923 = vpop.trf.xlu0
        %v4924 = vpop.trf.xlu0
        %v4925 = vpop.trf.xlu0
        %v4926 = vpop.trf.xlu0
        %v4927 = vpop.trf.xlu0
        %v4929 = vsel %vm759, %v4912, 0
        %v4932 = vsel %vm759, %v4913, 0
        %v4935 = vsel %vm759, %v4914, 0
        %v4938 = vsel %vm759, %v4915, 0
        %4940 = vmatprep.subr.mxu0 0.0
        %4941 = vmatpush1.msra.mxu0 0.0
        %4942 = vmatprep.subr.mxu0 0.0
        %4943 = vmatpush1.msra.mxu0 0.0
        %4944 = vmatprep.subr.mxu0 0.0
        %4945 = vmatpush1.msra.mxu0 0.0
        %4946 = vmatprep.subr.mxu0 0.0
        %4947 = vmatpush1.msra.mxu0 0.0
        %4948 = vmatprep.subr.mxu0 0.0
        %4949 = vmatpush1.msra.mxu0 0.0
        %4950 = vmatprep.subr.mxu0 0.0
        %4951 = vmatpush1.msra.mxu0 0.0
        %4952 = vmatprep.subr.mxu0 0.0
        %4953 = vmatpush1.msra.mxu0 0.0
        %4954 = vmatprep.subr.mxu0 0.0
        %4955 = vmatpush1.msra.mxu0 0.0
        %4956 = vmatprep.subr.mxu0 0.0
        %4957 = vmatpush1.msra.mxu0 0.0
        %4958 = vmatprep.subr.mxu0 0.0
        %4959 = vmatpush1.msra.mxu0 0.0
        %4960 = vmatprep.subr.mxu0 0.0
        %4961 = vmatpush1.msra.mxu0 0.0
        %4962 = vmatprep.subr.mxu0 0.0
        %4963 = vmatpush1.msra.mxu0 0.0
        %4964 = vmatprep.subr.mxu0 0.0
        %4965 = vmatpush1.msra.mxu0 %v4891
        %4966 = vmatprep.subr.mxu0 0.0
        %4967 = vmatpush1.msra.mxu0 %v4890
        %4968 = vmatprep.subr.mxu0 0.0
        %4969 = vmatpush1.msra.mxu0 %v4889
        %4970 = vmatprep.subr.mxu0 0.0
        %4971 = vmatpush1.msra.mxu0 %v4888
        %4972 = vmatprep.subr.mxu0 0.0
        %4973 = vmatpush2.msra.mxu0 0.0
        %4974 = vmatprep.subr.mxu0 0.0
        %4975 = vmatpush2.msra.mxu0 0.0
        %4976 = vmatprep.subr.mxu0 0.0
        %4977 = vmatpush2.msra.mxu0 0.0
        %4978 = vmatprep.subr.mxu0 0.0
        %4979 = vmatpush2.msra.mxu0 0.0
        %4980 = vmatprep.subr.mxu0 0.0
        %4981 = vmatpush2.msra.mxu0 0.0
        %4982 = vmatprep.subr.mxu0 0.0
        %4983 = vmatpush2.msra.mxu0 0.0
        %4984 = vmatprep.subr.mxu0 0.0
        %4985 = vmatpush2.msra.mxu0 0.0
        %4986 = vmatprep.subr.mxu0 0.0
        %4987 = vmatpush2.msra.mxu0 0.0
        %4988 = vmatprep.subr.mxu0 0.0
        %4989 = vmatpush2.msra.mxu0 0.0
        %4990 = vmatprep.subr.mxu0 0.0
        %4991 = vmatpush2.msra.mxu0 0.0
        %4992 = vmatprep.subr.mxu0 0.0
        %4993 = vmatpush2.msra.mxu0 0.0
        %4994 = vmatprep.subr.mxu0 0.0
        %4995 = vmatpush2.msra.mxu0 0.0
        %4996 = vmatprep.subr.mxu0 0.0
        %4997 = vmatpush2.msra.mxu0 0.0
        %4998 = vmatprep.subr.mxu0 0.0
        %4999 = vmatpush2.msra.mxu0 0.0
        %5000 = vmatprep.subr.mxu0 0.0
        %5001 = vmatpush2.msra.mxu0 0.0
        %5002 = vmatprep.subr.mxu0 0.0
        %5003 = vmatpush2.msra.mxu0 0.0
        %5004 = vmatprep.mubr.f32.mxu0 0.0
        %5005 = vmatmul.mubr.f32.gmra.mxu0 %v4929
        %v5006 = vpop.f32.mrf.mxu0
        %v5007 = vadd.f32 0.0, %v5006
        %v5008 = vpop.f32.mrf.mxu0
        %5009 = vmatprep.mubr.f32.mxu0 0.0
        %5010 = vmatmul.mubr.f32.gmra.mxu0 %v4932
        %v5011 = vpop.f32.mrf.mxu0
        %v5012 = vadd.f32 0.0, %v5011
        %v5013 = vpop.f32.mrf.mxu0
        %5014 = vmatprep.mubr.f32.mxu0 0.0
        %5015 = vmatmul.mubr.f32.gmra.mxu0 %v4935
        %v5016 = vpop.f32.mrf.mxu0
        %v5017 = vadd.f32 0.0, %v5016
        %v5018 = vpop.f32.mrf.mxu0
        %5019 = vmatprep.mubr.f32.mxu0 0.0
        %5020 = vmatmul.mubr.f32.gmra.mxu0 %v4938
        %v5021 = vpop.f32.mrf.mxu0
        %v5022 = vadd.f32 0.0, %v5021
        %v5023 = vpop.f32.mrf.mxu0
        %5024 = vdwg.mxu0
        %5025 = vxpose.xlu0.b32.start [1/16] %v1059, 128
        %5026 = vxpose.xlu0.b32.cont [2/16] %v1061, 128
        %5027 = vxpose.xlu0.b32.cont [3/16] %v1063, 128
        %5028 = vxpose.xlu0.b32.cont [4/16] %v1065, 128
        %5029 = vxpose.xlu0.b32.cont [5/16] 0.0, 128
        %5030 = vxpose.xlu0.b32.cont [6/16] 0.0, 128
        %5031 = vxpose.xlu0.b32.cont [7/16] 0.0, 128
        %5032 = vxpose.xlu0.b32.cont [8/16] 0.0, 128
        %5033 = vxpose.xlu0.b32.cont [9/16] 0.0, 128
        %5034 = vxpose.xlu0.b32.cont [10/16] 0.0, 128
        %5035 = vxpose.xlu0.b32.cont [11/16] 0.0, 128
        %5036 = vxpose.xlu0.b32.cont [12/16] 0.0, 128
        %5037 = vxpose.xlu0.b32.cont [13/16] 0.0, 128
        %5038 = vxpose.xlu0.b32.cont [14/16] 0.0, 128
        %5039 = vxpose.xlu0.b32.cont [15/16] 0.0, 128
        %5040 = vxpose.xlu0.b32.end [16/16] 0.0, 128
        %v5041 = vpop.trf.xlu0
        %v5042 = vpop.trf.xlu0
        %v5043 = vpop.trf.xlu0
        %v5044 = vpop.trf.xlu0
        %v5045 = vpop.trf.xlu0
        %v5046 = vpop.trf.xlu0
        %v5047 = vpop.trf.xlu0
        %v5048 = vpop.trf.xlu0
        %v5049 = vpop.trf.xlu0
        %v5050 = vpop.trf.xlu0
        %v5051 = vpop.trf.xlu0
        %v5052 = vpop.trf.xlu0
        %v5053 = vpop.trf.xlu0
        %v5054 = vpop.trf.xlu0
        %v5055 = vpop.trf.xlu0
        %v5056 = vpop.trf.xlu0
        %v5058 = vsel %vm759, %v5041, 0
        %v5061 = vsel %vm759, %v5042, 0
        %v5064 = vsel %vm759, %v5043, 0
        %v5067 = vsel %vm759, %v5044, 0
        %5069 = vmatprep.subr.mxu0 0.0
        %5070 = vmatpush1.msra.mxu0 0.0
        %5071 = vmatprep.subr.mxu0 0.0
        %5072 = vmatpush1.msra.mxu0 0.0
        %5073 = vmatprep.subr.mxu0 0.0
        %5074 = vmatpush1.msra.mxu0 0.0
        %5075 = vmatprep.subr.mxu0 0.0
        %5076 = vmatpush1.msra.mxu0 0.0
        %5077 = vmatprep.subr.mxu0 0.0
        %5078 = vmatpush1.msra.mxu0 0.0
        %5079 = vmatprep.subr.mxu0 0.0
        %5080 = vmatpush1.msra.mxu0 0.0
        %5081 = vmatprep.subr.mxu0 0.0
        %5082 = vmatpush1.msra.mxu0 0.0
        %5083 = vmatprep.subr.mxu0 0.0
        %5084 = vmatpush1.msra.mxu0 0.0
        %5085 = vmatprep.subr.mxu0 0.0
        %5086 = vmatpush1.msra.mxu0 0.0
        %5087 = vmatprep.subr.mxu0 0.0
        %5088 = vmatpush1.msra.mxu0 0.0
        %5089 = vmatprep.subr.mxu0 0.0
        %5090 = vmatpush1.msra.mxu0 0.0
        %5091 = vmatprep.subr.mxu0 0.0
        %5092 = vmatpush1.msra.mxu0 0.0
        %5093 = vmatprep.subr.mxu0 0.0
        %5094 = vmatpush1.msra.mxu0 %v4895
        %5095 = vmatprep.subr.mxu0 0.0
        %5096 = vmatpush1.msra.mxu0 %v4894
        %5097 = vmatprep.subr.mxu0 0.0
        %5098 = vmatpush1.msra.mxu0 %v4893
        %5099 = vmatprep.subr.mxu0 0.0
        %5100 = vmatpush1.msra.mxu0 %v4892
        %5101 = vmatprep.subr.mxu0 0.0
        %5102 = vmatpush2.msra.mxu0 0.0
        %5103 = vmatprep.subr.mxu0 0.0
        %5104 = vmatpush2.msra.mxu0 0.0
        %5105 = vmatprep.subr.mxu0 0.0
        %5106 = vmatpush2.msra.mxu0 0.0
        %5107 = vmatprep.subr.mxu0 0.0
        %5108 = vmatpush2.msra.mxu0 0.0
        %5109 = vmatprep.subr.mxu0 0.0
        %5110 = vmatpush2.msra.mxu0 0.0
        %5111 = vmatprep.subr.mxu0 0.0
        %5112 = vmatpush2.msra.mxu0 0.0
        %5113 = vmatprep.subr.mxu0 0.0
        %5114 = vmatpush2.msra.mxu0 0.0
        %5115 = vmatprep.subr.mxu0 0.0
        %5116 = vmatpush2.msra.mxu0 0.0
        %5117 = vmatprep.subr.mxu0 0.0
        %5118 = vmatpush2.msra.mxu0 0.0
        %5119 = vmatprep.subr.mxu0 0.0
        %5120 = vmatpush2.msra.mxu0 0.0
        %5121 = vmatprep.subr.mxu0 0.0
        %5122 = vmatpush2.msra.mxu0 0.0
        %5123 = vmatprep.subr.mxu0 0.0
        %5124 = vmatpush2.msra.mxu0 0.0
        %5125 = vmatprep.subr.mxu0 0.0
        %5126 = vmatpush2.msra.mxu0 0.0
        %5127 = vmatprep.subr.mxu0 0.0
        %5128 = vmatpush2.msra.mxu0 0.0
        %5129 = vmatprep.subr.mxu0 0.0
        %5130 = vmatpush2.msra.mxu0 0.0
        %5131 = vmatprep.subr.mxu0 0.0
        %5132 = vmatpush2.msra.mxu0 0.0
        %5133 = vmatprep.mubr.f32.mxu0 0.0
        %5134 = vmatmul.mubr.f32.gmra.mxu0 %v5058
        %v5135 = vpop.f32.mrf.mxu0
        %v5136 = vadd.f32 0.0, %v5135
        %v5137 = vpop.f32.mrf.mxu0
        %5138 = vmatprep.mubr.f32.mxu0 0.0
        %5139 = vmatmul.mubr.f32.gmra.mxu0 %v5061
        %v5140 = vpop.f32.mrf.mxu0
        %v5141 = vadd.f32 0.0, %v5140
        %v5142 = vpop.f32.mrf.mxu0
        %5143 = vmatprep.mubr.f32.mxu0 0.0
        %5144 = vmatmul.mubr.f32.gmra.mxu0 %v5064
        %v5145 = vpop.f32.mrf.mxu0
        %v5146 = vadd.f32 0.0, %v5145
        %v5147 = vpop.f32.mrf.mxu0
        %5148 = vmatprep.mubr.f32.mxu0 0.0
        %5149 = vmatmul.mubr.f32.gmra.mxu0 %v5067
        %v5150 = vpop.f32.mrf.mxu0
        %v5151 = vadd.f32 0.0, %v5150
        %v5152 = vpop.f32.mrf.mxu0
        %5153 = vdwg.mxu0
        %v5154 = vadd.f32 %v4880, %v5007
        %v5155 = vadd.f32 %v4881, %v5012
        %v5156 = vadd.f32 %v4882, %v5017
        %v5157 = vadd.f32 %v4883, %v5022
        %v5158 = vadd.f32 %v4884, %v5136
        %v5159 = vadd.f32 %v4885, %v5141
        %v5160 = vadd.f32 %v4886, %v5146
        %v5161 = vadd.f32 %v4887, %v5151
        %5162 = vst.msk [vmem:[#allocation2] sm:$0xff] %vm759, %v5154
        %5163 = vst.msk [vmem:[#allocation2 + $0x8] sm:$0xff] %vm759, %v5155
        %5164 = vst.msk [vmem:[#allocation2 + $0x10] sm:$0xff] %vm759, %v5156
        %5165 = vst.msk [vmem:[#allocation2 + $0x18] sm:$0xff] %vm759, %v5157
        %5166 = vst.msk [vmem:[#allocation2 + $0x20] sm:$0xff] %vm759, %v5158
        %5167 = vst.msk [vmem:[#allocation2 + $0x28] sm:$0xff] %vm759, %v5159
        %5168 = vst.msk [vmem:[#allocation2 + $0x30] sm:$0xff] %vm759, %v5160
        %5169 = vst.msk [vmem:[#allocation2 + $0x38] sm:$0xff] %vm759, %v5161
        %v5170 = vld [vmem:[%s651] sm:$0x1]
        %5172 = vrot.lane.b32.xlu0 %v5170, 96
        %v5173 = vpop.permute.xlu0 %5172
        %v5174 = vld [vmem:[%s654] sm:$0x1]
        %5176 = vrot.lane.b32.xlu0 %v5174, 96
        %v5177 = vpop.permute.xlu0 %5176
        %v5178 = vld [vmem:[%s657] sm:$0x1]
        %5180 = vrot.lane.b32.xlu0 %v5178, 96
        %v5181 = vpop.permute.xlu0 %5180
        %v5182 = vsel %vm759, %v4586, 0.0
        %5183 = vadd.xlane.f32.xlu0 %v5182
        %v5184 = vpop.xlane.xlu0 %5183
        %v5185 = vsel %vm759, %v4587, 0.0
        %5186 = vadd.xlane.f32.xlu0 %v5185
        %v5187 = vpop.xlane.xlu0 %5186
        %v5188 = vsel %vm759, %v4588, 0.0
        %5189 = vadd.xlane.f32.xlu0 %v5188
        %v5190 = vpop.xlane.xlu0 %5189
        %v5191 = vsel %vm759, %v4589, 0.0
        %5192 = vadd.xlane.f32.xlu0 %v5191
        %v5193 = vpop.xlane.xlu0 %5192
        %v5194 = vsel %vm759, %v4590, 0.0
        %5195 = vadd.xlane.f32.xlu0 %v5194
        %v5196 = vpop.xlane.xlu0 %5195
        %v5197 = vsel %vm759, %v4591, 0.0
        %5198 = vadd.xlane.f32.xlu0 %v5197
        %v5199 = vpop.xlane.xlu0 %5198
        %v5200 = vsel %vm759, %v4592, 0.0
        %5201 = vadd.xlane.f32.xlu0 %v5200
        %v5202 = vpop.xlane.xlu0 %5201
        %v5203 = vsel %vm759, %v4593, 0.0
        %5204 = vadd.xlane.f32.xlu0 %v5203
        %v5205 = vpop.xlane.xlu0 %5204
        %v5206 = vrcp.pop 32.0
        %v5207 = vmul.f32 %v5184, %v5206
        %v5208 = vmul.f32 %v5187, %v5206
        %v5209 = vmul.f32 %v5190, %v5206
        %v5210 = vmul.f32 %v5193, %v5206
        %v5211 = vmul.f32 %v5196, %v5206
        %v5212 = vmul.f32 %v5199, %v5206
        %v5213 = vmul.f32 %v5202, %v5206
        %v5214 = vmul.f32 %v5205, %v5206
        %v5215 = vsub.f32 %v4586, %v5207
        %v5216 = vsub.f32 %v4587, %v5208
        %v5217 = vsub.f32 %v4588, %v5209
        %v5218 = vsub.f32 %v4589, %v5210
        %v5219 = vsub.f32 %v4590, %v5211
        %v5220 = vsub.f32 %v4591, %v5212
        %v5221 = vsub.f32 %v4592, %v5213
        %v5222 = vsub.f32 %v4593, %v5214
        %v5223 = vmul.f32 %v5215, %v5215
        %v5224 = vmul.f32 %v5216, %v5216
        %v5225 = vmul.f32 %v5217, %v5217
        %v5226 = vmul.f32 %v5218, %v5218
        %v5227 = vmul.f32 %v5219, %v5219
        %v5228 = vmul.f32 %v5220, %v5220
        %v5229 = vmul.f32 %v5221, %v5221
        %v5230 = vmul.f32 %v5222, %v5222
        %v5231 = vsel %vm759, %v5223, 0.0
        %5232 = vadd.xlane.f32.xlu0 %v5231
        %v5233 = vpop.xlane.xlu0 %5232
        %v5234 = vsel %vm759, %v5224, 0.0
        %5235 = vadd.xlane.f32.xlu0 %v5234
        %v5236 = vpop.xlane.xlu0 %5235
        %v5237 = vsel %vm759, %v5225, 0.0
        %5238 = vadd.xlane.f32.xlu0 %v5237
        %v5239 = vpop.xlane.xlu0 %5238
        %v5240 = vsel %vm759, %v5226, 0.0
        %5241 = vadd.xlane.f32.xlu0 %v5240
        %v5242 = vpop.xlane.xlu0 %5241
        %v5243 = vsel %vm759, %v5227, 0.0
        %5244 = vadd.xlane.f32.xlu0 %v5243
        %v5245 = vpop.xlane.xlu0 %5244
        %v5246 = vsel %vm759, %v5228, 0.0
        %5247 = vadd.xlane.f32.xlu0 %v5246
        %v5248 = vpop.xlane.xlu0 %5247
        %v5249 = vsel %vm759, %v5229, 0.0
        %5250 = vadd.xlane.f32.xlu0 %v5249
        %v5251 = vpop.xlane.xlu0 %5250
        %v5252 = vsel %vm759, %v5230, 0.0
        %5253 = vadd.xlane.f32.xlu0 %v5252
        %v5254 = vpop.xlane.xlu0 %5253
        %v5255 = vmul.f32 %v5233, %v5206
        %v5256 = vmul.f32 %v5236, %v5206
        %v5257 = vmul.f32 %v5239, %v5206
        %v5258 = vmul.f32 %v5242, %v5206
        %v5259 = vmul.f32 %v5245, %v5206
        %v5260 = vmul.f32 %v5248, %v5206
        %v5261 = vmul.f32 %v5251, %v5206
        %v5262 = vmul.f32 %v5254, %v5206
        %v5263 = vadd.f32 %v5255, 0.00064
        %v5264 = vadd.f32 %v5256, 0.00064
        %v5265 = vadd.f32 %v5257, 0.00064
        %v5266 = vadd.f32 %v5258, 0.00064
        %v5267 = vadd.f32 %v5259, 0.00064
        %v5268 = vadd.f32 %v5260, 0.00064
        %v5269 = vadd.f32 %v5261, 0.00064
        %v5270 = vadd.f32 %v5262, 0.00064
        %v5271 = vrsqrt.pop %v5263
        %v5272 = vrsqrt.pop %v5264
        %v5273 = vrsqrt.pop %v5265
        %v5274 = vrsqrt.pop %v5266
        %v5275 = vrsqrt.pop %v5267
        %v5276 = vrsqrt.pop %v5268
        %v5277 = vrsqrt.pop %v5269
        %v5278 = vrsqrt.pop %v5270
        %v5279 = vmul.f32 %v5215, %v5271
        %v5280 = vmul.f32 %v5216, %v5272
        %v5281 = vmul.f32 %v5217, %v5273
        %v5282 = vmul.f32 %v5218, %v5274
        %v5283 = vmul.f32 %v5219, %v5275
        %v5284 = vmul.f32 %v5220, %v5276
        %v5285 = vmul.f32 %v5221, %v5277
        %v5286 = vmul.f32 %v5222, %v5278
        %v5287 = vlaneseq
        %v5288 = vshrl.u32 %v5287, 7
        %v5289 = vsub.s32 0, %v5288
        %v5290 = vrot.slane %v5170, %v5289
        %v5291 = vlaneseq
        %v5292 = vshrl.u32 %v5291, 7
        %v5293 = vsub.s32 0, %v5292
        %v5294 = vrot.slane %v5173, %v5293
        %v5297 = vmul.f32 %v5279, %v5290
        %v5298 = vmul.f32 %v5280, %v5290
        %v5299 = vmul.f32 %v5281, %v5290
        %v5300 = vmul.f32 %v5282, %v5290
        %v5301 = vmul.f32 %v5283, %v5294
        %v5302 = vmul.f32 %v5284, %v5294
        %v5303 = vmul.f32 %v5285, %v5294
        %v5304 = vmul.f32 %v5286, %v5294
        %v5305 = vlaneseq
        %v5306 = vshrl.u32 %v5305, 7
        %v5307 = vsub.s32 0, %v5306
        %v5308 = vrot.slane %v5174, %v5307
        %v5309 = vlaneseq
        %v5310 = vshrl.u32 %v5309, 7
        %v5311 = vsub.s32 0, %v5310
        %v5312 = vrot.slane %v5177, %v5311
        %v5315 = vadd.f32 %v5297, %v5308
        %v5316 = vadd.f32 %v5298, %v5308
        %v5317 = vadd.f32 %v5299, %v5308
        %v5318 = vadd.f32 %v5300, %v5308
        %v5319 = vadd.f32 %v5301, %v5312
        %v5320 = vadd.f32 %v5302, %v5312
        %v5321 = vadd.f32 %v5303, %v5312
        %v5322 = vadd.f32 %v5304, %v5312
        %5327 = vrot.lane.b32.xlu0 %v719, 96
        %v5328 = vpop.permute.xlu0 %5327
        %5329 = vrot.lane.b32.xlu0 %v720, 96
        %v5330 = vpop.permute.xlu0 %5329
        %5331 = vrot.lane.b32.xlu0 %v721, 96
        %v5332 = vpop.permute.xlu0 %5331
        %5333 = vrot.lane.b32.xlu0 %v722, 96
        %v5334 = vpop.permute.xlu0 %5333
        %5343 = vrot.lane.b32.xlu0 %v727, 96
        %v5344 = vpop.permute.xlu0 %5343
        %5345 = vrot.lane.b32.xlu0 %v728, 96
        %v5346 = vpop.permute.xlu0 %5345
        %5347 = vrot.lane.b32.xlu0 %v729, 96
        %v5348 = vpop.permute.xlu0 %5347
        %5349 = vrot.lane.b32.xlu0 %v730, 96
        %v5350 = vpop.permute.xlu0 %5349
        %v5355 = vmul.f32 %v719, %v727
        %v5356 = vmul.f32 %v720, %v728
        %v5357 = vmul.f32 %v721, %v729
        %v5358 = vmul.f32 %v722, %v730
        %v5359 = vmul.f32 %v5328, %v5344
        %v5360 = vmul.f32 %v5330, %v5346
        %v5361 = vmul.f32 %v5332, %v5348
        %v5362 = vmul.f32 %v5334, %v5350
        %v5363 = vlaneseq
        %v5364 = vshrl.u32 %v5363, 7
        %v5365 = vsub.s32 0, %v5364
        %v5366 = vrot.slane %v5178, %v5365
        %v5367 = vlaneseq
        %v5368 = vshrl.u32 %v5367, 7
        %v5369 = vsub.s32 0, %v5368
        %v5370 = vrot.slane %v5181, %v5369
        %v5373 = vmul.f32 %v5355, %v5366
        %v5374 = vmul.f32 %v5356, %v5366
        %v5375 = vmul.f32 %v5357, %v5366
        %v5376 = vmul.f32 %v5358, %v5366
        %v5377 = vmul.f32 %v5359, %v5370
        %v5378 = vmul.f32 %v5360, %v5370
        %v5379 = vmul.f32 %v5361, %v5370
        %v5380 = vmul.f32 %v5362, %v5370
        %v5381 = vsel %vm759, %v5373, 0.0
        %5382 = vadd.xlane.f32.xlu0 %v5381
        %v5383 = vpop.xlane.xlu0 %5382
        %v5384 = vsel %vm759, %v5374, 0.0
        %5385 = vadd.xlane.f32.xlu0 %v5384
        %v5386 = vpop.xlane.xlu0 %5385
        %v5387 = vsel %vm759, %v5375, 0.0
        %5388 = vadd.xlane.f32.xlu0 %v5387
        %v5389 = vpop.xlane.xlu0 %5388
        %v5390 = vsel %vm759, %v5376, 0.0
        %5391 = vadd.xlane.f32.xlu0 %v5390
        %v5392 = vpop.xlane.xlu0 %5391
        %v5393 = vsel %vm759, %v5377, 0.0
        %5394 = vadd.xlane.f32.xlu0 %v5393
        %v5395 = vpop.xlane.xlu0 %5394
        %v5396 = vsel %vm759, %v5378, 0.0
        %5397 = vadd.xlane.f32.xlu0 %v5396
        %v5398 = vpop.xlane.xlu0 %5397
        %v5399 = vsel %vm759, %v5379, 0.0
        %5400 = vadd.xlane.f32.xlu0 %v5399
        %v5401 = vpop.xlane.xlu0 %5400
        %v5402 = vsel %vm759, %v5380, 0.0
        %5403 = vadd.xlane.f32.xlu0 %v5402
        %v5404 = vpop.xlane.xlu0 %5403
        %v5405 = vmul.f32 %v5383, %v735
        %v5406 = vmul.f32 %v5386, %v736
        %v5407 = vmul.f32 %v5389, %v737
        %v5408 = vmul.f32 %v5392, %v738
        %v5409 = vmul.f32 %v5395, %v1059
        %v5410 = vmul.f32 %v5398, %v1061
        %v5411 = vmul.f32 %v5401, %v1063
        %v5412 = vmul.f32 %v5404, %v1065
        %v5413 = vadd.f32 %v5315, %v5405
        %v5414 = vadd.f32 %v5316, %v5406
        %v5415 = vadd.f32 %v5317, %v5407
        %v5416 = vadd.f32 %v5318, %v5408
        %v5417 = vadd.f32 %v5319, %v5409
        %v5418 = vadd.f32 %v5320, %v5410
        %v5419 = vadd.f32 %v5321, %v5411
        %v5420 = vadd.f32 %v5322, %v5412
        %5425 = vrot.lane.b32.xlu0 %v5417, 32
        %v5426 = vpop.permute.xlu0 %5425
        %5427 = vrot.lane.b32.xlu0 %v5418, 32
        %v5428 = vpop.permute.xlu0 %5427
        %5429 = vrot.lane.b32.xlu0 %v5419, 32
        %v5430 = vpop.permute.xlu0 %5429
        %5431 = vrot.lane.b32.xlu0 %v5420, 32
        %v5432 = vpop.permute.xlu0 %5431
        %v5437 = vsel %vm759, %v5413, %v5426
        %v5438 = vsel %vm759, %v5414, %v5428
        %v5439 = vsel %vm759, %v5415, %v5430
        %v5440 = vsel %vm759, %v5416, %v5432
        %vm5441 = vcmask 523264
        %5442 = vst.msk [vmem:[%s642] sm:$0xff] %vm5441, %v5437
        %5443 = vst.msk [vmem:[%s642 + $0x8] sm:$0xff] %vm5441, %v5438
        %5444 = vst.msk [vmem:[%s642 + $0x10] sm:$0xff] %vm5441, %v5439
        %5445 = vst.msk [vmem:[%s642 + $0x18] sm:$0xff] %vm5441, %v5440
        %s5446 = sand.u32 %s324, 1
        %s5447 = scalar_lea.sflag [#allocation5], %s5446
        %s5448 = sand.u32 %s324, 1
        %s5449 = smul.addr %s5448, 32
        %s5450 = scalar_lea.vmem [#allocation14], %s5449
        // Predicated region
        $region85: #{tpu_custom_call.1} parent=55 // pred_check
          %p5451 = pneg %p334
        $region86: #{tpu_custom_call.1} parent=55 // pred_check_branch
          %5453 = sbr.rel (%p5451) target = $region88
        $region87: #{tpu_custom_call.1} parent=55 // pred_region
          %s5454 = smul.u32 4, %s42
          %s5456 = ssub.s32 512, 512
          %5457 = vsyncadd %s5447, %s5456
          %s5458 = sadd.s32 %s41, %s5454
          %s5459 = smul.addr %s40, 8
          %s5460 = sadd.s32 %s5458, %s5459
          %s5461 = smul.addr %s5460, 128
          %s5462 = scalar_lea.hbm %s9, %s5461
          %s5463 = sshll.u32 %s5450, 4
          %s5464 = int_to_ptr.vmem [resolvable:$true] %s5463
          %5469 = dma.vmem_to_hbm [thread:$0]  %s5464, 512, %s5462, %s5447, 128, 128, 8
        $region88: #{tpu_custom_call.1} parent=55 // pred_fallthru
          _
      $region56: #{tpu_custom_call.1} parent=5 // pred_fallthru
        _
      %p5470 = scmp.le.s32.totalorder 2, %s30
      // Predicated region
      $region89: #{tpu_custom_call.1} parent=5 // pred_check
        %p5471 = pneg %p5470
      $region90: #{tpu_custom_call.1} parent=5 // pred_check_branch
        %5473 = sbr.rel (%p5471) target = $region92
      $region91: #{tpu_custom_call.1} parent=5 // pred_region
        %s5474 = ssub.s32 %s30, 2
        // Predicated region
        $region93: #{tpu_custom_call.1} parent=91 // pred_check
          %p5475 = pneg %p340
        $region94: #{tpu_custom_call.1} parent=91 // pred_check_branch
          %5477 = sbr.rel (%p5475) target = $region96
        $region95: #{tpu_custom_call.1} parent=91 // pred_region
          %s5478 = sand.u32 %s325, 1
          %s5479 = scalar_lea.sflag [#allocation5], %s5478
          %s5480 = sand.u32 %s325, 1
          %s5481 = smul.addr %s5480, 32
          %s5482 = scalar_lea.vmem [#allocation14], %s5481
          %5483 = dma.done %s5479, 512
        $region96: #{tpu_custom_call.1} parent=91 // pred_fallthru
          _
      $region92: #{tpu_custom_call.1} parent=5 // pred_fallthru
        _
    $region6: #{tpu_custom_call.1} parent=1 // loop_footer
      %s34 = sadd.s32 1, %s30
    $region7: #{tpu_custom_call.1} parent=1 // loop_footer_branch
      %29 = sbr.rel target = $region3
    $region8: #{tpu_custom_call.1} parent=1 // loop_exit
      _
    %5484 = vsyncpa [#allocation4], 1
    %s5485 = scalar_lea.sflag [#allocation4], 1
    %5486 = vsyncpa %s5485, 1
    %5487 = vsyncpa [#allocation7], 1
    %s5488 = scalar_lea.sflag [#allocation7], 1
    %5489 = vsyncpa %s5488, 1
    %5490 = vsyncpa [#allocation10], 1
    %s5491 = scalar_lea.sflag [#allocation10], 1
    %5492 = vsyncpa %s5491, 1
    %5493 = vsyncpa [#allocation13], 1
    %s5494 = scalar_lea.sflag [#allocation13], 1
    %5495 = vsyncpa %s5494, 1
    %5496 = vsyncpa [#allocation5], 1
    %s5497 = scalar_lea.sflag [#allocation5], 1
    %5498 = vsyncpa %s5497, 1

</llo_original>
